<compile_context>
chip_gen: v5e
topology: v5e:2x2
jax: 0.10.0
libtpu: 0.0.40
codegen_flags: <defaults>
</compile_context>

<pallas_src>
import functools

import jax
import jax.numpy as jnp
import numpy as np
from jax.experimental import pallas as pl
from jax.experimental.pallas import tpu as pltpu

K1 = 51                      # conv1 kernel width
KW2 = 5                      # conv2 kernel width (and its stride)
S_VALID = K1 + KW2 - 1       # 55 distinct taps x[5*w2 + s], s in [0, 55)
SQ = 64                      # staging-tile rows (55 real, padded to a sublane multiple)
NM = -(-S_VALID // KW2)      # 11 groups of KW2 taps per channel
_LANES = 128
_VMEM_LIMIT = 32 * 1024 * 1024   # safe on v5e/v6e/v7x


def _round_up(x, m):
    return (x + m - 1) // m * m


def _fused_kernel(xp_ref, w1s_ref, shift5_ref, w2t_ref, b2_ref, out_ref,
                  q_scr, g_scr, *, chans, emb, w2p):
    """One batch element per grid step; the whole pipeline stays in VMEM.

    xp_ref    : (chans*5, UP)   f32   phase-split input, xp[c*5+p, u] = x[c, 5u+p]
    w1s_ref   : (5*emb, SQ)     bf16  shifted conv1 weight (BN scale folded in)
    shift5_ref: (5*emb, 1)      f32   conv1 bias + BN shift, tiled over k2
    w2t_ref   : (emb, chans*5*emb) bf16  conv2 weight, columns ordered (c, k2, e1)
    b2_ref    : (emb, 1)        f32
    out_ref   : (emb, w2p)      f32   out[e2, w2]
    q_scr     : (SQ, w2p)       f32   per-channel staging: Q[s, w2] = x[c, 5*w2 + s]
    g_scr     : (chans*5*emb, w2p) bf16  conv1+BN+LeakyReLU activations (conv2 rhs)
    """
    # Rows >= S_VALID must not carry garbage (they hit zero weight columns, but keep finite).
    q_scr[...] = jnp.zeros_like(q_scr)

    for c in range(chans):
        # In-kernel "im2col": NM contiguous (KW2, w2p) copies per channel.
        for m in range(NM):
            q_scr[m * KW2:(m + 1) * KW2, :] = xp_ref[c * KW2:(c + 1) * KW2, m:m + w2p]
        # conv1 + BN + LeakyReLU for all 5 conv2 taps of this channel: one MXU pass.
        y = jnp.dot(w1s_ref[...], q_scr[...].astype(jnp.bfloat16),
                    preferred_element_type=jnp.float32)                  # (5E, w2p)
        y = y + shift5_ref[...]
        y = jnp.where(y > 0, y, 0.2 * y)
        g_scr[c * KW2 * emb:(c + 1) * KW2 * emb, :] = y.astype(g_scr.dtype)

    # conv2 (stride-5, full height) as a single full-K MXU matmul + bias.
    acc = jnp.dot(w2t_ref[...], g_scr[...], preferred_element_type=jnp.float32)  # (E, w2p)
    out_ref[...] = acc + b2_ref[...]


def fold_params(params, *, chans, emb_size):
    """One-time host prep: fold BN + conv1 bias, build the shifted/stacked weights."""
    E, C = emb_size, chans
    scale = params["bn_gamma"] * jax.lax.rsqrt(params["bn_var"] + 1e-5)          # (E,)
    w1e = params["w1"].reshape(E, K1) * scale[:, None]                           # (E, K1)
    # w1s[k2*E + e1, s] = w1e[e1, s - k2]  for s in [k2, k2+K1), zero elsewhere
    w1s = jnp.concatenate(
        [jnp.pad(w1e, ((0, 0), (k2, SQ - K1 - k2))) for k2 in range(KW2)], axis=0)
    shift = params["bn_beta"] + (params["b1"] - params["bn_mean"]) * scale       # (E,)
    shift5 = jnp.tile(shift, (KW2,)).reshape(KW2 * E, 1)
    # conv2 weight (E2, E1, C, 5) -> (E2, C, 5, E1) -> flat columns ordered (c, k2, e1)
    w2t = jnp.transpose(params["w2"], (0, 2, 3, 1)).reshape(E, C * KW2 * E)
    return {
        "w1s": w1s.astype(jnp.bfloat16),
        "shift5": shift5.astype(jnp.float32),
        "w2t": w2t.astype(jnp.bfloat16),
        "b2": params["b2"].reshape(E, 1).astype(jnp.float32),
    }


def patch_embedding_forward(x, folded, *, chans, emb_size):
    """x: (b, 1, chans, T) float32 NCHW -> (b, n_patches, emb_size)."""
    b = x.shape[0]
    T = x.shape[-1]
    C, E = chans, emb_size
    W1 = T - K1 + 1                    # conv1 output width (stride 1, valid)
    W2 = (W1 - KW2) // KW2 + 1         # conv2 output width (stride 5, valid)
    W2P = _round_up(W2, _LANES)        # conv2 output width kept lane-dense
    UP = W2P + _LANES                  # phase-stream length (>= W2P + NM)

    # O(input)-cost phase split (replaces the old 64x-amplified host im2col):
    #   xp[b, c*5+p, u] = x[b, 0, c, 5u+p]   (zero-padded past T)
    x2 = jnp.pad(x[:, 0], ((0, 0), (0, 0), (0, KW2 * UP - T)))
    xp = x2.reshape(b, C, UP, KW2).transpose(0, 1, 3, 2).reshape(b, C * KW2, UP)
    xp = xp.astype(jnp.float32)

    kernel = functools.partial(_fused_kernel, chans=C, emb=E, w2p=W2P)
    out_t = pl.pallas_call(
        kernel,
        out_shape=jax.ShapeDtypeStruct((b, E, W2P), jnp.float32),
        grid=(b,),
        in_specs=[
            pl.BlockSpec((None, C * KW2, UP), lambda i: (i, 0, 0)),   # xp (per-batch slab)
            pl.BlockSpec((KW2 * E, SQ), lambda i: (0, 0)),            # w1s (resident)
            pl.BlockSpec((KW2 * E, 1), lambda i: (0, 0)),             # shift5
            pl.BlockSpec((E, C * KW2 * E), lambda i: (0, 0)),         # w2t (resident)
            pl.BlockSpec((E, 1), lambda i: (0, 0)),                   # b2
        ],
        out_specs=pl.BlockSpec((None, E, W2P), lambda i: (i, 0, 0)),
        scratch_shapes=[
            pltpu.VMEM((SQ, W2P), jnp.float32),                       # Q staging tile
            pltpu.VMEM((C * KW2 * E, W2P), jnp.bfloat16),             # G (conv2 rhs)
        ],
        compiler_params=pltpu.CompilerParams(
            dimension_semantics=("parallel",),
            vmem_limit_bytes=_VMEM_LIMIT),
    )(xp, folded["w1s"], folded["shift5"], folded["w2t"], folded["b2"])

    # Rearrange 'b e (h w) -> b (h w) e' with h == 1; drop the lane padding.
    return jnp.transpose(out_t[:, :, :W2], (0, 2, 1))


def make_params(key, *, chans, emb_size):
    ks = jax.random.split(key, 8)
    E, C = emb_size, chans
    params = {
        "w1": jax.random.normal(ks[0], (E, 1, 1, K1), jnp.float32) * 0.1,
        "b1": jax.random.normal(ks[1], (E,), jnp.float32) * 0.1,
        # BatchNorm2d (inference mode / running statistics)
        "bn_gamma": 1.0 + 0.1 * jax.random.normal(ks[2], (E,), jnp.float32),
        "bn_beta": 0.1 * jax.random.normal(ks[3], (E,), jnp.float32),
        "bn_mean": 0.1 * jax.random.normal(ks[4], (E,), jnp.float32),
        "bn_var": 0.5 + jax.random.uniform(ks[5], (E,), jnp.float32),
        "w2": jax.random.normal(ks[6], (E, E, C, KW2), jnp.float32) * 0.05,
        "b2": jax.random.normal(ks[7], (E,), jnp.float32) * 0.1,
        # cls_token exists in the module but is not used in the returned forward value
        "cls_token": jax.random.normal(jax.random.PRNGKey(42), (1, 1, E), jnp.float32),
    }
    return params


def reference_forward(x, params):
    """Independent pure-JAX (f32) reference using lax.conv, for correctness check."""
    y = jax.lax.conv_general_dilated(
        x, params["w1"], window_strides=(1, 1), padding="VALID",
        dimension_numbers=("NCHW", "OIHW", "NCHW"))
    y = y + params["b1"][None, :, None, None]
    inv = jax.lax.rsqrt(params["bn_var"] + 1e-5)
    scale = (inv * params["bn_gamma"])[None, :, None, None]
    y = (y - params["bn_mean"][None, :, None, None]) * scale \
        + params["bn_beta"][None, :, None, None]
    y = jnp.where(y > 0, y, 0.2 * y)
    z = jax.lax.conv_general_dilated(
        y, params["w2"], window_strides=(1, 5), padding="VALID",
        dimension_numbers=("NCHW", "OIHW", "NCHW"))
    z = z + params["b2"][None, :, None, None]
    bb, e, hh, w = z.shape
    return jnp.transpose(z, (0, 2, 3, 1)).reshape(bb, hh * w, e)


if __name__ == "__main__":
    # Small shapes consistent with the module: b=2, chans=4, emb_size=32, T=100.
    b, chans, emb_size, T = 2, 4, 32, 100
    key = jax.random.PRNGKey(0)
    k_x, k_p = jax.random.split(key)
    x = jax.random.normal(k_x, (b, 1, chans, T), jnp.float32)
    params = make_params(k_p, chans=chans, emb_size=emb_size)
    folded = fold_params(params, chans=chans, emb_size=emb_size)

    out = patch_embedding_forward(x, folded, chans=chans, emb_size=emb_size)
    out = jax.block_until_ready(out)

    ref = jax.block_until_ready(reference_forward(x, params))
    assert out.shape == (b, 10, emb_size), out.shape
    # bf16 MXU operands with f32 accumulation -> loosened tolerance (per review).
    np.testing.assert_allclose(np.asarray(out), np.asarray(ref), rtol=2e-2, atol=3e-2)

    print("KERNEL_OK")
</pallas_src>

<mosaic_0001>
module attributes {stable_mosaic.version = 11 : i64} {
  func.func @_fused_kernel(%arg0: i32, %arg1: memref<1x20x256xf32, #tpu.memory_space<vmem>>, %arg2: memref<160x64xbf16, #tpu.memory_space<vmem>>, %arg3: memref<160x1xf32, #tpu.memory_space<vmem>>, %arg4: memref<32x640xbf16, #tpu.memory_space<vmem>>, %arg5: memref<32x1xf32, #tpu.memory_space<vmem>>, %arg6: memref<1x32x128xf32, #tpu.memory_space<vmem>>, %arg7: memref<64x128xf32, #tpu.memory_space<vmem>>, %arg8: memref<640x128xbf16, #tpu.memory_space<vmem>>) attributes {dimension_semantics = [#tpu.dimension_semantics<parallel>], iteration_bounds = array<i64: 2>, scalar_prefetch = 0 : i64, scratch_operands = 2 : i64, tpu.core_type = #tpu.core_type<tc>, window_params = [{transform_indices = @transform_0, window_bounds = array<i64: 1, 20, 256>}, {pipeline_mode = #tpu.pipeline_mode<synchronous>, transform_indices = @transform_1, window_bounds = array<i64: 160, 64>}, {pipeline_mode = #tpu.pipeline_mode<synchronous>, transform_indices = @transform_2, window_bounds = array<i64: 160, 1>}, {pipeline_mode = #tpu.pipeline_mode<synchronous>, transform_indices = @transform_3, window_bounds = array<i64: 32, 640>}, {pipeline_mode = #tpu.pipeline_mode<synchronous>, transform_indices = @transform_4, window_bounds = array<i64: 32, 1>}, {transform_indices = @transform_5, window_bounds = array<i64: 1, 32, 128>}]} {
    %cst = arith.constant 0.000000e+00 : f32
    %0 = vector.broadcast %cst : f32 to vector<64x128xf32>
    %c0 = arith.constant 0 : index
    %c0_0 = arith.constant 0 : index
    %1 = vector.load %arg7[%c0, %c0_0] : memref<64x128xf32, #tpu.memory_space<vmem>>, vector<64x128xf32>
    tpu.vector_store %arg7[%c0, %c0_0], %0 {strides = array<i32>} : memref<64x128xf32, #tpu.memory_space<vmem>>, vector<64x128xf32>,
    %c0_1 = arith.constant 0 : index
    %c0_2 = arith.constant 0 : index
    %c0_3 = arith.constant 0 : index
    %2 = vector.load %arg1[%c0_1, %c0_2, %c0_3] : memref<1x20x256xf32, #tpu.memory_space<vmem>>, vector<1x5x128xf32>
    %3 = vector.shape_cast %2 : vector<1x5x128xf32> to vector<5x128xf32>
    %c0_4 = arith.constant 0 : index
    %c0_5 = arith.constant 0 : index
    %4 = vector.load %arg7[%c0_4, %c0_5] : memref<64x128xf32, #tpu.memory_space<vmem>>, vector<5x128xf32>
    tpu.vector_store %arg7[%c0_4, %c0_5], %3 {strides = array<i32>} : memref<64x128xf32, #tpu.memory_space<vmem>>, vector<5x128xf32>,
    %c0_6 = arith.constant 0 : index
    %c0_7 = arith.constant 0 : index
    %c1 = arith.constant 1 : index
    %5 = vector.load %arg1[%c0_6, %c0_7, %c1] : memref<1x20x256xf32, #tpu.memory_space<vmem>>, vector<1x5x128xf32>
    %6 = vector.shape_cast %5 : vector<1x5x128xf32> to vector<5x128xf32>
    %c5 = arith.constant 5 : index
    %c0_8 = arith.constant 0 : index
    %7 = vector.load %arg7[%c5, %c0_8] : memref<64x128xf32, #tpu.memory_space<vmem>>, vector<5x128xf32>
    tpu.vector_store %arg7[%c5, %c0_8], %6 {strides = array<i32>} : memref<64x128xf32, #tpu.memory_space<vmem>>, vector<5x128xf32>,
    %c0_9 = arith.constant 0 : index
    %c0_10 = arith.constant 0 : index
    %c2 = arith.constant 2 : index
    %8 = vector.load %arg1[%c0_9, %c0_10, %c2] : memref<1x20x256xf32, #tpu.memory_space<vmem>>, vector<1x5x128xf32>
    %9 = vector.shape_cast %8 : vector<1x5x128xf32> to vector<5x128xf32>
    %c10 = arith.constant 10 : index
    %c0_11 = arith.constant 0 : index
    %10 = vector.load %arg7[%c10, %c0_11] : memref<64x128xf32, #tpu.memory_space<vmem>>, vector<5x128xf32>
    tpu.vector_store %arg7[%c10, %c0_11], %9 {strides = array<i32>} : memref<64x128xf32, #tpu.memory_space<vmem>>, vector<5x128xf32>,
    %c0_12 = arith.constant 0 : index
    %c0_13 = arith.constant 0 : index
    %c3 = arith.constant 3 : index
    %11 = vector.load %arg1[%c0_12, %c0_13, %c3] : memref<1x20x256xf32, #tpu.memory_space<vmem>>, vector<1x5x128xf32>
    %12 = vector.shape_cast %11 : vector<1x5x128xf32> to vector<5x128xf32>
    %c15 = arith.constant 15 : index
    %c0_14 = arith.constant 0 : index
    %13 = vector.load %arg7[%c15, %c0_14] : memref<64x128xf32, #tpu.memory_space<vmem>>, vector<5x128xf32>
    tpu.vector_store %arg7[%c15, %c0_14], %12 {strides = array<i32>} : memref<64x128xf32, #tpu.memory_space<vmem>>, vector<5x128xf32>,
    %c0_15 = arith.constant 0 : index
    %c0_16 = arith.constant 0 : index
    %c4 = arith.constant 4 : index
    %14 = vector.load %arg1[%c0_15, %c0_16, %c4] : memref<1x20x256xf32, #tpu.memory_space<vmem>>, vector<1x5x128xf32>
    %15 = vector.shape_cast %14 : vector<1x5x128xf32> to vector<5x128xf32>
    %c20 = arith.constant 20 : index
    %c0_17 = arith.constant 0 : index
    %16 = vector.load %arg7[%c20, %c0_17] : memref<64x128xf32, #tpu.memory_space<vmem>>, vector<5x128xf32>
    tpu.vector_store %arg7[%c20, %c0_17], %15 {strides = array<i32>} : memref<64x128xf32, #tpu.memory_space<vmem>>, vector<5x128xf32>,
    %c0_18 = arith.constant 0 : index
    %c0_19 = arith.constant 0 : index
    %c5_20 = arith.constant 5 : index
    %17 = vector.load %arg1[%c0_18, %c0_19, %c5_20] : memref<1x20x256xf32, #tpu.memory_space<vmem>>, vector<1x5x128xf32>
    %18 = vector.shape_cast %17 : vector<1x5x128xf32> to vector<5x128xf32>
    %c25 = arith.constant 25 : index
    %c0_21 = arith.constant 0 : index
    %19 = vector.load %arg7[%c25, %c0_21] : memref<64x128xf32, #tpu.memory_space<vmem>>, vector<5x128xf32>
    tpu.vector_store %arg7[%c25, %c0_21], %18 {strides = array<i32>} : memref<64x128xf32, #tpu.memory_space<vmem>>, vector<5x128xf32>,
    %c0_22 = arith.constant 0 : index
    %c0_23 = arith.constant 0 : index
    %c6 = arith.constant 6 : index
    %20 = vector.load %arg1[%c0_22, %c0_23, %c6] : memref<1x20x256xf32, #tpu.memory_space<vmem>>, vector<1x5x128xf32>
    %21 = vector.shape_cast %20 : vector<1x5x128xf32> to vector<5x128xf32>
    %c30 = arith.constant 30 : index
    %c0_24 = arith.constant 0 : index
    %22 = vector.load %arg7[%c30, %c0_24] : memref<64x128xf32, #tpu.memory_space<vmem>>, vector<5x128xf32>
    tpu.vector_store %arg7[%c30, %c0_24], %21 {strides = array<i32>} : memref<64x128xf32, #tpu.memory_space<vmem>>, vector<5x128xf32>,
    %c0_25 = arith.constant 0 : index
    %c0_26 = arith.constant 0 : index
    %c7 = arith.constant 7 : index
    %23 = vector.load %arg1[%c0_25, %c0_26, %c7] : memref<1x20x256xf32, #tpu.memory_space<vmem>>, vector<1x5x128xf32>
    %24 = vector.shape_cast %23 : vector<1x5x128xf32> to vector<5x128xf32>
    %c35 = arith.constant 35 : index
    %c0_27 = arith.constant 0 : index
    %25 = vector.load %arg7[%c35, %c0_27] : memref<64x128xf32, #tpu.memory_space<vmem>>, vector<5x128xf32>
    tpu.vector_store %arg7[%c35, %c0_27], %24 {strides = array<i32>} : memref<64x128xf32, #tpu.memory_space<vmem>>, vector<5x128xf32>,
    %c0_28 = arith.constant 0 : index
    %c0_29 = arith.constant 0 : index
    %c8 = arith.constant 8 : index
    %26 = vector.load %arg1[%c0_28, %c0_29, %c8] : memref<1x20x256xf32, #tpu.memory_space<vmem>>, vector<1x5x128xf32>
    %27 = vector.shape_cast %26 : vector<1x5x128xf32> to vector<5x128xf32>
    %c40 = arith.constant 40 : index
    %c0_30 = arith.constant 0 : index
    %28 = vector.load %arg7[%c40, %c0_30] : memref<64x128xf32, #tpu.memory_space<vmem>>, vector<5x128xf32>
    tpu.vector_store %arg7[%c40, %c0_30], %27 {strides = array<i32>} : memref<64x128xf32, #tpu.memory_space<vmem>>, vector<5x128xf32>,
    %c0_31 = arith.constant 0 : index
    %c0_32 = arith.constant 0 : index
    %c9 = arith.constant 9 : index
    %29 = vector.load %arg1[%c0_31, %c0_32, %c9] : memref<1x20x256xf32, #tpu.memory_space<vmem>>, vector<1x5x128xf32>
    %30 = vector.shape_cast %29 : vector<1x5x128xf32> to vector<5x128xf32>
    %c45 = arith.constant 45 : index
    %c0_33 = arith.constant 0 : index
    %31 = vector.load %arg7[%c45, %c0_33] : memref<64x128xf32, #tpu.memory_space<vmem>>, vector<5x128xf32>
    tpu.vector_store %arg7[%c45, %c0_33], %30 {strides = array<i32>} : memref<64x128xf32, #tpu.memory_space<vmem>>, vector<5x128xf32>,
    %c0_34 = arith.constant 0 : index
    %c0_35 = arith.constant 0 : index
    %c10_36 = arith.constant 10 : index
    %32 = vector.load %arg1[%c0_34, %c0_35, %c10_36] : memref<1x20x256xf32, #tpu.memory_space<vmem>>, vector<1x5x128xf32>
    %33 = vector.shape_cast %32 : vector<1x5x128xf32> to vector<5x128xf32>
    %c50 = arith.constant 50 : index
    %c0_37 = arith.constant 0 : index
    %34 = vector.load %arg7[%c50, %c0_37] : memref<64x128xf32, #tpu.memory_space<vmem>>, vector<5x128xf32>
    tpu.vector_store %arg7[%c50, %c0_37], %33 {strides = array<i32>} : memref<64x128xf32, #tpu.memory_space<vmem>>, vector<5x128xf32>,
    %c0_38 = arith.constant 0 : index
    %c0_39 = arith.constant 0 : index
    %35 = vector.load %arg2[%c0_38, %c0_39] : memref<160x64xbf16, #tpu.memory_space<vmem>>, vector<160x64xbf16>
    %c0_40 = arith.constant 0 : index
    %c0_41 = arith.constant 0 : index
    %36 = vector.load %arg7[%c0_40, %c0_41] : memref<64x128xf32, #tpu.memory_space<vmem>>, vector<64x128xf32>
    %37 = arith.truncf %36 : vector<64x128xf32> to vector<64x128xbf16>
    %cst_42 = arith.constant dense<0.000000e+00> : vector<160x128xf32>
    %38 = tpu.matmul %35, %37, %cst_42 {dimension_numbers = #tpu.dot_dimension_numbers<[1], [0], [0], [1], [0, 0, 1, 1], [], []>} : vector<160x64xbf16>, vector<64x128xbf16>, vector<160x128xf32> -> vector<160x128xf32>
    %c0_43 = arith.constant 0 : index
    %c0_44 = arith.constant 0 : index
    %39 = vector.load %arg3[%c0_43, %c0_44] : memref<160x1xf32, #tpu.memory_space<vmem>>, vector<160x1xf32>
    %40 = vector.broadcast %39 : vector<160x1xf32> to vector<160x128xf32>
    %41 = arith.addf %38, %40 : vector<160x128xf32>
    %cst_45 = arith.constant 0.000000e+00 : f32
    %42 = vector.broadcast %cst_45 : f32 to vector<160x128xf32>
    %43 = arith.cmpf ogt, %41, %42 : vector<160x128xf32>
    %cst_46 = arith.constant 2.000000e-01 : f32
    %44 = vector.broadcast %cst_46 : f32 to vector<160x128xf32>
    %45 = arith.mulf %44, %41 : vector<160x128xf32>
    %46 = arith.select %43, %41, %45 : vector<160x128xi1>, vector<160x128xf32>
    %47 = arith.truncf %46 : vector<160x128xf32> to vector<160x128xbf16>
    %c0_47 = arith.constant 0 : index
    %c0_48 = arith.constant 0 : index
    %48 = vector.load %arg8[%c0_47, %c0_48] : memref<640x128xbf16, #tpu.memory_space<vmem>>, vector<160x128xbf16>
    tpu.vector_store %arg8[%c0_47, %c0_48], %47 {strides = array<i32>} : memref<640x128xbf16, #tpu.memory_space<vmem>>, vector<160x128xbf16>,
    %c0_49 = arith.constant 0 : index
    %c5_50 = arith.constant 5 : index
    %c0_51 = arith.constant 0 : index
    %49 = vector.load %arg1[%c0_49, %c5_50, %c0_51] : memref<1x20x256xf32, #tpu.memory_space<vmem>>, vector<1x5x128xf32>
    %50 = vector.shape_cast %49 : vector<1x5x128xf32> to vector<5x128xf32>
    %c0_52 = arith.constant 0 : index
    %c0_53 = arith.constant 0 : index
    %51 = vector.load %arg7[%c0_52, %c0_53] : memref<64x128xf32, #tpu.memory_space<vmem>>, vector<5x128xf32>
    tpu.vector_store %arg7[%c0_52, %c0_53], %50 {strides = array<i32>} : memref<64x128xf32, #tpu.memory_space<vmem>>, vector<5x128xf32>,
    %c0_54 = arith.constant 0 : index
    %c5_55 = arith.constant 5 : index
    %c1_56 = arith.constant 1 : index
    %52 = vector.load %arg1[%c0_54, %c5_55, %c1_56] : memref<1x20x256xf32, #tpu.memory_space<vmem>>, vector<1x5x128xf32>
    %53 = vector.shape_cast %52 : vector<1x5x128xf32> to vector<5x128xf32>
    %c5_57 = arith.constant 5 : index
    %c0_58 = arith.constant 0 : index
    %54 = vector.load %arg7[%c5_57, %c0_58] : memref<64x128xf32, #tpu.memory_space<vmem>>, vector<5x128xf32>
    tpu.vector_store %arg7[%c5_57, %c0_58], %53 {strides = array<i32>} : memref<64x128xf32, #tpu.memory_space<vmem>>, vector<5x128xf32>,
    %c0_59 = arith.constant 0 : index
    %c5_60 = arith.constant 5 : index
    %c2_61 = arith.constant 2 : index
    %55 = vector.load %arg1[%c0_59, %c5_60, %c2_61] : memref<1x20x256xf32, #tpu.memory_space<vmem>>, vector<1x5x128xf32>
    %56 = vector.shape_cast %55 : vector<1x5x128xf32> to vector<5x128xf32>
    %c10_62 = arith.constant 10 : index
    %c0_63 = arith.constant 0 : index
    %57 = vector.load %arg7[%c10_62, %c0_63] : memref<64x128xf32, #tpu.memory_space<vmem>>, vector<5x128xf32>
    tpu.vector_store %arg7[%c10_62, %c0_63], %56 {strides = array<i32>} : memref<64x128xf32, #tpu.memory_space<vmem>>, vector<5x128xf32>,
    %c0_64 = arith.constant 0 : index
    %c5_65 = arith.constant 5 : index
    %c3_66 = arith.constant 3 : index
    %58 = vector.load %arg1[%c0_64, %c5_65, %c3_66] : memref<1x20x256xf32, #tpu.memory_space<vmem>>, vector<1x5x128xf32>
    %59 = vector.shape_cast %58 : vector<1x5x128xf32> to vector<5x128xf32>
    %c15_67 = arith.constant 15 : index
    %c0_68 = arith.constant 0 : index
    %60 = vector.load %arg7[%c15_67, %c0_68] : memref<64x128xf32, #tpu.memory_space<vmem>>, vector<5x128xf32>
    tpu.vector_store %arg7[%c15_67, %c0_68], %59 {strides = array<i32>} : memref<64x128xf32, #tpu.memory_space<vmem>>, vector<5x128xf32>,
    %c0_69 = arith.constant 0 : index
    %c5_70 = arith.constant 5 : index
    %c4_71 = arith.constant 4 : index
    %61 = vector.load %arg1[%c0_69, %c5_70, %c4_71] : memref<1x20x256xf32, #tpu.memory_space<vmem>>, vector<1x5x128xf32>
    %62 = vector.shape_cast %61 : vector<1x5x128xf32> to vector<5x128xf32>
    %c20_72 = arith.constant 20 : index
    %c0_73 = arith.constant 0 : index
    %63 = vector.load %arg7[%c20_72, %c0_73] : memref<64x128xf32, #tpu.memory_space<vmem>>, vector<5x128xf32>
    tpu.vector_store %arg7[%c20_72, %c0_73], %62 {strides = array<i32>} : memref<64x128xf32, #tpu.memory_space<vmem>>, vector<5x128xf32>,
    %c0_74 = arith.constant 0 : index
    %c5_75 = arith.constant 5 : index
    %c5_76 = arith.constant 5 : index
    %64 = vector.load %arg1[%c0_74, %c5_75, %c5_76] : memref<1x20x256xf32, #tpu.memory_space<vmem>>, vector<1x5x128xf32>
    %65 = vector.shape_cast %64 : vector<1x5x128xf32> to vector<5x128xf32>
    %c25_77 = arith.constant 25 : index
    %c0_78 = arith.constant 0 : index
    %66 = vector.load %arg7[%c25_77, %c0_78] : memref<64x128xf32, #tpu.memory_space<vmem>>, vector<5x128xf32>
    tpu.vector_store %arg7[%c25_77, %c0_78], %65 {strides = array<i32>} : memref<64x128xf32, #tpu.memory_space<vmem>>, vector<5x128xf32>,
    %c0_79 = arith.constant 0 : index
    %c5_80 = arith.constant 5 : index
    %c6_81 = arith.constant 6 : index
    %67 = vector.load %arg1[%c0_79, %c5_80, %c6_81] : memref<1x20x256xf32, #tpu.memory_space<vmem>>, vector<1x5x128xf32>
    %68 = vector.shape_cast %67 : vector<1x5x128xf32> to vector<5x128xf32>
    %c30_82 = arith.constant 30 : index
    %c0_83 = arith.constant 0 : index
    %69 = vector.load %arg7[%c30_82, %c0_83] : memref<64x128xf32, #tpu.memory_space<vmem>>, vector<5x128xf32>
    tpu.vector_store %arg7[%c30_82, %c0_83], %68 {strides = array<i32>} : memref<64x128xf32, #tpu.memory_space<vmem>>, vector<5x128xf32>,
    %c0_84 = arith.constant 0 : index
    %c5_85 = arith.constant 5 : index
    %c7_86 = arith.constant 7 : index
    %70 = vector.load %arg1[%c0_84, %c5_85, %c7_86] : memref<1x20x256xf32, #tpu.memory_space<vmem>>, vector<1x5x128xf32>
    %71 = vector.shape_cast %70 : vector<1x5x128xf32> to vector<5x128xf32>
    %c35_87 = arith.constant 35 : index
    %c0_88 = arith.constant 0 : index
    %72 = vector.load %arg7[%c35_87, %c0_88] : memref<64x128xf32, #tpu.memory_space<vmem>>, vector<5x128xf32>
    tpu.vector_store %arg7[%c35_87, %c0_88], %71 {strides = array<i32>} : memref<64x128xf32, #tpu.memory_space<vmem>>, vector<5x128xf32>,
    %c0_89 = arith.constant 0 : index
    %c5_90 = arith.constant 5 : index
    %c8_91 = arith.constant 8 : index
    %73 = vector.load %arg1[%c0_89, %c5_90, %c8_91] : memref<1x20x256xf32, #tpu.memory_space<vmem>>, vector<1x5x128xf32>
    %74 = vector.shape_cast %73 : vector<1x5x128xf32> to vector<5x128xf32>
    %c40_92 = arith.constant 40 : index
    %c0_93 = arith.constant 0 : index
    %75 = vector.load %arg7[%c40_92, %c0_93] : memref<64x128xf32, #tpu.memory_space<vmem>>, vector<5x128xf32>
    tpu.vector_store %arg7[%c40_92, %c0_93], %74 {strides = array<i32>} : memref<64x128xf32, #tpu.memory_space<vmem>>, vector<5x128xf32>,
    %c0_94 = arith.constant 0 : index
    %c5_95 = arith.constant 5 : index
    %c9_96 = arith.constant 9 : index
    %76 = vector.load %arg1[%c0_94, %c5_95, %c9_96] : memref<1x20x256xf32, #tpu.memory_space<vmem>>, vector<1x5x128xf32>
    %77 = vector.shape_cast %76 : vector<1x5x128xf32> to vector<5x128xf32>
    %c45_97 = arith.constant 45 : index
    %c0_98 = arith.constant 0 : index
    %78 = vector.load %arg7[%c45_97, %c0_98] : memref<64x128xf32, #tpu.memory_space<vmem>>, vector<5x128xf32>
    tpu.vector_store %arg7[%c45_97, %c0_98], %77 {strides = array<i32>} : memref<64x128xf32, #tpu.memory_space<vmem>>, vector<5x128xf32>,
    %c0_99 = arith.constant 0 : index
    %c5_100 = arith.constant 5 : index
    %c10_101 = arith.constant 10 : index
    %79 = vector.load %arg1[%c0_99, %c5_100, %c10_101] : memref<1x20x256xf32, #tpu.memory_space<vmem>>, vector<1x5x128xf32>
    %80 = vector.shape_cast %79 : vector<1x5x128xf32> to vector<5x128xf32>
    %c50_102 = arith.constant 50 : index
    %c0_103 = arith.constant 0 : index
    %81 = vector.load %arg7[%c50_102, %c0_103] : memref<64x128xf32, #tpu.memory_space<vmem>>, vector<5x128xf32>
    tpu.vector_store %arg7[%c50_102, %c0_103], %80 {strides = array<i32>} : memref<64x128xf32, #tpu.memory_space<vmem>>, vector<5x128xf32>,
    %c0_104 = arith.constant 0 : index
    %c0_105 = arith.constant 0 : index
    %82 = vector.load %arg2[%c0_104, %c0_105] : memref<160x64xbf16, #tpu.memory_space<vmem>>, vector<160x64xbf16>
    %c0_106 = arith.constant 0 : index
    %c0_107 = arith.constant 0 : index
    %83 = vector.load %arg7[%c0_106, %c0_107] : memref<64x128xf32, #tpu.memory_space<vmem>>, vector<64x128xf32>
    %84 = arith.truncf %83 : vector<64x128xf32> to vector<64x128xbf16>
    %cst_108 = arith.constant dense<0.000000e+00> : vector<160x128xf32>
    %85 = tpu.matmul %82, %84, %cst_108 {dimension_numbers = #tpu.dot_dimension_numbers<[1], [0], [0], [1], [0, 0, 1, 1], [], []>} : vector<160x64xbf16>, vector<64x128xbf16>, vector<160x128xf32> -> vector<160x128xf32>
    %c0_109 = arith.constant 0 : index
    %c0_110 = arith.constant 0 : index
    %86 = vector.load %arg3[%c0_109, %c0_110] : memref<160x1xf32, #tpu.memory_space<vmem>>, vector<160x1xf32>
    %87 = vector.broadcast %86 : vector<160x1xf32> to vector<160x128xf32>
    %88 = arith.addf %85, %87 : vector<160x128xf32>
    %cst_111 = arith.constant 0.000000e+00 : f32
    %89 = vector.broadcast %cst_111 : f32 to vector<160x128xf32>
    %90 = arith.cmpf ogt, %88, %89 : vector<160x128xf32>
    %cst_112 = arith.constant 2.000000e-01 : f32
    %91 = vector.broadcast %cst_112 : f32 to vector<160x128xf32>
    %92 = arith.mulf %91, %88 : vector<160x128xf32>
    %93 = arith.select %90, %88, %92 : vector<160x128xi1>, vector<160x128xf32>
    %94 = arith.truncf %93 : vector<160x128xf32> to vector<160x128xbf16>
    %c160 = arith.constant 160 : index
    %c0_113 = arith.constant 0 : index
    %95 = vector.load %arg8[%c160, %c0_113] : memref<640x128xbf16, #tpu.memory_space<vmem>>, vector<160x128xbf16>
    tpu.vector_store %arg8[%c160, %c0_113], %94 {strides = array<i32>} : memref<640x128xbf16, #tpu.memory_space<vmem>>, vector<160x128xbf16>,
    %c0_114 = arith.constant 0 : index
    %c10_115 = arith.constant 10 : index
    %c0_116 = arith.constant 0 : index
    %96 = vector.load %arg1[%c0_114, %c10_115, %c0_116] : memref<1x20x256xf32, #tpu.memory_space<vmem>>, vector<1x5x128xf32>
    %97 = vector.shape_cast %96 : vector<1x5x128xf32> to vector<5x128xf32>
    %c0_117 = arith.constant 0 : index
    %c0_118 = arith.constant 0 : index
    %98 = vector.load %arg7[%c0_117, %c0_118] : memref<64x128xf32, #tpu.memory_space<vmem>>, vector<5x128xf32>
    tpu.vector_store %arg7[%c0_117, %c0_118], %97 {strides = array<i32>} : memref<64x128xf32, #tpu.memory_space<vmem>>, vector<5x128xf32>,
    %c0_119 = arith.constant 0 : index
    %c10_120 = arith.constant 10 : index
    %c1_121 = arith.constant 1 : index
    %99 = vector.load %arg1[%c0_119, %c10_120, %c1_121] : memref<1x20x256xf32, #tpu.memory_space<vmem>>, vector<1x5x128xf32>
    %100 = vector.shape_cast %99 : vector<1x5x128xf32> to vector<5x128xf32>
    %c5_122 = arith.constant 5 : index
    %c0_123 = arith.constant 0 : index
    %101 = vector.load %arg7[%c5_122, %c0_123] : memref<64x128xf32, #tpu.memory_space<vmem>>, vector<5x128xf32>
    tpu.vector_store %arg7[%c5_122, %c0_123], %100 {strides = array<i32>} : memref<64x128xf32, #tpu.memory_space<vmem>>, vector<5x128xf32>,
    %c0_124 = arith.constant 0 : index
    %c10_125 = arith.constant 10 : index
    %c2_126 = arith.constant 2 : index
    %102 = vector.load %arg1[%c0_124, %c10_125, %c2_126] : memref<1x20x256xf32, #tpu.memory_space<vmem>>, vector<1x5x128xf32>
    %103 = vector.shape_cast %102 : vector<1x5x128xf32> to vector<5x128xf32>
    %c10_127 = arith.constant 10 : index
    %c0_128 = arith.constant 0 : index
    %104 = vector.load %arg7[%c10_127, %c0_128] : memref<64x128xf32, #tpu.memory_space<vmem>>, vector<5x128xf32>
    tpu.vector_store %arg7[%c10_127, %c0_128], %103 {strides = array<i32>} : memref<64x128xf32, #tpu.memory_space<vmem>>, vector<5x128xf32>,
    %c0_129 = arith.constant 0 : index
    %c10_130 = arith.constant 10 : index
    %c3_131 = arith.constant 3 : index
    %105 = vector.load %arg1[%c0_129, %c10_130, %c3_131] : memref<1x20x256xf32, #tpu.memory_space<vmem>>, vector<1x5x128xf32>
    %106 = vector.shape_cast %105 : vector<1x5x128xf32> to vector<5x128xf32>
    %c15_132 = arith.constant 15 : index
    %c0_133 = arith.constant 0 : index
    %107 = vector.load %arg7[%c15_132, %c0_133] : memref<64x128xf32, #tpu.memory_space<vmem>>, vector<5x128xf32>
    tpu.vector_store %arg7[%c15_132, %c0_133], %106 {strides = array<i32>} : memref<64x128xf32, #tpu.memory_space<vmem>>, vector<5x128xf32>,
    %c0_134 = arith.constant 0 : index
    %c10_135 = arith.constant 10 : index
    %c4_136 = arith.constant 4 : index
    %108 = vector.load %arg1[%c0_134, %c10_135, %c4_136] : memref<1x20x256xf32, #tpu.memory_space<vmem>>, vector<1x5x128xf32>
    %109 = vector.shape_cast %108 : vector<1x5x128xf32> to vector<5x128xf32>
    %c20_137 = arith.constant 20 : index
    %c0_138 = arith.constant 0 : index
    %110 = vector.load %arg7[%c20_137, %c0_138] : memref<64x128xf32, #tpu.memory_space<vmem>>, vector<5x128xf32>
    tpu.vector_store %arg7[%c20_137, %c0_138], %109 {strides = array<i32>} : memref<64x128xf32, #tpu.memory_space<vmem>>, vector<5x128xf32>,
    %c0_139 = arith.constant 0 : index
    %c10_140 = arith.constant 10 : index
    %c5_141 = arith.constant 5 : index
    %111 = vector.load %arg1[%c0_139, %c10_140, %c5_141] : memref<1x20x256xf32, #tpu.memory_space<vmem>>, vector<1x5x128xf32>
    %112 = vector.shape_cast %111 : vector<1x5x128xf32> to vector<5x128xf32>
    %c25_142 = arith.constant 25 : index
    %c0_143 = arith.constant 0 : index
    %113 = vector.load %arg7[%c25_142, %c0_143] : memref<64x128xf32, #tpu.memory_space<vmem>>, vector<5x128xf32>
    tpu.vector_store %arg7[%c25_142, %c0_143], %112 {strides = array<i32>} : memref<64x128xf32, #tpu.memory_space<vmem>>, vector<5x128xf32>,
    %c0_144 = arith.constant 0 : index
    %c10_145 = arith.constant 10 : index
    %c6_146 = arith.constant 6 : index
    %114 = vector.load %arg1[%c0_144, %c10_145, %c6_146] : memref<1x20x256xf32, #tpu.memory_space<vmem>>, vector<1x5x128xf32>
    %115 = vector.shape_cast %114 : vector<1x5x128xf32> to vector<5x128xf32>
    %c30_147 = arith.constant 30 : index
    %c0_148 = arith.constant 0 : index
    %116 = vector.load %arg7[%c30_147, %c0_148] : memref<64x128xf32, #tpu.memory_space<vmem>>, vector<5x128xf32>
    tpu.vector_store %arg7[%c30_147, %c0_148], %115 {strides = array<i32>} : memref<64x128xf32, #tpu.memory_space<vmem>>, vector<5x128xf32>,
    %c0_149 = arith.constant 0 : index
    %c10_150 = arith.constant 10 : index
    %c7_151 = arith.constant 7 : index
    %117 = vector.load %arg1[%c0_149, %c10_150, %c7_151] : memref<1x20x256xf32, #tpu.memory_space<vmem>>, vector<1x5x128xf32>
    %118 = vector.shape_cast %117 : vector<1x5x128xf32> to vector<5x128xf32>
    %c35_152 = arith.constant 35 : index
    %c0_153 = arith.constant 0 : index
    %119 = vector.load %arg7[%c35_152, %c0_153] : memref<64x128xf32, #tpu.memory_space<vmem>>, vector<5x128xf32>
    tpu.vector_store %arg7[%c35_152, %c0_153], %118 {strides = array<i32>} : memref<64x128xf32, #tpu.memory_space<vmem>>, vector<5x128xf32>,
    %c0_154 = arith.constant 0 : index
    %c10_155 = arith.constant 10 : index
    %c8_156 = arith.constant 8 : index
    %120 = vector.load %arg1[%c0_154, %c10_155, %c8_156] : memref<1x20x256xf32, #tpu.memory_space<vmem>>, vector<1x5x128xf32>
    %121 = vector.shape_cast %120 : vector<1x5x128xf32> to vector<5x128xf32>
    %c40_157 = arith.constant 40 : index
    %c0_158 = arith.constant 0 : index
    %122 = vector.load %arg7[%c40_157, %c0_158] : memref<64x128xf32, #tpu.memory_space<vmem>>, vector<5x128xf32>
    tpu.vector_store %arg7[%c40_157, %c0_158], %121 {strides = array<i32>} : memref<64x128xf32, #tpu.memory_space<vmem>>, vector<5x128xf32>,
    %c0_159 = arith.constant 0 : index
    %c10_160 = arith.constant 10 : index
    %c9_161 = arith.constant 9 : index
    %123 = vector.load %arg1[%c0_159, %c10_160, %c9_161] : memref<1x20x256xf32, #tpu.memory_space<vmem>>, vector<1x5x128xf32>
    %124 = vector.shape_cast %123 : vector<1x5x128xf32> to vector<5x128xf32>
    %c45_162 = arith.constant 45 : index
    %c0_163 = arith.constant 0 : index
    %125 = vector.load %arg7[%c45_162, %c0_163] : memref<64x128xf32, #tpu.memory_space<vmem>>, vector<5x128xf32>
    tpu.vector_store %arg7[%c45_162, %c0_163], %124 {strides = array<i32>} : memref<64x128xf32, #tpu.memory_space<vmem>>, vector<5x128xf32>,
    %c0_164 = arith.constant 0 : index
    %c10_165 = arith.constant 10 : index
    %c10_166 = arith.constant 10 : index
    %126 = vector.load %arg1[%c0_164, %c10_165, %c10_166] : memref<1x20x256xf32, #tpu.memory_space<vmem>>, vector<1x5x128xf32>
    %127 = vector.shape_cast %126 : vector<1x5x128xf32> to vector<5x128xf32>
    %c50_167 = arith.constant 50 : index
    %c0_168 = arith.constant 0 : index
    %128 = vector.load %arg7[%c50_167, %c0_168] : memref<64x128xf32, #tpu.memory_space<vmem>>, vector<5x128xf32>
    tpu.vector_store %arg7[%c50_167, %c0_168], %127 {strides = array<i32>} : memref<64x128xf32, #tpu.memory_space<vmem>>, vector<5x128xf32>,
    %c0_169 = arith.constant 0 : index
    %c0_170 = arith.constant 0 : index
    %129 = vector.load %arg2[%c0_169, %c0_170] : memref<160x64xbf16, #tpu.memory_space<vmem>>, vector<160x64xbf16>
    %c0_171 = arith.constant 0 : index
    %c0_172 = arith.constant 0 : index
    %130 = vector.load %arg7[%c0_171, %c0_172] : memref<64x128xf32, #tpu.memory_space<vmem>>, vector<64x128xf32>
    %131 = arith.truncf %130 : vector<64x128xf32> to vector<64x128xbf16>
    %cst_173 = arith.constant dense<0.000000e+00> : vector<160x128xf32>
    %132 = tpu.matmul %129, %131, %cst_173 {dimension_numbers = #tpu.dot_dimension_numbers<[1], [0], [0], [1], [0, 0, 1, 1], [], []>} : vector<160x64xbf16>, vector<64x128xbf16>, vector<160x128xf32> -> vector<160x128xf32>
    %c0_174 = arith.constant 0 : index
    %c0_175 = arith.constant 0 : index
    %133 = vector.load %arg3[%c0_174, %c0_175] : memref<160x1xf32, #tpu.memory_space<vmem>>, vector<160x1xf32>
    %134 = vector.broadcast %133 : vector<160x1xf32> to vector<160x128xf32>
    %135 = arith.addf %132, %134 : vector<160x128xf32>
    %cst_176 = arith.constant 0.000000e+00 : f32
    %136 = vector.broadcast %cst_176 : f32 to vector<160x128xf32>
    %137 = arith.cmpf ogt, %135, %136 : vector<160x128xf32>
    %cst_177 = arith.constant 2.000000e-01 : f32
    %138 = vector.broadcast %cst_177 : f32 to vector<160x128xf32>
    %139 = arith.mulf %138, %135 : vector<160x128xf32>
    %140 = arith.select %137, %135, %139 : vector<160x128xi1>, vector<160x128xf32>
    %141 = arith.truncf %140 : vector<160x128xf32> to vector<160x128xbf16>
    %c320 = arith.constant 320 : index
    %c0_178 = arith.constant 0 : index
    %142 = vector.load %arg8[%c320, %c0_178] : memref<640x128xbf16, #tpu.memory_space<vmem>>, vector<160x128xbf16>
    tpu.vector_store %arg8[%c320, %c0_178], %141 {strides = array<i32>} : memref<640x128xbf16, #tpu.memory_space<vmem>>, vector<160x128xbf16>,
    %c0_179 = arith.constant 0 : index
    %c15_180 = arith.constant 15 : index
    %c0_181 = arith.constant 0 : index
    %143 = vector.load %arg1[%c0_179, %c15_180, %c0_181] : memref<1x20x256xf32, #tpu.memory_space<vmem>>, vector<1x5x128xf32>
    %144 = vector.shape_cast %143 : vector<1x5x128xf32> to vector<5x128xf32>
    %c0_182 = arith.constant 0 : index
    %c0_183 = arith.constant 0 : index
    %145 = vector.load %arg7[%c0_182, %c0_183] : memref<64x128xf32, #tpu.memory_space<vmem>>, vector<5x128xf32>
    tpu.vector_store %arg7[%c0_182, %c0_183], %144 {strides = array<i32>} : memref<64x128xf32, #tpu.memory_space<vmem>>, vector<5x128xf32>,
    %c0_184 = arith.constant 0 : index
    %c15_185 = arith.constant 15 : index
    %c1_186 = arith.constant 1 : index
    %146 = vector.load %arg1[%c0_184, %c15_185, %c1_186] : memref<1x20x256xf32, #tpu.memory_space<vmem>>, vector<1x5x128xf32>
    %147 = vector.shape_cast %146 : vector<1x5x128xf32> to vector<5x128xf32>
    %c5_187 = arith.constant 5 : index
    %c0_188 = arith.constant 0 : index
    %148 = vector.load %arg7[%c5_187, %c0_188] : memref<64x128xf32, #tpu.memory_space<vmem>>, vector<5x128xf32>
    tpu.vector_store %arg7[%c5_187, %c0_188], %147 {strides = array<i32>} : memref<64x128xf32, #tpu.memory_space<vmem>>, vector<5x128xf32>,
    %c0_189 = arith.constant 0 : index
    %c15_190 = arith.constant 15 : index
    %c2_191 = arith.constant 2 : index
    %149 = vector.load %arg1[%c0_189, %c15_190, %c2_191] : memref<1x20x256xf32, #tpu.memory_space<vmem>>, vector<1x5x128xf32>
    %150 = vector.shape_cast %149 : vector<1x5x128xf32> to vector<5x128xf32>
    %c10_192 = arith.constant 10 : index
    %c0_193 = arith.constant 0 : index
    %151 = vector.load %arg7[%c10_192, %c0_193] : memref<64x128xf32, #tpu.memory_space<vmem>>, vector<5x128xf32>
    tpu.vector_store %arg7[%c10_192, %c0_193], %150 {strides = array<i32>} : memref<64x128xf32, #tpu.memory_space<vmem>>, vector<5x128xf32>,
    %c0_194 = arith.constant 0 : index
    %c15_195 = arith.constant 15 : index
    %c3_196 = arith.constant 3 : index
    %152 = vector.load %arg1[%c0_194, %c15_195, %c3_196] : memref<1x20x256xf32, #tpu.memory_space<vmem>>, vector<1x5x128xf32>
    %153 = vector.shape_cast %152 : vector<1x5x128xf32> to vector<5x128xf32>
    %c15_197 = arith.constant 15 : index
    %c0_198 = arith.constant 0 : index
    %154 = vector.load %arg7[%c15_197, %c0_198] : memref<64x128xf32, #tpu.memory_space<vmem>>, vector<5x128xf32>
    tpu.vector_store %arg7[%c15_197, %c0_198], %153 {strides = array<i32>} : memref<64x128xf32, #tpu.memory_space<vmem>>, vector<5x128xf32>,
    %c0_199 = arith.constant 0 : index
    %c15_200 = arith.constant 15 : index
    %c4_201 = arith.constant 4 : index
    %155 = vector.load %arg1[%c0_199, %c15_200, %c4_201] : memref<1x20x256xf32, #tpu.memory_space<vmem>>, vector<1x5x128xf32>
    %156 = vector.shape_cast %155 : vector<1x5x128xf32> to vector<5x128xf32>
    %c20_202 = arith.constant 20 : index
    %c0_203 = arith.constant 0 : index
    %157 = vector.load %arg7[%c20_202, %c0_203] : memref<64x128xf32, #tpu.memory_space<vmem>>, vector<5x128xf32>
    tpu.vector_store %arg7[%c20_202, %c0_203], %156 {strides = array<i32>} : memref<64x128xf32, #tpu.memory_space<vmem>>, vector<5x128xf32>,
    %c0_204 = arith.constant 0 : index
    %c15_205 = arith.constant 15 : index
    %c5_206 = arith.constant 5 : index
    %158 = vector.load %arg1[%c0_204, %c15_205, %c5_206] : memref<1x20x256xf32, #tpu.memory_space<vmem>>, vector<1x5x128xf32>
    %159 = vector.shape_cast %158 : vector<1x5x128xf32> to vector<5x128xf32>
    %c25_207 = arith.constant 25 : index
    %c0_208 = arith.constant 0 : index
    %160 = vector.load %arg7[%c25_207, %c0_208] : memref<64x128xf32, #tpu.memory_space<vmem>>, vector<5x128xf32>
    tpu.vector_store %arg7[%c25_207, %c0_208], %159 {strides = array<i32>} : memref<64x128xf32, #tpu.memory_space<vmem>>, vector<5x128xf32>,
    %c0_209 = arith.constant 0 : index
    %c15_210 = arith.constant 15 : index
    %c6_211 = arith.constant 6 : index
    %161 = vector.load %arg1[%c0_209, %c15_210, %c6_211] : memref<1x20x256xf32, #tpu.memory_space<vmem>>, vector<1x5x128xf32>
    %162 = vector.shape_cast %161 : vector<1x5x128xf32> to vector<5x128xf32>
    %c30_212 = arith.constant 30 : index
    %c0_213 = arith.constant 0 : index
    %163 = vector.load %arg7[%c30_212, %c0_213] : memref<64x128xf32, #tpu.memory_space<vmem>>, vector<5x128xf32>
    tpu.vector_store %arg7[%c30_212, %c0_213], %162 {strides = array<i32>} : memref<64x128xf32, #tpu.memory_space<vmem>>, vector<5x128xf32>,
    %c0_214 = arith.constant 0 : index
    %c15_215 = arith.constant 15 : index
    %c7_216 = arith.constant 7 : index
    %164 = vector.load %arg1[%c0_214, %c15_215, %c7_216] : memref<1x20x256xf32, #tpu.memory_space<vmem>>, vector<1x5x128xf32>
    %165 = vector.shape_cast %164 : vector<1x5x128xf32> to vector<5x128xf32>
    %c35_217 = arith.constant 35 : index
    %c0_218 = arith.constant 0 : index
    %166 = vector.load %arg7[%c35_217, %c0_218] : memref<64x128xf32, #tpu.memory_space<vmem>>, vector<5x128xf32>
    tpu.vector_store %arg7[%c35_217, %c0_218], %165 {strides = array<i32>} : memref<64x128xf32, #tpu.memory_space<vmem>>, vector<5x128xf32>,
    %c0_219 = arith.constant 0 : index
    %c15_220 = arith.constant 15 : index
    %c8_221 = arith.constant 8 : index
    %167 = vector.load %arg1[%c0_219, %c15_220, %c8_221] : memref<1x20x256xf32, #tpu.memory_space<vmem>>, vector<1x5x128xf32>
    %168 = vector.shape_cast %167 : vector<1x5x128xf32> to vector<5x128xf32>
    %c40_222 = arith.constant 40 : index
    %c0_223 = arith.constant 0 : index
    %169 = vector.load %arg7[%c40_222, %c0_223] : memref<64x128xf32, #tpu.memory_space<vmem>>, vector<5x128xf32>
    tpu.vector_store %arg7[%c40_222, %c0_223], %168 {strides = array<i32>} : memref<64x128xf32, #tpu.memory_space<vmem>>, vector<5x128xf32>,
    %c0_224 = arith.constant 0 : index
    %c15_225 = arith.constant 15 : index
    %c9_226 = arith.constant 9 : index
    %170 = vector.load %arg1[%c0_224, %c15_225, %c9_226] : memref<1x20x256xf32, #tpu.memory_space<vmem>>, vector<1x5x128xf32>
    %171 = vector.shape_cast %170 : vector<1x5x128xf32> to vector<5x128xf32>
    %c45_227 = arith.constant 45 : index
    %c0_228 = arith.constant 0 : index
    %172 = vector.load %arg7[%c45_227, %c0_228] : memref<64x128xf32, #tpu.memory_space<vmem>>, vector<5x128xf32>
    tpu.vector_store %arg7[%c45_227, %c0_228], %171 {strides = array<i32>} : memref<64x128xf32, #tpu.memory_space<vmem>>, vector<5x128xf32>,
    %c0_229 = arith.constant 0 : index
    %c15_230 = arith.constant 15 : index
    %c10_231 = arith.constant 10 : index
    %173 = vector.load %arg1[%c0_229, %c15_230, %c10_231] : memref<1x20x256xf32, #tpu.memory_space<vmem>>, vector<1x5x128xf32>
    %174 = vector.shape_cast %173 : vector<1x5x128xf32> to vector<5x128xf32>
    %c50_232 = arith.constant 50 : index
    %c0_233 = arith.constant 0 : index
    %175 = vector.load %arg7[%c50_232, %c0_233] : memref<64x128xf32, #tpu.memory_space<vmem>>, vector<5x128xf32>
    tpu.vector_store %arg7[%c50_232, %c0_233], %174 {strides = array<i32>} : memref<64x128xf32, #tpu.memory_space<vmem>>, vector<5x128xf32>,
    %c0_234 = arith.constant 0 : index
    %c0_235 = arith.constant 0 : index
    %176 = vector.load %arg2[%c0_234, %c0_235] : memref<160x64xbf16, #tpu.memory_space<vmem>>, vector<160x64xbf16>
    %c0_236 = arith.constant 0 : index
    %c0_237 = arith.constant 0 : index
    %177 = vector.load %arg7[%c0_236, %c0_237] : memref<64x128xf32, #tpu.memory_space<vmem>>, vector<64x128xf32>
    %178 = arith.truncf %177 : vector<64x128xf32> to vector<64x128xbf16>
    %cst_238 = arith.constant dense<0.000000e+00> : vector<160x128xf32>
    %179 = tpu.matmul %176, %178, %cst_238 {dimension_numbers = #tpu.dot_dimension_numbers<[1], [0], [0], [1], [0, 0, 1, 1], [], []>} : vector<160x64xbf16>, vector<64x128xbf16>, vector<160x128xf32> -> vector<160x128xf32>
    %c0_239 = arith.constant 0 : index
    %c0_240 = arith.constant 0 : index
    %180 = vector.load %arg3[%c0_239, %c0_240] : memref<160x1xf32, #tpu.memory_space<vmem>>, vector<160x1xf32>
    %181 = vector.broadcast %180 : vector<160x1xf32> to vector<160x128xf32>
    %182 = arith.addf %179, %181 : vector<160x128xf32>
    %cst_241 = arith.constant 0.000000e+00 : f32
    %183 = vector.broadcast %cst_241 : f32 to vector<160x128xf32>
    %184 = arith.cmpf ogt, %182, %183 : vector<160x128xf32>
    %cst_242 = arith.constant 2.000000e-01 : f32
    %185 = vector.broadcast %cst_242 : f32 to vector<160x128xf32>
    %186 = arith.mulf %185, %182 : vector<160x128xf32>
    %187 = arith.select %184, %182, %186 : vector<160x128xi1>, vector<160x128xf32>
    %188 = arith.truncf %187 : vector<160x128xf32> to vector<160x128xbf16>
    %c480 = arith.constant 480 : index
    %c0_243 = arith.constant 0 : index
    %189 = vector.load %arg8[%c480, %c0_243] : memref<640x128xbf16, #tpu.memory_space<vmem>>, vector<160x128xbf16>
    tpu.vector_store %arg8[%c480, %c0_243], %188 {strides = array<i32>} : memref<640x128xbf16, #tpu.memory_space<vmem>>, vector<160x128xbf16>,
    %c0_244 = arith.constant 0 : index
    %c0_245 = arith.constant 0 : index
    %190 = vector.load %arg4[%c0_244, %c0_245] : memref<32x640xbf16, #tpu.memory_space<vmem>>, vector<32x640xbf16>
    %c0_246 = arith.constant 0 : index
    %c0_247 = arith.constant 0 : index
    %191 = vector.load %arg8[%c0_246, %c0_247] : memref<640x128xbf16, #tpu.memory_space<vmem>>, vector<640x128xbf16>
    %cst_248 = arith.constant dense<0.000000e+00> : vector<32x128xf32>
    %192 = tpu.matmul %190, %191, %cst_248 {dimension_numbers = #tpu.dot_dimension_numbers<[1], [0], [0], [1], [0, 0, 1, 1], [], []>} : vector<32x640xbf16>, vector<640x128xbf16>, vector<32x128xf32> -> vector<32x128xf32>
    %c0_249 = arith.constant 0 : index
    %c0_250 = arith.constant 0 : index
    %193 = vector.load %arg5[%c0_249, %c0_250] : memref<32x1xf32, #tpu.memory_space<vmem>>, vector<32x1xf32>
    %194 = vector.broadcast %193 : vector<32x1xf32> to vector<32x128xf32>
    %195 = arith.addf %192, %194 : vector<32x128xf32>
    %c0_251 = arith.constant 0 : index
    %c0_252 = arith.constant 0 : index
    %c0_253 = arith.constant 0 : index
    %196 = vector.load %arg6[%c0_251, %c0_252, %c0_253] : memref<1x32x128xf32, #tpu.memory_space<vmem>>, vector<1x32x128xf32>
    %197 = vector.shape_cast %196 : vector<1x32x128xf32> to vector<32x128xf32>
    %198 = vector.shape_cast %195 : vector<32x128xf32> to vector<1x32x128xf32>
    tpu.vector_store %arg6[%c0_251, %c0_252, %c0_253], %198 {strides = array<i32>} : memref<1x32x128xf32, #tpu.memory_space<vmem>>, vector<1x32x128xf32>,
    return
  }
  func.func @transform_0(%arg0: i32) -> (i32, i32, i32) {
    %c0_i32 = arith.constant 0 : i32
    %c0_i32_0 = arith.constant 0 : i32
    %c0_i32_1 = arith.constant 0 : i32
    return %arg0, %c0_i32, %c0_i32_0 : i32, i32, i32
  }
  func.func @transform_1(%arg0: i32) -> (i32, i32) {
    %c0_i32 = arith.constant 0 : i32
    %c0_i32_0 = arith.constant 0 : i32
    %c0_i32_1 = arith.constant 0 : i32
    return %c0_i32, %c0_i32_0 : i32, i32
  }
  func.func @transform_2(%arg0: i32) -> (i32, i32) {
    %c0_i32 = arith.constant 0 : i32
    %c0_i32_0 = arith.constant 0 : i32
    %c0_i32_1 = arith.constant 0 : i32
    return %c0_i32, %c0_i32_0 : i32, i32
  }
  func.func @transform_3(%arg0: i32) -> (i32, i32) {
    %c0_i32 = arith.constant 0 : i32
    %c0_i32_0 = arith.constant 0 : i32
    %c0_i32_1 = arith.constant 0 : i32
    return %c0_i32, %c0_i32_0 : i32, i32
  }
  func.func @transform_4(%arg0: i32) -> (i32, i32) {
    %c0_i32 = arith.constant 0 : i32
    %c0_i32_0 = arith.constant 0 : i32
    %c0_i32_1 = arith.constant 0 : i32
    return %c0_i32, %c0_i32_0 : i32, i32
  }
  func.func @transform_5(%arg0: i32) -> (i32, i32, i32) {
    %c0_i32 = arith.constant 0 : i32
    %c0_i32_0 = arith.constant 0 : i32
    %c0_i32_1 = arith.constant 0 : i32
    return %arg0, %c0_i32, %c0_i32_0 : i32, i32, i32
  }
}

</mosaic_0001>

<llo_original>
// kernel: tpu_custom_call.1
$region0: #{tpu_custom_call.1}
  #allocation0 [shape = 'u32[]', space=smem, size = 0x4, offset = 0x4, fixed_abs, tag = 'smem constant byte address 0x4 - core index']
  #allocation1 [shape = 'u32[72,128]{1,0:T(1,128)}', space=vmem, size = 0x9000, scoped, tag = 'internal scratch']
  #allocation2 [shape = 'f32[64,128]{1,0:T(8,128)}', space=vmem, size = 0x8000, scoped, tag = 'scratch operand']
  #allocation3 [shape = 'bf16[640,128]{1,0:T(8,128)(2,1)}', space=vmem, size = 0x28000, scoped, tag = 'scratch operand']
  %s0 = inlined_call_operand.vmem [shape: f32[2,20,256], index: 0, kind: input, shape index: {}]
  %s1 = inlined_call_operand.vmem [shape: bf16[160,64], index: 1, kind: input, shape index: {}]
  %s2 = inlined_call_operand.vmem [shape: f32[160,1], index: 2, kind: input, shape index: {}]
  %s3 = inlined_call_operand.vmem [shape: bf16[32,640], index: 3, kind: input, shape index: {}]
  %s4 = inlined_call_operand.vmem [shape: f32[32,1], index: 4, kind: input, shape index: {}]
  %s5 = inlined_call_operand.hbm [shape: f32[2,32,128], index: 5, kind: output, shape index: {}]
  %s6 = sld [smem:[#allocation0]]
  $region53: #{tpu_custom_call.1} parent=0
    _
  %s8 = ssub.s32 1, %s6
  %s9 = scalar_select 0, %s8, %s6
  $region1: #{tpu_custom_call.1} parent=0
    #allocation4 [shape = 'u8[32768]{0}', space=vmem, size = 0x8000, scoped, tag = 'output window, operand 0']
    #allocation5 [shape = 's32[2]{0}', space=sflag, size = 0x8, scoped, tag = 'scoped memory for tpu_custom_call.1']
    %10 = vsyncpa [#allocation5], 0
    %s11 = scalar_lea.sflag [#allocation5], 1
    %12 = vsyncpa %s11, 0
    loop: start=0, step=1, limit=4
    $region2: #{tpu_custom_call.1} parent=1 // loop_pre_header
      _
    $region3: #{tpu_custom_call.1} parent=1 // loop_header
      %s14 = sphi 0, %s18
      %p15 = scmp.ge.s32.totalorder %s14, 4
      %s24 = sphi 0, %s26
      %s27 = sphi 0, %s24
      %s28 = sphi 0, %s27
      %s44 = sphi 0, %s28
      %s48 = sphi 0, %s48
      %s50 = sphi 0, %s48
      %s51 = sphi 0, %s50
      %s65 = sphi 0, %s51
      %s69 = sphi 0, %s69
      %s71 = sphi 0, %s69
      %s72 = sphi 0, %s71
      %s86 = sphi 0, %s72
      %s90 = sphi 0, %s90
      %s92 = sphi 0, %s90
      %s93 = sphi 0, %s92
      %s107 = sphi 0, %s93
      %s111 = sphi 0, %s111
      %s113 = sphi 0, %s111
      %s114 = sphi 0, %s113
      %s128 = sphi 0, %s114
      %s134 = sphi 0, %s136
      %s137 = sphi 0, %s134
      %s138 = sphi 0, %s137
      %s154 = sphi 0, %s138
    $region4: #{tpu_custom_call.1} parent=1 // loop_header_branch
      %17 = sbr.rel (%p15) target = $region8
    $region5: #{tpu_custom_call.1} parent=1 // loop_body
      %s19 = ssub.s32 %s14, 1
      %s20 = ssub.s32 %s14, 2
      %s21 = sadd.s32 %s14, 1
      %s22 = ssub.s32 %s14, %s21
      %p23 = scmp.eq.s32.totalorder %s22, 0
      %s25 = sadd.s32 %s24, 1
      %s26 = scalar_select %p23, %s24, %s25
      %p29 = pneg %p23
      %p30 = scmp.eq.s32.totalorder %s14, 1
      %p31 = por %p29, %p30
      %p32 = scmp.ne.s32.totalorder %s24, %s27
      %p33 = scmp.eq.s32.totalorder %s14, 0
      %p34 = por %p32, %p33
      %p35 = scmp.ne.s32.totalorder %s24, %s27
      %p36 = scmp.eq.s32.totalorder %s19, 1
      %p37 = por %p35, %p36
      %p38 = scmp.ne.s32.totalorder %s27, %s28
      %p39 = scmp.eq.s32.totalorder %s19, 0
      %p40 = por %p38, %p39
      %p41 = scmp.ne.s32.totalorder %s27, %s28
      %p42 = scmp.eq.s32.totalorder %s20, 1
      %p43 = por %p41, %p42
      %p45 = scmp.ne.s32.totalorder %s28, %s44
      %p46 = scmp.eq.s32.totalorder %s20, 0
      %p47 = por %p45, %p46
      %s49 = sadd.s32 %s48, 1
      %p52 = scmp.eq.s32.totalorder %s14, 1
      %p53 = scmp.ne.s32.totalorder %s48, %s50
      %p54 = scmp.eq.s32.totalorder %s14, 0
      %p55 = por %p53, %p54
      %p56 = scmp.ne.s32.totalorder %s48, %s50
      %p57 = scmp.eq.s32.totalorder %s19, 1
      %p58 = por %p56, %p57
      %p59 = scmp.ne.s32.totalorder %s50, %s51
      %p60 = scmp.eq.s32.totalorder %s19, 0
      %p61 = por %p59, %p60
      %p62 = scmp.ne.s32.totalorder %s50, %s51
      %p63 = scmp.eq.s32.totalorder %s20, 1
      %p64 = por %p62, %p63
      %p66 = scmp.ne.s32.totalorder %s51, %s65
      %p67 = scmp.eq.s32.totalorder %s20, 0
      %p68 = por %p66, %p67
      %s70 = sadd.s32 %s69, 1
      %p73 = scmp.eq.s32.totalorder %s14, 1
      %p74 = scmp.ne.s32.totalorder %s69, %s71
      %p75 = scmp.eq.s32.totalorder %s14, 0
      %p76 = por %p74, %p75
      %p77 = scmp.ne.s32.totalorder %s69, %s71
      %p78 = scmp.eq.s32.totalorder %s19, 1
      %p79 = por %p77, %p78
      %p80 = scmp.ne.s32.totalorder %s71, %s72
      %p81 = scmp.eq.s32.totalorder %s19, 0
      %p82 = por %p80, %p81
      %p83 = scmp.ne.s32.totalorder %s71, %s72
      %p84 = scmp.eq.s32.totalorder %s20, 1
      %p85 = por %p83, %p84
      %p87 = scmp.ne.s32.totalorder %s72, %s86
      %p88 = scmp.eq.s32.totalorder %s20, 0
      %p89 = por %p87, %p88
      %s91 = sadd.s32 %s90, 1
      %p94 = scmp.eq.s32.totalorder %s14, 1
      %p95 = scmp.ne.s32.totalorder %s90, %s92
      %p96 = scmp.eq.s32.totalorder %s14, 0
      %p97 = por %p95, %p96
      %p98 = scmp.ne.s32.totalorder %s90, %s92
      %p99 = scmp.eq.s32.totalorder %s19, 1
      %p100 = por %p98, %p99
      %p101 = scmp.ne.s32.totalorder %s92, %s93
      %p102 = scmp.eq.s32.totalorder %s19, 0
      %p103 = por %p101, %p102
      %p104 = scmp.ne.s32.totalorder %s92, %s93
      %p105 = scmp.eq.s32.totalorder %s20, 1
      %p106 = por %p104, %p105
      %p108 = scmp.ne.s32.totalorder %s93, %s107
      %p109 = scmp.eq.s32.totalorder %s20, 0
      %p110 = por %p108, %p109
      %s112 = sadd.s32 %s111, 1
      %p115 = scmp.eq.s32.totalorder %s14, 1
      %p116 = scmp.ne.s32.totalorder %s111, %s113
      %p117 = scmp.eq.s32.totalorder %s14, 0
      %p118 = por %p116, %p117
      %p119 = scmp.ne.s32.totalorder %s111, %s113
      %p120 = scmp.eq.s32.totalorder %s19, 1
      %p121 = por %p119, %p120
      %p122 = scmp.ne.s32.totalorder %s113, %s114
      %p123 = scmp.eq.s32.totalorder %s19, 0
      %p124 = por %p122, %p123
      %p125 = scmp.ne.s32.totalorder %s113, %s114
      %p126 = scmp.eq.s32.totalorder %s20, 1
      %p127 = por %p125, %p126
      %p129 = scmp.ne.s32.totalorder %s114, %s128
      %p130 = scmp.eq.s32.totalorder %s20, 0
      %p131 = por %p129, %p130
      %s132 = ssub.s32 %s14, %s21
      %p133 = scmp.eq.s32.totalorder %s132, 0
      %s135 = sadd.s32 %s134, 1
      %s136 = scalar_select %p133, %s134, %s135
      %p139 = pneg %p133
      %p140 = scmp.eq.s32.totalorder %s14, 1
      %p141 = por %p139, %p140
      %p142 = scmp.ne.s32.totalorder %s134, %s137
      %p143 = scmp.eq.s32.totalorder %s14, 0
      %p144 = por %p142, %p143
      %p145 = scmp.ne.s32.totalorder %s134, %s137
      %p146 = scmp.eq.s32.totalorder %s19, 1
      %p147 = por %p145, %p146
      %p148 = scmp.ne.s32.totalorder %s137, %s138
      %p149 = scmp.eq.s32.totalorder %s19, 0
      %p150 = por %p148, %p149
      %p151 = scmp.ne.s32.totalorder %s137, %s138
      %p152 = scmp.eq.s32.totalorder %s20, 1
      %p153 = por %p151, %p152
      %p155 = scmp.ne.s32.totalorder %s138, %s154
      %p156 = scmp.eq.s32.totalorder %s20, 0
      %p157 = por %p155, %p156
      %p158 = scmp.le.s32.totalorder 1, %s14
      %p159 = scmp.lt.s32.totalorder %s14, 3
      %p160 = pnand %p158, %p159
      %p161 = pneg %p160
      // Predicated region
      $region9: #{tpu_custom_call.1} parent=5 // pred_check
        _
      $region10: #{tpu_custom_call.1} parent=5 // pred_check_branch
        %163 = sbr.rel (%p160) target = $region12
      $region11: #{tpu_custom_call.1} parent=5 // pred_region
        %s164 = ssub.s32 %s14, 1
        // Predicated region
        $region13: #{tpu_custom_call.1} parent=11 // pred_check
          %p165 = pneg %p61
        $region14: #{tpu_custom_call.1} parent=11 // pred_check_branch
          %167 = sbr.rel (%p165) target = $region16
        $region15: #{tpu_custom_call.1} parent=11 // pred_region
          _
        $region16: #{tpu_custom_call.1} parent=11 // pred_fallthru
          _
        // Predicated region
        $region17: #{tpu_custom_call.1} parent=11 // pred_check
          %p168 = pneg %p82
        $region18: #{tpu_custom_call.1} parent=11 // pred_check_branch
          %170 = sbr.rel (%p168) target = $region20
        $region19: #{tpu_custom_call.1} parent=11 // pred_region
          _
        $region20: #{tpu_custom_call.1} parent=11 // pred_fallthru
          _
        // Predicated region
        $region21: #{tpu_custom_call.1} parent=11 // pred_check
          %p171 = pneg %p103
        $region22: #{tpu_custom_call.1} parent=11 // pred_check_branch
          %173 = sbr.rel (%p171) target = $region24
        $region23: #{tpu_custom_call.1} parent=11 // pred_region
          _
        $region24: #{tpu_custom_call.1} parent=11 // pred_fallthru
          _
        // Predicated region
        $region25: #{tpu_custom_call.1} parent=11 // pred_check
          %p174 = pneg %p124
        $region26: #{tpu_custom_call.1} parent=11 // pred_check_branch
          %176 = sbr.rel (%p174) target = $region28
        $region27: #{tpu_custom_call.1} parent=11 // pred_region
          _
        $region28: #{tpu_custom_call.1} parent=11 // pred_fallthru
          _
      $region12: #{tpu_custom_call.1} parent=5 // pred_fallthru
        _
      %p177 = scmp.lt.s32.totalorder %s14, 2
      // Predicated region
      $region29: #{tpu_custom_call.1} parent=5 // pred_check
        %p178 = pneg %p177
      $region30: #{tpu_custom_call.1} parent=5 // pred_check_branch
        %180 = sbr.rel (%p178) target = $region32
      $region31: #{tpu_custom_call.1} parent=5 // pred_region
        // Predicated region
        $region33: #{tpu_custom_call.1} parent=31 // pred_check
          %p181 = pneg %p34
        $region34: #{tpu_custom_call.1} parent=31 // pred_check_branch
          %183 = sbr.rel (%p181) target = $region36
        $region35: #{tpu_custom_call.1} parent=31 // pred_region
          %p184 = scmp.lt.s32.totalorder %s14, 1
          %s185 = scalar_select %p184, %s14, 1
          %s186 = smul.addr %s185, 6
          %s187 = smul.addr %s186, 8
          %s188 = scalar_lea.vmem %s0, %s187
        $region36: #{tpu_custom_call.1} parent=31 // pred_fallthru
          _
      $region32: #{tpu_custom_call.1} parent=5 // pred_fallthru
        _
      %p189 = scmp.le.s32.totalorder 1, %s14
      %p190 = scmp.lt.s32.totalorder %s14, 3
      %p191 = pnand %p189, %p190
      %p192 = pneg %p191
      // Predicated region
      $region37: #{tpu_custom_call.1} parent=5 // pred_check
        _
      $region38: #{tpu_custom_call.1} parent=5 // pred_check_branch
        %194 = sbr.rel (%p191) target = $region40
      $region39: #{tpu_custom_call.1} parent=5 // pred_region
        %s195 = ssub.s32 %s14, 1
        %p196 = scmp.lt.s32.totalorder %s19, 1
        %s197 = scalar_select %p196, %s19, 1
        %s198 = smul.addr %s197, 6
        %s199 = smul.addr %s198, 8
        %s200 = scalar_lea.vmem %s0, %s199
        %p201 = pneg %p40
        %p202 = pneg %p37
        %p203 = pneg %p61
        %p204 = pneg %p58
        %p205 = pneg %p82
        %p206 = pneg %p79
        %p207 = pneg %p103
        %p208 = pneg %p100
        %p209 = pneg %p124
        %p210 = pneg %p121
        %p211 = pneg %p150
        %p212 = pneg %p147
        %s213 = sand.u32 %s137, 1
        %s214 = scalar_lea.sflag [#allocation5], %s213
        %s215 = sand.u32 %s137, 1
        %s216 = smul.addr %s215, 32
        %s217 = scalar_lea.vmem [#allocation4], %s216
        %p218 = scmp.lt.s32.totalorder %s19, 1
        %s219 = scalar_select %p218, %s19, 1
        %s220 = smul.addr %s219, 6
        %s221 = smul.addr %s220, 8
        %s222 = scalar_lea.vmem %s0, %s221
        %224 = vst [vmem:[#allocation2] sm:$0xff] 0.0
        %225 = vst [vmem:[#allocation2 + $0x8] sm:$0xff] 0.0
        %226 = vst [vmem:[#allocation2 + $0x10] sm:$0xff] 0.0
        %227 = vst [vmem:[#allocation2 + $0x18] sm:$0xff] 0.0
        %228 = vst [vmem:[#allocation2 + $0x20] sm:$0xff] 0.0
        %229 = vst [vmem:[#allocation2 + $0x28] sm:$0xff] 0.0
        %230 = vst [vmem:[#allocation2 + $0x30] sm:$0xff] 0.0
        %231 = vst [vmem:[#allocation2 + $0x38] sm:$0xff] 0.0
        %v232 = vld [vmem:[%s222] sm:$0x1f]
        %233 = vst [vmem:[#allocation2] sm:$0x1f] %v232
        %v234 = vld [vmem:[%s222] sm:$0x1f]
        %v235 = vld [vmem:[%s222 + $0x8] sm:$0x1f]
        %238 = vrot.lane.b32.xlu0 %v234, 127
        %v239 = vpop.permute.xlu0 %238
        %240 = vrot.lane.b32.xlu0 %v235, 127
        %v241 = vpop.permute.xlu0 %240
        %vm242 = vcmask 1039360
        %v243 = vsel %vm242, %v239, %v241
        %245 = vst [vmem:[#allocation2 + $0x5] sm:$0x1f] %v243
        %v246 = vld [vmem:[%s222] sm:$0x1f]
        %v247 = vld [vmem:[%s222 + $0x8] sm:$0x1f]
        %250 = vrot.lane.b32.xlu0 %v246, 126
        %v251 = vpop.permute.xlu0 %250
        %252 = vrot.lane.b32.xlu0 %v247, 126
        %v253 = vpop.permute.xlu0 %252
        %vm254 = vcmask 1031168
        %v255 = vsel %vm254, %v251, %v253
        %257 = vst [vmem:[#allocation2 + $0xa] sm:$0x1f] %v255
        %v258 = vld [vmem:[%s222] sm:$0x1f]
        %v259 = vld [vmem:[%s222 + $0x8] sm:$0x1f]
        %262 = vrot.lane.b32.xlu0 %v258, 125
        %v263 = vpop.permute.xlu0 %262
        %264 = vrot.lane.b32.xlu0 %v259, 125
        %v265 = vpop.permute.xlu0 %264
        %vm266 = vcmask 1022976
        %v267 = vsel %vm266, %v263, %v265
        %269 = vst [vmem:[#allocation2 + $0xf] sm:$0x1f] %v267
        %v270 = vld [vmem:[%s222] sm:$0x1f]
        %v271 = vld [vmem:[%s222 + $0x8] sm:$0x1f]
        %274 = vrot.lane.b32.xlu0 %v270, 124
        %v275 = vpop.permute.xlu0 %274
        %276 = vrot.lane.b32.xlu0 %v271, 124
        %v277 = vpop.permute.xlu0 %276
        %vm278 = vcmask 1014784
        %v279 = vsel %vm278, %v275, %v277
        %281 = vst [vmem:[#allocation2 + $0x14] sm:$0x1f] %v279
        %v282 = vld [vmem:[%s222] sm:$0x1f]
        %v283 = vld [vmem:[%s222 + $0x8] sm:$0x1f]
        %286 = vrot.lane.b32.xlu0 %v282, 123
        %v287 = vpop.permute.xlu0 %286
        %288 = vrot.lane.b32.xlu0 %v283, 123
        %v289 = vpop.permute.xlu0 %288
        %vm290 = vcmask 1006592
        %v291 = vsel %vm290, %v287, %v289
        %293 = vst [vmem:[#allocation2 + $0x19] sm:$0x1f] %v291
        %v294 = vld [vmem:[%s222] sm:$0x1f]
        %v295 = vld [vmem:[%s222 + $0x8] sm:$0x1f]
        %298 = vrot.lane.b32.xlu0 %v294, 122
        %v299 = vpop.permute.xlu0 %298
        %300 = vrot.lane.b32.xlu0 %v295, 122
        %v301 = vpop.permute.xlu0 %300
        %vm302 = vcmask 998400
        %v303 = vsel %vm302, %v299, %v301
        %305 = vst [vmem:[#allocation2 + $0x1e] sm:$0x1f] %v303
        %v306 = vld [vmem:[%s222] sm:$0x1f]
        %v307 = vld [vmem:[%s222 + $0x8] sm:$0x1f]
        %310 = vrot.lane.b32.xlu0 %v306, 121
        %v311 = vpop.permute.xlu0 %310
        %312 = vrot.lane.b32.xlu0 %v307, 121
        %v313 = vpop.permute.xlu0 %312
        %vm314 = vcmask 990208
        %v315 = vsel %vm314, %v311, %v313
        %317 = vst [vmem:[#allocation2 + $0x23] sm:$0x1f] %v315
        %v318 = vld [vmem:[%s222] sm:$0x1f]
        %v319 = vld [vmem:[%s222 + $0x8] sm:$0x1f]
        %322 = vrot.lane.b32.xlu0 %v318, 120
        %v323 = vpop.permute.xlu0 %322
        %324 = vrot.lane.b32.xlu0 %v319, 120
        %v325 = vpop.permute.xlu0 %324
        %vm326 = vcmask 982016
        %v327 = vsel %vm326, %v323, %v325
        %329 = vst [vmem:[#allocation2 + $0x28] sm:$0x1f] %v327
        %v330 = vld [vmem:[%s222] sm:$0x1f]
        %v331 = vld [vmem:[%s222 + $0x8] sm:$0x1f]
        %334 = vrot.lane.b32.xlu0 %v330, 119
        %v335 = vpop.permute.xlu0 %334
        %336 = vrot.lane.b32.xlu0 %v331, 119
        %v337 = vpop.permute.xlu0 %336
        %vm338 = vcmask 973824
        %v339 = vsel %vm338, %v335, %v337
        %341 = vst [vmem:[#allocation2 + $0x2d] sm:$0x1f] %v339
        %v342 = vld [vmem:[%s222] sm:$0x1f]
        %v343 = vld [vmem:[%s222 + $0x8] sm:$0x1f]
        %346 = vrot.lane.b32.xlu0 %v342, 118
        %v347 = vpop.permute.xlu0 %346
        %348 = vrot.lane.b32.xlu0 %v343, 118
        %v349 = vpop.permute.xlu0 %348
        %vm350 = vcmask 965632
        %v351 = vsel %vm350, %v347, %v349
        %353 = vst [vmem:[#allocation2 + $0x32] sm:$0x1f] %v351
        %v354 = vld [vmem:[%s1] sm:$0xf]
        %v355 = vld [vmem:[%s1 + $0x4] sm:$0xf]
        %v356 = vld [vmem:[%s1 + $0x8] sm:$0xf]
        %v357 = vld [vmem:[%s1 + $0xc] sm:$0xf]
        %v358 = vld [vmem:[%s1 + $0x10] sm:$0xf]
        %v359 = vld [vmem:[%s1 + $0x14] sm:$0xf]
        %v360 = vld [vmem:[%s1 + $0x18] sm:$0xf]
        %v361 = vld [vmem:[%s1 + $0x1c] sm:$0xf]
        %v362 = vld [vmem:[%s1 + $0x20] sm:$0xf]
        %v363 = vld [vmem:[%s1 + $0x24] sm:$0xf]
        %v364 = vld [vmem:[%s1 + $0x28] sm:$0xf]
        %v365 = vld [vmem:[%s1 + $0x2c] sm:$0xf]
        %v366 = vld [vmem:[%s1 + $0x30] sm:$0xf]
        %v367 = vld [vmem:[%s1 + $0x34] sm:$0xf]
        %v368 = vld [vmem:[%s1 + $0x38] sm:$0xf]
        %v369 = vld [vmem:[%s1 + $0x3c] sm:$0xf]
        %v370 = vld [vmem:[%s1 + $0x40] sm:$0xf]
        %v371 = vld [vmem:[%s1 + $0x44] sm:$0xf]
        %v372 = vld [vmem:[%s1 + $0x48] sm:$0xf]
        %v373 = vld [vmem:[%s1 + $0x4c] sm:$0xf]
        %v374 = vld [vmem:[#allocation2] sm:$0xff]
        %v375 = vld [vmem:[#allocation2 + $0x8] sm:$0xff]
        %v376 = vld [vmem:[#allocation2 + $0x10] sm:$0xff]
        %v377 = vld [vmem:[#allocation2 + $0x18] sm:$0xff]
        %v378 = vld [vmem:[#allocation2 + $0x20] sm:$0xff]
        %v379 = vld [vmem:[#allocation2 + $0x28] sm:$0xff]
        %v380 = vld [vmem:[#allocation2 + $0x30] sm:$0xff]
        %v381 = vld [vmem:[#allocation2 + $0x38] sm:$0xff]
        %v382 = vpack.c.bf16 %v375, %v374
        %v383 = vpack.c.bf16 %v377, %v376
        %v384 = vpack.c.bf16 %v379, %v378
        %v385 = vpack.c.bf16 %v381, %v380
        %v386 = vld [vmem:[%s2] sm:$0xff]
        %v387 = vld [vmem:[%s2 + $0x8] sm:$0xff]
        %v388 = vld [vmem:[%s2 + $0x10] sm:$0xff]
        %v389 = vld [vmem:[%s2 + $0x18] sm:$0xff]
        %v390 = vld [vmem:[%s2 + $0x20] sm:$0xff]
        %v391 = vld [vmem:[%s2 + $0x28] sm:$0xff]
        %v392 = vld [vmem:[%s2 + $0x30] sm:$0xff]
        %v393 = vld [vmem:[%s2 + $0x38] sm:$0xff]
        %v394 = vld [vmem:[%s2 + $0x40] sm:$0xff]
        %v395 = vld [vmem:[%s2 + $0x48] sm:$0xff]
        %v396 = vld [vmem:[%s2 + $0x50] sm:$0xff]
        %v397 = vld [vmem:[%s2 + $0x58] sm:$0xff]
        %v398 = vld [vmem:[%s2 + $0x60] sm:$0xff]
        %v399 = vld [vmem:[%s2 + $0x68] sm:$0xff]
        %v400 = vld [vmem:[%s2 + $0x70] sm:$0xff]
        %v401 = vld [vmem:[%s2 + $0x78] sm:$0xff]
        %v402 = vld [vmem:[%s2 + $0x80] sm:$0xff]
        %v403 = vld [vmem:[%s2 + $0x88] sm:$0xff]
        %v404 = vld [vmem:[%s2 + $0x90] sm:$0xff]
        %v405 = vld [vmem:[%s2 + $0x98] sm:$0xff]
        %407 = vset.pattern.permute.xlu0 0
        %408 = vperm.xlu0 %407, %v386
        %v409 = vpop.permute.xlu0 %408
        %412 = vset.pattern.permute.xlu0 0
        %413 = vperm.xlu0 %412, %v387
        %v414 = vpop.permute.xlu0 %413
        %417 = vset.pattern.permute.xlu0 0
        %418 = vperm.xlu0 %417, %v388
        %v419 = vpop.permute.xlu0 %418
        %422 = vset.pattern.permute.xlu0 0
        %423 = vperm.xlu0 %422, %v389
        %v424 = vpop.permute.xlu0 %423
        %427 = vset.pattern.permute.xlu0 0
        %428 = vperm.xlu0 %427, %v390
        %v429 = vpop.permute.xlu0 %428
        %432 = vset.pattern.permute.xlu0 0
        %433 = vperm.xlu0 %432, %v391
        %v434 = vpop.permute.xlu0 %433
        %437 = vset.pattern.permute.xlu0 0
        %438 = vperm.xlu0 %437, %v392
        %v439 = vpop.permute.xlu0 %438
        %442 = vset.pattern.permute.xlu0 0
        %443 = vperm.xlu0 %442, %v393
        %v444 = vpop.permute.xlu0 %443
        %447 = vset.pattern.permute.xlu0 0
        %448 = vperm.xlu0 %447, %v394
        %v449 = vpop.permute.xlu0 %448
        %452 = vset.pattern.permute.xlu0 0
        %453 = vperm.xlu0 %452, %v395
        %v454 = vpop.permute.xlu0 %453
        %457 = vset.pattern.permute.xlu0 0
        %458 = vperm.xlu0 %457, %v396
        %v459 = vpop.permute.xlu0 %458
        %462 = vset.pattern.permute.xlu0 0
        %463 = vperm.xlu0 %462, %v397
        %v464 = vpop.permute.xlu0 %463
        %467 = vset.pattern.permute.xlu0 0
        %468 = vperm.xlu0 %467, %v398
        %v469 = vpop.permute.xlu0 %468
        %472 = vset.pattern.permute.xlu0 0
        %473 = vperm.xlu0 %472, %v399
        %v474 = vpop.permute.xlu0 %473
        %477 = vset.pattern.permute.xlu0 0
        %478 = vperm.xlu0 %477, %v400
        %v479 = vpop.permute.xlu0 %478
        %482 = vset.pattern.permute.xlu0 0
        %483 = vperm.xlu0 %482, %v401
        %v484 = vpop.permute.xlu0 %483
        %487 = vset.pattern.permute.xlu0 0
        %488 = vperm.xlu0 %487, %v402
        %v489 = vpop.permute.xlu0 %488
        %492 = vset.pattern.permute.xlu0 0
        %493 = vperm.xlu0 %492, %v403
        %v494 = vpop.permute.xlu0 %493
        %497 = vset.pattern.permute.xlu0 0
        %498 = vperm.xlu0 %497, %v404
        %v499 = vpop.permute.xlu0 %498
        %502 = vset.pattern.permute.xlu0 0
        %503 = vperm.xlu0 %502, %v405
        %v504 = vpop.permute.xlu0 %503
        %v526 = vunpack.c.l.b16 %v354
        %v527 = vunpack.c.l.b16 %v355
        %v528 = vunpack.c.l.b16 %v356
        %v529 = vunpack.c.l.b16 %v357
        %v530 = vunpack.c.l.b16 %v358
        %v531 = vunpack.c.l.b16 %v359
        %v532 = vunpack.c.l.b16 %v360
        %v533 = vunpack.c.l.b16 %v361
        %v534 = vunpack.c.l.b16 %v362
        %v535 = vunpack.c.l.b16 %v363
        %v536 = vunpack.c.l.b16 %v364
        %v537 = vunpack.c.l.b16 %v365
        %v538 = vunpack.c.l.b16 %v366
        %v539 = vunpack.c.l.b16 %v367
        %v540 = vunpack.c.l.b16 %v368
        %v541 = vunpack.c.l.b16 %v369
        %v542 = vunpack.c.l.b16 %v370
        %v543 = vunpack.c.l.b16 %v371
        %v544 = vunpack.c.l.b16 %v372
        %v545 = vunpack.c.l.b16 %v373
        %v546 = vpack.c.b16 %v527, %v526
        %v547 = vpack.c.b16 %v529, %v528
        %v548 = vpack.c.b16 %v531, %v530
        %v549 = vpack.c.b16 %v533, %v532
        %v550 = vpack.c.b16 %v535, %v534
        %v551 = vpack.c.b16 %v537, %v536
        %v552 = vpack.c.b16 %v539, %v538
        %v553 = vpack.c.b16 %v541, %v540
        %v554 = vpack.c.b16 %v543, %v542
        %v555 = vpack.c.b16 %v545, %v544
        %vm556 = vcmask 523264
        %v558 = vsel %vm556, %v546, 0
        %v561 = vsel %vm556, %v547, 0
        %v564 = vsel %vm556, %v548, 0
        %v567 = vsel %vm556, %v549, 0
        %v570 = vsel %vm556, %v550, 0
        %v573 = vsel %vm556, %v551, 0
        %v576 = vsel %vm556, %v552, 0
        %v579 = vsel %vm556, %v553, 0
        %v582 = vsel %vm556, %v554, 0
        %v585 = vsel %vm556, %v555, 0
        %587 = vmatpush.bf16.msra.mxu0 0
        %588 = vmatpush.bf16.msra.mxu0 0
        %589 = vmatpush.bf16.msra.mxu0 0
        %590 = vmatpush.bf16.msra.mxu0 0
        %591 = vmatpush.bf16.msra.mxu0 %v385
        %592 = vmatpush.bf16.msra.mxu0 %v384
        %593 = vmatpush.bf16.msra.mxu0 %v383
        %594 = vmatpush.bf16.msra.mxu0 %v382
        %595 = vmatmul.bf16.gmra.mxu0 %v558
        %v596 = vpop.f32.mrf.mxu0
        %v597 = vadd.f32 %v409, %v596
        %v598 = vpop.f32.mrf.mxu0
        %v599 = vadd.f32 %v414, %v598
        %600 = vmatmul.bf16.gmra.mxu0 %v561
        %v601 = vpop.f32.mrf.mxu0
        %v602 = vadd.f32 %v419, %v601
        %v603 = vpop.f32.mrf.mxu0
        %v604 = vadd.f32 %v424, %v603
        %605 = vmatmul.bf16.gmra.mxu0 %v564
        %v606 = vpop.f32.mrf.mxu0
        %v607 = vadd.f32 %v429, %v606
        %v608 = vpop.f32.mrf.mxu0
        %v609 = vadd.f32 %v434, %v608
        %610 = vmatmul.bf16.gmra.mxu0 %v567
        %v611 = vpop.f32.mrf.mxu0
        %v612 = vadd.f32 %v439, %v611
        %v613 = vpop.f32.mrf.mxu0
        %v614 = vadd.f32 %v444, %v613
        %615 = vmatmul.bf16.gmra.mxu0 %v570
        %v616 = vpop.f32.mrf.mxu0
        %v617 = vadd.f32 %v449, %v616
        %v618 = vpop.f32.mrf.mxu0
        %v619 = vadd.f32 %v454, %v618
        %620 = vmatmul.bf16.gmra.mxu0 %v573
        %v621 = vpop.f32.mrf.mxu0
        %v622 = vadd.f32 %v459, %v621
        %v623 = vpop.f32.mrf.mxu0
        %v624 = vadd.f32 %v464, %v623
        %625 = vmatmul.bf16.gmra.mxu0 %v576
        %v626 = vpop.f32.mrf.mxu0
        %v627 = vadd.f32 %v469, %v626
        %v628 = vpop.f32.mrf.mxu0
        %v629 = vadd.f32 %v474, %v628
        %630 = vmatmul.bf16.gmra.mxu0 %v579
        %v631 = vpop.f32.mrf.mxu0
        %v632 = vadd.f32 %v479, %v631
        %v633 = vpop.f32.mrf.mxu0
        %v634 = vadd.f32 %v484, %v633
        %635 = vmatmul.bf16.gmra.mxu0 %v582
        %v636 = vpop.f32.mrf.mxu0
        %v637 = vadd.f32 %v489, %v636
        %v638 = vpop.f32.mrf.mxu0
        %v639 = vadd.f32 %v494, %v638
        %640 = vmatmul.bf16.gmra.mxu0 %v585
        %v641 = vpop.f32.mrf.mxu0
        %v642 = vadd.f32 %v499, %v641
        %v643 = vpop.f32.mrf.mxu0
        %v644 = vadd.f32 %v504, %v643
        %645 = vdwg.mxu0
        %vm646 = vcmp.gt.f32.partialorder %v597, 0.0
        %vm647 = vcmp.gt.f32.partialorder %v599, 0.0
        %vm648 = vcmp.gt.f32.partialorder %v602, 0.0
        %vm649 = vcmp.gt.f32.partialorder %v604, 0.0
        %vm650 = vcmp.gt.f32.partialorder %v607, 0.0
        %vm651 = vcmp.gt.f32.partialorder %v609, 0.0
        %vm652 = vcmp.gt.f32.partialorder %v612, 0.0
        %vm653 = vcmp.gt.f32.partialorder %v614, 0.0
        %vm654 = vcmp.gt.f32.partialorder %v617, 0.0
        %vm655 = vcmp.gt.f32.partialorder %v619, 0.0
        %vm656 = vcmp.gt.f32.partialorder %v622, 0.0
        %vm657 = vcmp.gt.f32.partialorder %v624, 0.0
        %vm658 = vcmp.gt.f32.partialorder %v627, 0.0
        %vm659 = vcmp.gt.f32.partialorder %v629, 0.0
        %vm660 = vcmp.gt.f32.partialorder %v632, 0.0
        %vm661 = vcmp.gt.f32.partialorder %v634, 0.0
        %vm662 = vcmp.gt.f32.partialorder %v637, 0.0
        %vm663 = vcmp.gt.f32.partialorder %v639, 0.0
        %vm664 = vcmp.gt.f32.partialorder %v642, 0.0
        %vm665 = vcmp.gt.f32.partialorder %v644, 0.0
        %v666 = vmul.f32 %v597, 0.2
        %v667 = vmul.f32 %v599, 0.2
        %v668 = vmul.f32 %v602, 0.2
        %v669 = vmul.f32 %v604, 0.2
        %v670 = vmul.f32 %v607, 0.2
        %v671 = vmul.f32 %v609, 0.2
        %v672 = vmul.f32 %v612, 0.2
        %v673 = vmul.f32 %v614, 0.2
        %v674 = vmul.f32 %v617, 0.2
        %v675 = vmul.f32 %v619, 0.2
        %v676 = vmul.f32 %v622, 0.2
        %v677 = vmul.f32 %v624, 0.2
        %v678 = vmul.f32 %v627, 0.2
        %v679 = vmul.f32 %v629, 0.2
        %v680 = vmul.f32 %v632, 0.2
        %v681 = vmul.f32 %v634, 0.2
        %v682 = vmul.f32 %v637, 0.2
        %v683 = vmul.f32 %v639, 0.2
        %v684 = vmul.f32 %v642, 0.2
        %v685 = vmul.f32 %v644, 0.2
        %v686 = vsel %vm646, %v597, %v666
        %v687 = vsel %vm647, %v599, %v667
        %v688 = vsel %vm648, %v602, %v668
        %v689 = vsel %vm649, %v604, %v669
        %v690 = vsel %vm650, %v607, %v670
        %v691 = vsel %vm651, %v609, %v671
        %v692 = vsel %vm652, %v612, %v672
        %v693 = vsel %vm653, %v614, %v673
        %v694 = vsel %vm654, %v617, %v674
        %v695 = vsel %vm655, %v619, %v675
        %v696 = vsel %vm656, %v622, %v676
        %v697 = vsel %vm657, %v624, %v677
        %v698 = vsel %vm658, %v627, %v678
        %v699 = vsel %vm659, %v629, %v679
        %v700 = vsel %vm660, %v632, %v680
        %v701 = vsel %vm661, %v634, %v681
        %v702 = vsel %vm662, %v637, %v682
        %v703 = vsel %vm663, %v639, %v683
        %v704 = vsel %vm664, %v642, %v684
        %v705 = vsel %vm665, %v644, %v685
        %v706 = vpack.c.bf16 %v686, %v686
        %v707 = vpack.c.bf16 %v687, %v687
        %v708 = vpack.c.bf16 %v688, %v688
        %v709 = vpack.c.bf16 %v689, %v689
        %v710 = vpack.c.bf16 %v690, %v690
        %v711 = vpack.c.bf16 %v691, %v691
        %v712 = vpack.c.bf16 %v692, %v692
        %v713 = vpack.c.bf16 %v693, %v693
        %v714 = vpack.c.bf16 %v694, %v694
        %v715 = vpack.c.bf16 %v695, %v695
        %v716 = vpack.c.bf16 %v696, %v696
        %v717 = vpack.c.bf16 %v697, %v697
        %v718 = vpack.c.bf16 %v698, %v698
        %v719 = vpack.c.bf16 %v699, %v699
        %v720 = vpack.c.bf16 %v700, %v700
        %v721 = vpack.c.bf16 %v701, %v701
        %v722 = vpack.c.bf16 %v702, %v702
        %v723 = vpack.c.bf16 %v703, %v703
        %v724 = vpack.c.bf16 %v704, %v704
        %v725 = vpack.c.bf16 %v705, %v705
        %726 = vst [vmem:[#allocation3] sm:$0xf] %v706
        %727 = vst [vmem:[#allocation3 + $0x4] sm:$0xf] %v707
        %728 = vst [vmem:[#allocation3 + $0x8] sm:$0xf] %v708
        %729 = vst [vmem:[#allocation3 + $0xc] sm:$0xf] %v709
        %730 = vst [vmem:[#allocation3 + $0x10] sm:$0xf] %v710
        %731 = vst [vmem:[#allocation3 + $0x14] sm:$0xf] %v711
        %732 = vst [vmem:[#allocation3 + $0x18] sm:$0xf] %v712
        %733 = vst [vmem:[#allocation3 + $0x1c] sm:$0xf] %v713
        %734 = vst [vmem:[#allocation3 + $0x20] sm:$0xf] %v714
        %735 = vst [vmem:[#allocation3 + $0x24] sm:$0xf] %v715
        %736 = vst [vmem:[#allocation3 + $0x28] sm:$0xf] %v716
        %737 = vst [vmem:[#allocation3 + $0x2c] sm:$0xf] %v717
        %738 = vst [vmem:[#allocation3 + $0x30] sm:$0xf] %v718
        %739 = vst [vmem:[#allocation3 + $0x34] sm:$0xf] %v719
        %740 = vst [vmem:[#allocation3 + $0x38] sm:$0xf] %v720
        %741 = vst [vmem:[#allocation3 + $0x3c] sm:$0xf] %v721
        %742 = vst [vmem:[#allocation3 + $0x40] sm:$0xf] %v722
        %743 = vst [vmem:[#allocation3 + $0x44] sm:$0xf] %v723
        %744 = vst [vmem:[#allocation3 + $0x48] sm:$0xf] %v724
        %745 = vst [vmem:[#allocation3 + $0x4c] sm:$0xf] %v725
        %v746 = vld [vmem:[%s222] sm:$0xe0]
        %v747 = vld [vmem:[%s222 + $0x10] sm:$0x3]
        %748 = vst [vmem:[#allocation2 - $0x5] sm:$0xe0] %v746
        %749 = vst [vmem:[#allocation2 + $0x3] sm:$0x3] %v747
        %v750 = vld [vmem:[%s222] sm:$0xe0]
        %v751 = vld [vmem:[%s222 + $0x8] sm:$0xe0]
        %v752 = vld [vmem:[%s222 + $0x10] sm:$0x3]
        %v753 = vld [vmem:[%s222 + $0x18] sm:$0x3]
        %758 = vrot.lane.b32.xlu0 %v750, 127
        %v759 = vpop.permute.xlu0 %758
        %760 = vrot.lane.b32.xlu0 %v751, 127
        %v761 = vpop.permute.xlu0 %760
        %762 = vrot.lane.b32.xlu0 %v752, 127
        %v763 = vpop.permute.xlu0 %762
        %764 = vrot.lane.b32.xlu0 %v753, 127
        %v765 = vpop.permute.xlu0 %764
        %v766 = vsel %vm242, %v759, %v761
        %v767 = vsel %vm242, %v763, %v765
        %770 = vst [vmem:[#allocation2] sm:$0xe0] %v766
        %771 = vst [vmem:[#allocation2 + $0x8] sm:$0x3] %v767
        %v772 = vld [vmem:[%s222] sm:$0xe0]
        %v773 = vld [vmem:[%s222 + $0x8] sm:$0xe0]
        %v774 = vld [vmem:[%s222 + $0x10] sm:$0x3]
        %v775 = vld [vmem:[%s222 + $0x18] sm:$0x3]
        %780 = vrot.lane.b32.xlu0 %v772, 126
        %v781 = vpop.permute.xlu0 %780
        %782 = vrot.lane.b32.xlu0 %v773, 126
        %v783 = vpop.permute.xlu0 %782
        %784 = vrot.lane.b32.xlu0 %v774, 126
        %v785 = vpop.permute.xlu0 %784
        %786 = vrot.lane.b32.xlu0 %v775, 126
        %v787 = vpop.permute.xlu0 %786
        %v788 = vsel %vm254, %v781, %v783
        %v789 = vsel %vm254, %v785, %v787
        %792 = vst [vmem:[#allocation2 + $0x5] sm:$0xe0] %v788
        %793 = vst [vmem:[#allocation2 + $0xd] sm:$0x3] %v789
        %v794 = vld [vmem:[%s222] sm:$0xe0]
        %v795 = vld [vmem:[%s222 + $0x8] sm:$0xe0]
        %v796 = vld [vmem:[%s222 + $0x10] sm:$0x3]
        %v797 = vld [vmem:[%s222 + $0x18] sm:$0x3]
        %802 = vrot.lane.b32.xlu0 %v794, 125
        %v803 = vpop.permute.xlu0 %802
        %804 = vrot.lane.b32.xlu0 %v795, 125
        %v805 = vpop.permute.xlu0 %804
        %806 = vrot.lane.b32.xlu0 %v796, 125
        %v807 = vpop.permute.xlu0 %806
        %808 = vrot.lane.b32.xlu0 %v797, 125
        %v809 = vpop.permute.xlu0 %808
        %v810 = vsel %vm266, %v803, %v805
        %v811 = vsel %vm266, %v807, %v809
        %814 = vst [vmem:[#allocation2 + $0xa] sm:$0xe0] %v810
        %815 = vst [vmem:[#allocation2 + $0x12] sm:$0x3] %v811
        %v816 = vld [vmem:[%s222] sm:$0xe0]
        %v817 = vld [vmem:[%s222 + $0x8] sm:$0xe0]
        %v818 = vld [vmem:[%s222 + $0x10] sm:$0x3]
        %v819 = vld [vmem:[%s222 + $0x18] sm:$0x3]
        %824 = vrot.lane.b32.xlu0 %v816, 124
        %v825 = vpop.permute.xlu0 %824
        %826 = vrot.lane.b32.xlu0 %v817, 124
        %v827 = vpop.permute.xlu0 %826
        %828 = vrot.lane.b32.xlu0 %v818, 124
        %v829 = vpop.permute.xlu0 %828
        %830 = vrot.lane.b32.xlu0 %v819, 124
        %v831 = vpop.permute.xlu0 %830
        %v832 = vsel %vm278, %v825, %v827
        %v833 = vsel %vm278, %v829, %v831
        %836 = vst [vmem:[#allocation2 + $0xf] sm:$0xe0] %v832
        %837 = vst [vmem:[#allocation2 + $0x17] sm:$0x3] %v833
        %v838 = vld [vmem:[%s222] sm:$0xe0]
        %v839 = vld [vmem:[%s222 + $0x8] sm:$0xe0]
        %v840 = vld [vmem:[%s222 + $0x10] sm:$0x3]
        %v841 = vld [vmem:[%s222 + $0x18] sm:$0x3]
        %846 = vrot.lane.b32.xlu0 %v838, 123
        %v847 = vpop.permute.xlu0 %846
        %848 = vrot.lane.b32.xlu0 %v839, 123
        %v849 = vpop.permute.xlu0 %848
        %850 = vrot.lane.b32.xlu0 %v840, 123
        %v851 = vpop.permute.xlu0 %850
        %852 = vrot.lane.b32.xlu0 %v841, 123
        %v853 = vpop.permute.xlu0 %852
        %v854 = vsel %vm290, %v847, %v849
        %v855 = vsel %vm290, %v851, %v853
        %858 = vst [vmem:[#allocation2 + $0x14] sm:$0xe0] %v854
        %859 = vst [vmem:[#allocation2 + $0x1c] sm:$0x3] %v855
        %v860 = vld [vmem:[%s222] sm:$0xe0]
        %v861 = vld [vmem:[%s222 + $0x8] sm:$0xe0]
        %v862 = vld [vmem:[%s222 + $0x10] sm:$0x3]
        %v863 = vld [vmem:[%s222 + $0x18] sm:$0x3]
        %868 = vrot.lane.b32.xlu0 %v860, 122
        %v869 = vpop.permute.xlu0 %868
        %870 = vrot.lane.b32.xlu0 %v861, 122
        %v871 = vpop.permute.xlu0 %870
        %872 = vrot.lane.b32.xlu0 %v862, 122
        %v873 = vpop.permute.xlu0 %872
        %874 = vrot.lane.b32.xlu0 %v863, 122
        %v875 = vpop.permute.xlu0 %874
        %v876 = vsel %vm302, %v869, %v871
        %v877 = vsel %vm302, %v873, %v875
        %880 = vst [vmem:[#allocation2 + $0x19] sm:$0xe0] %v876
        %881 = vst [vmem:[#allocation2 + $0x21] sm:$0x3] %v877
        %v882 = vld [vmem:[%s222] sm:$0xe0]
        %v883 = vld [vmem:[%s222 + $0x8] sm:$0xe0]
        %v884 = vld [vmem:[%s222 + $0x10] sm:$0x3]
        %v885 = vld [vmem:[%s222 + $0x18] sm:$0x3]
        %890 = vrot.lane.b32.xlu0 %v882, 121
        %v891 = vpop.permute.xlu0 %890
        %892 = vrot.lane.b32.xlu0 %v883, 121
        %v893 = vpop.permute.xlu0 %892
        %894 = vrot.lane.b32.xlu0 %v884, 121
        %v895 = vpop.permute.xlu0 %894
        %896 = vrot.lane.b32.xlu0 %v885, 121
        %v897 = vpop.permute.xlu0 %896
        %v898 = vsel %vm314, %v891, %v893
        %v899 = vsel %vm314, %v895, %v897
        %902 = vst [vmem:[#allocation2 + $0x1e] sm:$0xe0] %v898
        %903 = vst [vmem:[#allocation2 + $0x26] sm:$0x3] %v899
        %v904 = vld [vmem:[%s222] sm:$0xe0]
        %v905 = vld [vmem:[%s222 + $0x8] sm:$0xe0]
        %v906 = vld [vmem:[%s222 + $0x10] sm:$0x3]
        %v907 = vld [vmem:[%s222 + $0x18] sm:$0x3]
        %912 = vrot.lane.b32.xlu0 %v904, 120
        %v913 = vpop.permute.xlu0 %912
        %914 = vrot.lane.b32.xlu0 %v905, 120
        %v915 = vpop.permute.xlu0 %914
        %916 = vrot.lane.b32.xlu0 %v906, 120
        %v917 = vpop.permute.xlu0 %916
        %918 = vrot.lane.b32.xlu0 %v907, 120
        %v919 = vpop.permute.xlu0 %918
        %v920 = vsel %vm326, %v913, %v915
        %v921 = vsel %vm326, %v917, %v919
        %924 = vst [vmem:[#allocation2 + $0x23] sm:$0xe0] %v920
        %925 = vst [vmem:[#allocation2 + $0x2b] sm:$0x3] %v921
        %v926 = vld [vmem:[%s222] sm:$0xe0]
        %v927 = vld [vmem:[%s222 + $0x8] sm:$0xe0]
        %v928 = vld [vmem:[%s222 + $0x10] sm:$0x3]
        %v929 = vld [vmem:[%s222 + $0x18] sm:$0x3]
        %934 = vrot.lane.b32.xlu0 %v926, 119
        %v935 = vpop.permute.xlu0 %934
        %936 = vrot.lane.b32.xlu0 %v927, 119
        %v937 = vpop.permute.xlu0 %936
        %938 = vrot.lane.b32.xlu0 %v928, 119
        %v939 = vpop.permute.xlu0 %938
        %940 = vrot.lane.b32.xlu0 %v929, 119
        %v941 = vpop.permute.xlu0 %940
        %v942 = vsel %vm338, %v935, %v937
        %v943 = vsel %vm338, %v939, %v941
        %946 = vst [vmem:[#allocation2 + $0x28] sm:$0xe0] %v942
        %947 = vst [vmem:[#allocation2 + $0x30] sm:$0x3] %v943
        %v948 = vld [vmem:[%s222] sm:$0xe0]
        %v949 = vld [vmem:[%s222 + $0x8] sm:$0xe0]
        %v950 = vld [vmem:[%s222 + $0x10] sm:$0x3]
        %v951 = vld [vmem:[%s222 + $0x18] sm:$0x3]
        %956 = vrot.lane.b32.xlu0 %v948, 118
        %v957 = vpop.permute.xlu0 %956
        %958 = vrot.lane.b32.xlu0 %v949, 118
        %v959 = vpop.permute.xlu0 %958
        %960 = vrot.lane.b32.xlu0 %v950, 118
        %v961 = vpop.permute.xlu0 %960
        %962 = vrot.lane.b32.xlu0 %v951, 118
        %v963 = vpop.permute.xlu0 %962
        %v964 = vsel %vm350, %v957, %v959
        %v965 = vsel %vm350, %v961, %v963
        %968 = vst [vmem:[#allocation2 + $0x2d] sm:$0xe0] %v964
        %969 = vst [vmem:[#allocation2 + $0x35] sm:$0x3] %v965
        %v970 = vld [vmem:[%s1] sm:$0xf]
        %v971 = vld [vmem:[%s1 + $0x4] sm:$0xf]
        %v972 = vld [vmem:[%s1 + $0x8] sm:$0xf]
        %v973 = vld [vmem:[%s1 + $0xc] sm:$0xf]
        %v974 = vld [vmem:[%s1 + $0x10] sm:$0xf]
        %v975 = vld [vmem:[%s1 + $0x14] sm:$0xf]
        %v976 = vld [vmem:[%s1 + $0x18] sm:$0xf]
        %v977 = vld [vmem:[%s1 + $0x1c] sm:$0xf]
        %v978 = vld [vmem:[%s1 + $0x20] sm:$0xf]
        %v979 = vld [vmem:[%s1 + $0x24] sm:$0xf]
        %v980 = vld [vmem:[%s1 + $0x28] sm:$0xf]
        %v981 = vld [vmem:[%s1 + $0x2c] sm:$0xf]
        %v982 = vld [vmem:[%s1 + $0x30] sm:$0xf]
        %v983 = vld [vmem:[%s1 + $0x34] sm:$0xf]
        %v984 = vld [vmem:[%s1 + $0x38] sm:$0xf]
        %v985 = vld [vmem:[%s1 + $0x3c] sm:$0xf]
        %v986 = vld [vmem:[%s1 + $0x40] sm:$0xf]
        %v987 = vld [vmem:[%s1 + $0x44] sm:$0xf]
        %v988 = vld [vmem:[%s1 + $0x48] sm:$0xf]
        %v989 = vld [vmem:[%s1 + $0x4c] sm:$0xf]
        %v990 = vld [vmem:[#allocation2] sm:$0xff]
        %v991 = vld [vmem:[#allocation2 + $0x8] sm:$0xff]
        %v992 = vld [vmem:[#allocation2 + $0x10] sm:$0xff]
        %v993 = vld [vmem:[#allocation2 + $0x18] sm:$0xff]
        %v994 = vld [vmem:[#allocation2 + $0x20] sm:$0xff]
        %v995 = vld [vmem:[#allocation2 + $0x28] sm:$0xff]
        %v996 = vld [vmem:[#allocation2 + $0x30] sm:$0xff]
        %v997 = vld [vmem:[#allocation2 + $0x38] sm:$0xff]
        %v998 = vpack.c.bf16 %v991, %v990
        %v999 = vpack.c.bf16 %v993, %v992
        %v1000 = vpack.c.bf16 %v995, %v994
        %v1001 = vpack.c.bf16 %v997, %v996
        %v1002 = vld [vmem:[%s2] sm:$0xff]
        %v1003 = vld [vmem:[%s2 + $0x8] sm:$0xff]
        %v1004 = vld [vmem:[%s2 + $0x10] sm:$0xff]
        %v1005 = vld [vmem:[%s2 + $0x18] sm:$0xff]
        %v1006 = vld [vmem:[%s2 + $0x20] sm:$0xff]
        %v1007 = vld [vmem:[%s2 + $0x28] sm:$0xff]
        %v1008 = vld [vmem:[%s2 + $0x30] sm:$0xff]
        %v1009 = vld [vmem:[%s2 + $0x38] sm:$0xff]
        %v1010 = vld [vmem:[%s2 + $0x40] sm:$0xff]
        %v1011 = vld [vmem:[%s2 + $0x48] sm:$0xff]
        %v1012 = vld [vmem:[%s2 + $0x50] sm:$0xff]
        %v1013 = vld [vmem:[%s2 + $0x58] sm:$0xff]
        %v1014 = vld [vmem:[%s2 + $0x60] sm:$0xff]
        %v1015 = vld [vmem:[%s2 + $0x68] sm:$0xff]
        %v1016 = vld [vmem:[%s2 + $0x70] sm:$0xff]
        %v1017 = vld [vmem:[%s2 + $0x78] sm:$0xff]
        %v1018 = vld [vmem:[%s2 + $0x80] sm:$0xff]
        %v1019 = vld [vmem:[%s2 + $0x88] sm:$0xff]
        %v1020 = vld [vmem:[%s2 + $0x90] sm:$0xff]
        %v1021 = vld [vmem:[%s2 + $0x98] sm:$0xff]
        %1023 = vset.pattern.permute.xlu0 0
        %1024 = vperm.xlu0 %1023, %v1002
        %v1025 = vpop.permute.xlu0 %1024
        %1028 = vset.pattern.permute.xlu0 0
        %1029 = vperm.xlu0 %1028, %v1003
        %v1030 = vpop.permute.xlu0 %1029
        %1033 = vset.pattern.permute.xlu0 0
        %1034 = vperm.xlu0 %1033, %v1004
        %v1035 = vpop.permute.xlu0 %1034
        %1038 = vset.pattern.permute.xlu0 0
        %1039 = vperm.xlu0 %1038, %v1005
        %v1040 = vpop.permute.xlu0 %1039
        %1043 = vset.pattern.permute.xlu0 0
        %1044 = vperm.xlu0 %1043, %v1006
        %v1045 = vpop.permute.xlu0 %1044
        %1048 = vset.pattern.permute.xlu0 0
        %1049 = vperm.xlu0 %1048, %v1007
        %v1050 = vpop.permute.xlu0 %1049
        %1053 = vset.pattern.permute.xlu0 0
        %1054 = vperm.xlu0 %1053, %v1008
        %v1055 = vpop.permute.xlu0 %1054
        %1058 = vset.pattern.permute.xlu0 0
        %1059 = vperm.xlu0 %1058, %v1009
        %v1060 = vpop.permute.xlu0 %1059
        %1063 = vset.pattern.permute.xlu0 0
        %1064 = vperm.xlu0 %1063, %v1010
        %v1065 = vpop.permute.xlu0 %1064
        %1068 = vset.pattern.permute.xlu0 0
        %1069 = vperm.xlu0 %1068, %v1011
        %v1070 = vpop.permute.xlu0 %1069
        %1073 = vset.pattern.permute.xlu0 0
        %1074 = vperm.xlu0 %1073, %v1012
        %v1075 = vpop.permute.xlu0 %1074
        %1078 = vset.pattern.permute.xlu0 0
        %1079 = vperm.xlu0 %1078, %v1013
        %v1080 = vpop.permute.xlu0 %1079
        %1083 = vset.pattern.permute.xlu0 0
        %1084 = vperm.xlu0 %1083, %v1014
        %v1085 = vpop.permute.xlu0 %1084
        %1088 = vset.pattern.permute.xlu0 0
        %1089 = vperm.xlu0 %1088, %v1015
        %v1090 = vpop.permute.xlu0 %1089
        %1093 = vset.pattern.permute.xlu0 0
        %1094 = vperm.xlu0 %1093, %v1016
        %v1095 = vpop.permute.xlu0 %1094
        %1098 = vset.pattern.permute.xlu0 0
        %1099 = vperm.xlu0 %1098, %v1017
        %v1100 = vpop.permute.xlu0 %1099
        %1103 = vset.pattern.permute.xlu0 0
        %1104 = vperm.xlu0 %1103, %v1018
        %v1105 = vpop.permute.xlu0 %1104
        %1108 = vset.pattern.permute.xlu0 0
        %1109 = vperm.xlu0 %1108, %v1019
        %v1110 = vpop.permute.xlu0 %1109
        %1113 = vset.pattern.permute.xlu0 0
        %1114 = vperm.xlu0 %1113, %v1020
        %v1115 = vpop.permute.xlu0 %1114
        %1118 = vset.pattern.permute.xlu0 0
        %1119 = vperm.xlu0 %1118, %v1021
        %v1120 = vpop.permute.xlu0 %1119
        %v1142 = vunpack.c.l.b16 %v970
        %v1143 = vunpack.c.l.b16 %v971
        %v1144 = vunpack.c.l.b16 %v972
        %v1145 = vunpack.c.l.b16 %v973
        %v1146 = vunpack.c.l.b16 %v974
        %v1147 = vunpack.c.l.b16 %v975
        %v1148 = vunpack.c.l.b16 %v976
        %v1149 = vunpack.c.l.b16 %v977
        %v1150 = vunpack.c.l.b16 %v978
        %v1151 = vunpack.c.l.b16 %v979
        %v1152 = vunpack.c.l.b16 %v980
        %v1153 = vunpack.c.l.b16 %v981
        %v1154 = vunpack.c.l.b16 %v982
        %v1155 = vunpack.c.l.b16 %v983
        %v1156 = vunpack.c.l.b16 %v984
        %v1157 = vunpack.c.l.b16 %v985
        %v1158 = vunpack.c.l.b16 %v986
        %v1159 = vunpack.c.l.b16 %v987
        %v1160 = vunpack.c.l.b16 %v988
        %v1161 = vunpack.c.l.b16 %v989
        %v1162 = vpack.c.b16 %v1143, %v1142
        %v1163 = vpack.c.b16 %v1145, %v1144
        %v1164 = vpack.c.b16 %v1147, %v1146
        %v1165 = vpack.c.b16 %v1149, %v1148
        %v1166 = vpack.c.b16 %v1151, %v1150
        %v1167 = vpack.c.b16 %v1153, %v1152
        %v1168 = vpack.c.b16 %v1155, %v1154
        %v1169 = vpack.c.b16 %v1157, %v1156
        %v1170 = vpack.c.b16 %v1159, %v1158
        %v1171 = vpack.c.b16 %v1161, %v1160
        %v1173 = vsel %vm556, %v1162, 0
        %v1176 = vsel %vm556, %v1163, 0
        %v1179 = vsel %vm556, %v1164, 0
        %v1182 = vsel %vm556, %v1165, 0
        %v1185 = vsel %vm556, %v1166, 0
        %v1188 = vsel %vm556, %v1167, 0
        %v1191 = vsel %vm556, %v1168, 0
        %v1194 = vsel %vm556, %v1169, 0
        %v1197 = vsel %vm556, %v1170, 0
        %v1200 = vsel %vm556, %v1171, 0
        %1202 = vmatpush.bf16.msra.mxu0 0
        %1203 = vmatpush.bf16.msra.mxu0 0
        %1204 = vmatpush.bf16.msra.mxu0 0
        %1205 = vmatpush.bf16.msra.mxu0 0
        %1206 = vmatpush.bf16.msra.mxu0 %v1001
        %1207 = vmatpush.bf16.msra.mxu0 %v1000
        %1208 = vmatpush.bf16.msra.mxu0 %v999
        %1209 = vmatpush.bf16.msra.mxu0 %v998
        %1210 = vmatmul.bf16.gmra.mxu0 %v1173
        %v1211 = vpop.f32.mrf.mxu0
        %v1212 = vadd.f32 %v1025, %v1211
        %v1213 = vpop.f32.mrf.mxu0
        %v1214 = vadd.f32 %v1030, %v1213
        %1215 = vmatmul.bf16.gmra.mxu0 %v1176
        %v1216 = vpop.f32.mrf.mxu0
        %v1217 = vadd.f32 %v1035, %v1216
        %v1218 = vpop.f32.mrf.mxu0
        %v1219 = vadd.f32 %v1040, %v1218
        %1220 = vmatmul.bf16.gmra.mxu0 %v1179
        %v1221 = vpop.f32.mrf.mxu0
        %v1222 = vadd.f32 %v1045, %v1221
        %v1223 = vpop.f32.mrf.mxu0
        %v1224 = vadd.f32 %v1050, %v1223
        %1225 = vmatmul.bf16.gmra.mxu0 %v1182
        %v1226 = vpop.f32.mrf.mxu0
        %v1227 = vadd.f32 %v1055, %v1226
        %v1228 = vpop.f32.mrf.mxu0
        %v1229 = vadd.f32 %v1060, %v1228
        %1230 = vmatmul.bf16.gmra.mxu0 %v1185
        %v1231 = vpop.f32.mrf.mxu0
        %v1232 = vadd.f32 %v1065, %v1231
        %v1233 = vpop.f32.mrf.mxu0
        %v1234 = vadd.f32 %v1070, %v1233
        %1235 = vmatmul.bf16.gmra.mxu0 %v1188
        %v1236 = vpop.f32.mrf.mxu0
        %v1237 = vadd.f32 %v1075, %v1236
        %v1238 = vpop.f32.mrf.mxu0
        %v1239 = vadd.f32 %v1080, %v1238
        %1240 = vmatmul.bf16.gmra.mxu0 %v1191
        %v1241 = vpop.f32.mrf.mxu0
        %v1242 = vadd.f32 %v1085, %v1241
        %v1243 = vpop.f32.mrf.mxu0
        %v1244 = vadd.f32 %v1090, %v1243
        %1245 = vmatmul.bf16.gmra.mxu0 %v1194
        %v1246 = vpop.f32.mrf.mxu0
        %v1247 = vadd.f32 %v1095, %v1246
        %v1248 = vpop.f32.mrf.mxu0
        %v1249 = vadd.f32 %v1100, %v1248
        %1250 = vmatmul.bf16.gmra.mxu0 %v1197
        %v1251 = vpop.f32.mrf.mxu0
        %v1252 = vadd.f32 %v1105, %v1251
        %v1253 = vpop.f32.mrf.mxu0
        %v1254 = vadd.f32 %v1110, %v1253
        %1255 = vmatmul.bf16.gmra.mxu0 %v1200
        %v1256 = vpop.f32.mrf.mxu0
        %v1257 = vadd.f32 %v1115, %v1256
        %v1258 = vpop.f32.mrf.mxu0
        %v1259 = vadd.f32 %v1120, %v1258
        %1260 = vdwg.mxu0
        %vm1261 = vcmp.gt.f32.partialorder %v1212, 0.0
        %vm1262 = vcmp.gt.f32.partialorder %v1214, 0.0
        %vm1263 = vcmp.gt.f32.partialorder %v1217, 0.0
        %vm1264 = vcmp.gt.f32.partialorder %v1219, 0.0
        %vm1265 = vcmp.gt.f32.partialorder %v1222, 0.0
        %vm1266 = vcmp.gt.f32.partialorder %v1224, 0.0
        %vm1267 = vcmp.gt.f32.partialorder %v1227, 0.0
        %vm1268 = vcmp.gt.f32.partialorder %v1229, 0.0
        %vm1269 = vcmp.gt.f32.partialorder %v1232, 0.0
        %vm1270 = vcmp.gt.f32.partialorder %v1234, 0.0
        %vm1271 = vcmp.gt.f32.partialorder %v1237, 0.0
        %vm1272 = vcmp.gt.f32.partialorder %v1239, 0.0
        %vm1273 = vcmp.gt.f32.partialorder %v1242, 0.0
        %vm1274 = vcmp.gt.f32.partialorder %v1244, 0.0
        %vm1275 = vcmp.gt.f32.partialorder %v1247, 0.0
        %vm1276 = vcmp.gt.f32.partialorder %v1249, 0.0
        %vm1277 = vcmp.gt.f32.partialorder %v1252, 0.0
        %vm1278 = vcmp.gt.f32.partialorder %v1254, 0.0
        %vm1279 = vcmp.gt.f32.partialorder %v1257, 0.0
        %vm1280 = vcmp.gt.f32.partialorder %v1259, 0.0
        %v1281 = vmul.f32 %v1212, 0.2
        %v1282 = vmul.f32 %v1214, 0.2
        %v1283 = vmul.f32 %v1217, 0.2
        %v1284 = vmul.f32 %v1219, 0.2
        %v1285 = vmul.f32 %v1222, 0.2
        %v1286 = vmul.f32 %v1224, 0.2
        %v1287 = vmul.f32 %v1227, 0.2
        %v1288 = vmul.f32 %v1229, 0.2
        %v1289 = vmul.f32 %v1232, 0.2
        %v1290 = vmul.f32 %v1234, 0.2
        %v1291 = vmul.f32 %v1237, 0.2
        %v1292 = vmul.f32 %v1239, 0.2
        %v1293 = vmul.f32 %v1242, 0.2
        %v1294 = vmul.f32 %v1244, 0.2
        %v1295 = vmul.f32 %v1247, 0.2
        %v1296 = vmul.f32 %v1249, 0.2
        %v1297 = vmul.f32 %v1252, 0.2
        %v1298 = vmul.f32 %v1254, 0.2
        %v1299 = vmul.f32 %v1257, 0.2
        %v1300 = vmul.f32 %v1259, 0.2
        %v1301 = vsel %vm1261, %v1212, %v1281
        %v1302 = vsel %vm1262, %v1214, %v1282
        %v1303 = vsel %vm1263, %v1217, %v1283
        %v1304 = vsel %vm1264, %v1219, %v1284
        %v1305 = vsel %vm1265, %v1222, %v1285
        %v1306 = vsel %vm1266, %v1224, %v1286
        %v1307 = vsel %vm1267, %v1227, %v1287
        %v1308 = vsel %vm1268, %v1229, %v1288
        %v1309 = vsel %vm1269, %v1232, %v1289
        %v1310 = vsel %vm1270, %v1234, %v1290
        %v1311 = vsel %vm1271, %v1237, %v1291
        %v1312 = vsel %vm1272, %v1239, %v1292
        %v1313 = vsel %vm1273, %v1242, %v1293
        %v1314 = vsel %vm1274, %v1244, %v1294
        %v1315 = vsel %vm1275, %v1247, %v1295
        %v1316 = vsel %vm1276, %v1249, %v1296
        %v1317 = vsel %vm1277, %v1252, %v1297
        %v1318 = vsel %vm1278, %v1254, %v1298
        %v1319 = vsel %vm1279, %v1257, %v1299
        %v1320 = vsel %vm1280, %v1259, %v1300
        %v1321 = vpack.c.bf16 %v1301, %v1301
        %v1322 = vpack.c.bf16 %v1302, %v1302
        %v1323 = vpack.c.bf16 %v1303, %v1303
        %v1324 = vpack.c.bf16 %v1304, %v1304
        %v1325 = vpack.c.bf16 %v1305, %v1305
        %v1326 = vpack.c.bf16 %v1306, %v1306
        %v1327 = vpack.c.bf16 %v1307, %v1307
        %v1328 = vpack.c.bf16 %v1308, %v1308
        %v1329 = vpack.c.bf16 %v1309, %v1309
        %v1330 = vpack.c.bf16 %v1310, %v1310
        %v1331 = vpack.c.bf16 %v1311, %v1311
        %v1332 = vpack.c.bf16 %v1312, %v1312
        %v1333 = vpack.c.bf16 %v1313, %v1313
        %v1334 = vpack.c.bf16 %v1314, %v1314
        %v1335 = vpack.c.bf16 %v1315, %v1315
        %v1336 = vpack.c.bf16 %v1316, %v1316
        %v1337 = vpack.c.bf16 %v1317, %v1317
        %v1338 = vpack.c.bf16 %v1318, %v1318
        %v1339 = vpack.c.bf16 %v1319, %v1319
        %v1340 = vpack.c.bf16 %v1320, %v1320
        %1341 = vst [vmem:[#allocation3 + $0x50] sm:$0xf] %v1321
        %1342 = vst [vmem:[#allocation3 + $0x54] sm:$0xf] %v1322
        %1343 = vst [vmem:[#allocation3 + $0x58] sm:$0xf] %v1323
        %1344 = vst [vmem:[#allocation3 + $0x5c] sm:$0xf] %v1324
        %1345 = vst [vmem:[#allocation3 + $0x60] sm:$0xf] %v1325
        %1346 = vst [vmem:[#allocation3 + $0x64] sm:$0xf] %v1326
        %1347 = vst [vmem:[#allocation3 + $0x68] sm:$0xf] %v1327
        %1348 = vst [vmem:[#allocation3 + $0x6c] sm:$0xf] %v1328
        %1349 = vst [vmem:[#allocation3 + $0x70] sm:$0xf] %v1329
        %1350 = vst [vmem:[#allocation3 + $0x74] sm:$0xf] %v1330
        %1351 = vst [vmem:[#allocation3 + $0x78] sm:$0xf] %v1331
        %1352 = vst [vmem:[#allocation3 + $0x7c] sm:$0xf] %v1332
        %1353 = vst [vmem:[#allocation3 + $0x80] sm:$0xf] %v1333
        %1354 = vst [vmem:[#allocation3 + $0x84] sm:$0xf] %v1334
        %1355 = vst [vmem:[#allocation3 + $0x88] sm:$0xf] %v1335
        %1356 = vst [vmem:[#allocation3 + $0x8c] sm:$0xf] %v1336
        %1357 = vst [vmem:[#allocation3 + $0x90] sm:$0xf] %v1337
        %1358 = vst [vmem:[#allocation3 + $0x94] sm:$0xf] %v1338
        %1359 = vst [vmem:[#allocation3 + $0x98] sm:$0xf] %v1339
        %1360 = vst [vmem:[#allocation3 + $0x9c] sm:$0xf] %v1340
        %v1361 = vld [vmem:[%s222 + $0x10] sm:$0x7c]
        %1362 = vst [vmem:[#allocation2 - $0x2] sm:$0x7c] %v1361
        %v1363 = vld [vmem:[%s222 + $0x10] sm:$0x7c]
        %v1364 = vld [vmem:[%s222 + $0x18] sm:$0x7c]
        %1367 = vrot.lane.b32.xlu0 %v1363, 127
        %v1368 = vpop.permute.xlu0 %1367
        %1369 = vrot.lane.b32.xlu0 %v1364, 127
        %v1370 = vpop.permute.xlu0 %1369
        %v1371 = vsel %vm242, %v1368, %v1370
        %1373 = vst [vmem:[#allocation2 + $0x3] sm:$0x7c] %v1371
        %v1374 = vld [vmem:[%s222 + $0x10] sm:$0x7c]
        %v1375 = vld [vmem:[%s222 + $0x18] sm:$0x7c]
        %1378 = vrot.lane.b32.xlu0 %v1374, 126
        %v1379 = vpop.permute.xlu0 %1378
        %1380 = vrot.lane.b32.xlu0 %v1375, 126
        %v1381 = vpop.permute.xlu0 %1380
        %v1382 = vsel %vm254, %v1379, %v1381
        %1384 = vst [vmem:[#allocation2 + $0x8] sm:$0x7c] %v1382
        %v1385 = vld [vmem:[%s222 + $0x10] sm:$0x7c]
        %v1386 = vld [vmem:[%s222 + $0x18] sm:$0x7c]
        %1389 = vrot.lane.b32.xlu0 %v1385, 125
        %v1390 = vpop.permute.xlu0 %1389
        %1391 = vrot.lane.b32.xlu0 %v1386, 125
        %v1392 = vpop.permute.xlu0 %1391
        %v1393 = vsel %vm266, %v1390, %v1392
        %1395 = vst [vmem:[#allocation2 + $0xd] sm:$0x7c] %v1393
        %v1396 = vld [vmem:[%s222 + $0x10] sm:$0x7c]
        %v1397 = vld [vmem:[%s222 + $0x18] sm:$0x7c]
        %1400 = vrot.lane.b32.xlu0 %v1396, 124
        %v1401 = vpop.permute.xlu0 %1400
        %1402 = vrot.lane.b32.xlu0 %v1397, 124
        %v1403 = vpop.permute.xlu0 %1402
        %v1404 = vsel %vm278, %v1401, %v1403
        %1406 = vst [vmem:[#allocation2 + $0x12] sm:$0x7c] %v1404
        %v1407 = vld [vmem:[%s222 + $0x10] sm:$0x7c]
        %v1408 = vld [vmem:[%s222 + $0x18] sm:$0x7c]
        %1411 = vrot.lane.b32.xlu0 %v1407, 123
        %v1412 = vpop.permute.xlu0 %1411
        %1413 = vrot.lane.b32.xlu0 %v1408, 123
        %v1414 = vpop.permute.xlu0 %1413
        %v1415 = vsel %vm290, %v1412, %v1414
        %1417 = vst [vmem:[#allocation2 + $0x17] sm:$0x7c] %v1415
        %v1418 = vld [vmem:[%s222 + $0x10] sm:$0x7c]
        %v1419 = vld [vmem:[%s222 + $0x18] sm:$0x7c]
        %1422 = vrot.lane.b32.xlu0 %v1418, 122
        %v1423 = vpop.permute.xlu0 %1422
        %1424 = vrot.lane.b32.xlu0 %v1419, 122
        %v1425 = vpop.permute.xlu0 %1424
        %v1426 = vsel %vm302, %v1423, %v1425
        %1428 = vst [vmem:[#allocation2 + $0x1c] sm:$0x7c] %v1426
        %v1429 = vld [vmem:[%s222 + $0x10] sm:$0x7c]
        %v1430 = vld [vmem:[%s222 + $0x18] sm:$0x7c]
        %1433 = vrot.lane.b32.xlu0 %v1429, 121
        %v1434 = vpop.permute.xlu0 %1433
        %1435 = vrot.lane.b32.xlu0 %v1430, 121
        %v1436 = vpop.permute.xlu0 %1435
        %v1437 = vsel %vm314, %v1434, %v1436
        %1439 = vst [vmem:[#allocation2 + $0x21] sm:$0x7c] %v1437
        %v1440 = vld [vmem:[%s222 + $0x10] sm:$0x7c]
        %v1441 = vld [vmem:[%s222 + $0x18] sm:$0x7c]
        %1444 = vrot.lane.b32.xlu0 %v1440, 120
        %v1445 = vpop.permute.xlu0 %1444
        %1446 = vrot.lane.b32.xlu0 %v1441, 120
        %v1447 = vpop.permute.xlu0 %1446
        %v1448 = vsel %vm326, %v1445, %v1447
        %1450 = vst [vmem:[#allocation2 + $0x26] sm:$0x7c] %v1448
        %v1451 = vld [vmem:[%s222 + $0x10] sm:$0x7c]
        %v1452 = vld [vmem:[%s222 + $0x18] sm:$0x7c]
        %1455 = vrot.lane.b32.xlu0 %v1451, 119
        %v1456 = vpop.permute.xlu0 %1455
        %1457 = vrot.lane.b32.xlu0 %v1452, 119
        %v1458 = vpop.permute.xlu0 %1457
        %v1459 = vsel %vm338, %v1456, %v1458
        %1461 = vst [vmem:[#allocation2 + $0x2b] sm:$0x7c] %v1459
        %v1462 = vld [vmem:[%s222 + $0x10] sm:$0x7c]
        %v1463 = vld [vmem:[%s222 + $0x18] sm:$0x7c]
        %1466 = vrot.lane.b32.xlu0 %v1462, 118
        %v1467 = vpop.permute.xlu0 %1466
        %1468 = vrot.lane.b32.xlu0 %v1463, 118
        %v1469 = vpop.permute.xlu0 %1468
        %v1470 = vsel %vm350, %v1467, %v1469
        %1472 = vst [vmem:[#allocation2 + $0x30] sm:$0x7c] %v1470
        %v1473 = vld [vmem:[%s1] sm:$0xf]
        %v1474 = vld [vmem:[%s1 + $0x4] sm:$0xf]
        %v1475 = vld [vmem:[%s1 + $0x8] sm:$0xf]
        %v1476 = vld [vmem:[%s1 + $0xc] sm:$0xf]
        %v1477 = vld [vmem:[%s1 + $0x10] sm:$0xf]
        %v1478 = vld [vmem:[%s1 + $0x14] sm:$0xf]
        %v1479 = vld [vmem:[%s1 + $0x18] sm:$0xf]
        %v1480 = vld [vmem:[%s1 + $0x1c] sm:$0xf]
        %v1481 = vld [vmem:[%s1 + $0x20] sm:$0xf]
        %v1482 = vld [vmem:[%s1 + $0x24] sm:$0xf]
        %v1483 = vld [vmem:[%s1 + $0x28] sm:$0xf]
        %v1484 = vld [vmem:[%s1 + $0x2c] sm:$0xf]
        %v1485 = vld [vmem:[%s1 + $0x30] sm:$0xf]
        %v1486 = vld [vmem:[%s1 + $0x34] sm:$0xf]
        %v1487 = vld [vmem:[%s1 + $0x38] sm:$0xf]
        %v1488 = vld [vmem:[%s1 + $0x3c] sm:$0xf]
        %v1489 = vld [vmem:[%s1 + $0x40] sm:$0xf]
        %v1490 = vld [vmem:[%s1 + $0x44] sm:$0xf]
        %v1491 = vld [vmem:[%s1 + $0x48] sm:$0xf]
        %v1492 = vld [vmem:[%s1 + $0x4c] sm:$0xf]
        %v1493 = vld [vmem:[#allocation2] sm:$0xff]
        %v1494 = vld [vmem:[#allocation2 + $0x8] sm:$0xff]
        %v1495 = vld [vmem:[#allocation2 + $0x10] sm:$0xff]
        %v1496 = vld [vmem:[#allocation2 + $0x18] sm:$0xff]
        %v1497 = vld [vmem:[#allocation2 + $0x20] sm:$0xff]
        %v1498 = vld [vmem:[#allocation2 + $0x28] sm:$0xff]
        %v1499 = vld [vmem:[#allocation2 + $0x30] sm:$0xff]
        %v1500 = vld [vmem:[#allocation2 + $0x38] sm:$0xff]
        %v1501 = vpack.c.bf16 %v1494, %v1493
        %v1502 = vpack.c.bf16 %v1496, %v1495
        %v1503 = vpack.c.bf16 %v1498, %v1497
        %v1504 = vpack.c.bf16 %v1500, %v1499
        %v1505 = vld [vmem:[%s2] sm:$0xff]
        %v1506 = vld [vmem:[%s2 + $0x8] sm:$0xff]
        %v1507 = vld [vmem:[%s2 + $0x10] sm:$0xff]
        %v1508 = vld [vmem:[%s2 + $0x18] sm:$0xff]
        %v1509 = vld [vmem:[%s2 + $0x20] sm:$0xff]
        %v1510 = vld [vmem:[%s2 + $0x28] sm:$0xff]
        %v1511 = vld [vmem:[%s2 + $0x30] sm:$0xff]
        %v1512 = vld [vmem:[%s2 + $0x38] sm:$0xff]
        %v1513 = vld [vmem:[%s2 + $0x40] sm:$0xff]
        %v1514 = vld [vmem:[%s2 + $0x48] sm:$0xff]
        %v1515 = vld [vmem:[%s2 + $0x50] sm:$0xff]
        %v1516 = vld [vmem:[%s2 + $0x58] sm:$0xff]
        %v1517 = vld [vmem:[%s2 + $0x60] sm:$0xff]
        %v1518 = vld [vmem:[%s2 + $0x68] sm:$0xff]
        %v1519 = vld [vmem:[%s2 + $0x70] sm:$0xff]
        %v1520 = vld [vmem:[%s2 + $0x78] sm:$0xff]
        %v1521 = vld [vmem:[%s2 + $0x80] sm:$0xff]
        %v1522 = vld [vmem:[%s2 + $0x88] sm:$0xff]
        %v1523 = vld [vmem:[%s2 + $0x90] sm:$0xff]
        %v1524 = vld [vmem:[%s2 + $0x98] sm:$0xff]
        %1526 = vset.pattern.permute.xlu0 0
        %1527 = vperm.xlu0 %1526, %v1505
        %v1528 = vpop.permute.xlu0 %1527
        %1531 = vset.pattern.permute.xlu0 0
        %1532 = vperm.xlu0 %1531, %v1506
        %v1533 = vpop.permute.xlu0 %1532
        %1536 = vset.pattern.permute.xlu0 0
        %1537 = vperm.xlu0 %1536, %v1507
        %v1538 = vpop.permute.xlu0 %1537
        %1541 = vset.pattern.permute.xlu0 0
        %1542 = vperm.xlu0 %1541, %v1508
        %v1543 = vpop.permute.xlu0 %1542
        %1546 = vset.pattern.permute.xlu0 0
        %1547 = vperm.xlu0 %1546, %v1509
        %v1548 = vpop.permute.xlu0 %1547
        %1551 = vset.pattern.permute.xlu0 0
        %1552 = vperm.xlu0 %1551, %v1510
        %v1553 = vpop.permute.xlu0 %1552
        %1556 = vset.pattern.permute.xlu0 0
        %1557 = vperm.xlu0 %1556, %v1511
        %v1558 = vpop.permute.xlu0 %1557
        %1561 = vset.pattern.permute.xlu0 0
        %1562 = vperm.xlu0 %1561, %v1512
        %v1563 = vpop.permute.xlu0 %1562
        %1566 = vset.pattern.permute.xlu0 0
        %1567 = vperm.xlu0 %1566, %v1513
        %v1568 = vpop.permute.xlu0 %1567
        %1571 = vset.pattern.permute.xlu0 0
        %1572 = vperm.xlu0 %1571, %v1514
        %v1573 = vpop.permute.xlu0 %1572
        %1576 = vset.pattern.permute.xlu0 0
        %1577 = vperm.xlu0 %1576, %v1515
        %v1578 = vpop.permute.xlu0 %1577
        %1581 = vset.pattern.permute.xlu0 0
        %1582 = vperm.xlu0 %1581, %v1516
        %v1583 = vpop.permute.xlu0 %1582
        %1586 = vset.pattern.permute.xlu0 0
        %1587 = vperm.xlu0 %1586, %v1517
        %v1588 = vpop.permute.xlu0 %1587
        %1591 = vset.pattern.permute.xlu0 0
        %1592 = vperm.xlu0 %1591, %v1518
        %v1593 = vpop.permute.xlu0 %1592
        %1596 = vset.pattern.permute.xlu0 0
        %1597 = vperm.xlu0 %1596, %v1519
        %v1598 = vpop.permute.xlu0 %1597
        %1601 = vset.pattern.permute.xlu0 0
        %1602 = vperm.xlu0 %1601, %v1520
        %v1603 = vpop.permute.xlu0 %1602
        %1606 = vset.pattern.permute.xlu0 0
        %1607 = vperm.xlu0 %1606, %v1521
        %v1608 = vpop.permute.xlu0 %1607
        %1611 = vset.pattern.permute.xlu0 0
        %1612 = vperm.xlu0 %1611, %v1522
        %v1613 = vpop.permute.xlu0 %1612
        %1616 = vset.pattern.permute.xlu0 0
        %1617 = vperm.xlu0 %1616, %v1523
        %v1618 = vpop.permute.xlu0 %1617
        %1621 = vset.pattern.permute.xlu0 0
        %1622 = vperm.xlu0 %1621, %v1524
        %v1623 = vpop.permute.xlu0 %1622
        %v1645 = vunpack.c.l.b16 %v1473
        %v1646 = vunpack.c.l.b16 %v1474
        %v1647 = vunpack.c.l.b16 %v1475
        %v1648 = vunpack.c.l.b16 %v1476
        %v1649 = vunpack.c.l.b16 %v1477
        %v1650 = vunpack.c.l.b16 %v1478
        %v1651 = vunpack.c.l.b16 %v1479
        %v1652 = vunpack.c.l.b16 %v1480
        %v1653 = vunpack.c.l.b16 %v1481
        %v1654 = vunpack.c.l.b16 %v1482
        %v1655 = vunpack.c.l.b16 %v1483
        %v1656 = vunpack.c.l.b16 %v1484
        %v1657 = vunpack.c.l.b16 %v1485
        %v1658 = vunpack.c.l.b16 %v1486
        %v1659 = vunpack.c.l.b16 %v1487
        %v1660 = vunpack.c.l.b16 %v1488
        %v1661 = vunpack.c.l.b16 %v1489
        %v1662 = vunpack.c.l.b16 %v1490
        %v1663 = vunpack.c.l.b16 %v1491
        %v1664 = vunpack.c.l.b16 %v1492
        %v1665 = vpack.c.b16 %v1646, %v1645
        %v1666 = vpack.c.b16 %v1648, %v1647
        %v1667 = vpack.c.b16 %v1650, %v1649
        %v1668 = vpack.c.b16 %v1652, %v1651
        %v1669 = vpack.c.b16 %v1654, %v1653
        %v1670 = vpack.c.b16 %v1656, %v1655
        %v1671 = vpack.c.b16 %v1658, %v1657
        %v1672 = vpack.c.b16 %v1660, %v1659
        %v1673 = vpack.c.b16 %v1662, %v1661
        %v1674 = vpack.c.b16 %v1664, %v1663
        %v1676 = vsel %vm556, %v1665, 0
        %v1679 = vsel %vm556, %v1666, 0
        %v1682 = vsel %vm556, %v1667, 0
        %v1685 = vsel %vm556, %v1668, 0
        %v1688 = vsel %vm556, %v1669, 0
        %v1691 = vsel %vm556, %v1670, 0
        %v1694 = vsel %vm556, %v1671, 0
        %v1697 = vsel %vm556, %v1672, 0
        %v1700 = vsel %vm556, %v1673, 0
        %v1703 = vsel %vm556, %v1674, 0
        %1705 = vmatpush.bf16.msra.mxu0 0
        %1706 = vmatpush.bf16.msra.mxu0 0
        %1707 = vmatpush.bf16.msra.mxu0 0
        %1708 = vmatpush.bf16.msra.mxu0 0
        %1709 = vmatpush.bf16.msra.mxu0 %v1504
        %1710 = vmatpush.bf16.msra.mxu0 %v1503
        %1711 = vmatpush.bf16.msra.mxu0 %v1502
        %1712 = vmatpush.bf16.msra.mxu0 %v1501
        %1713 = vmatmul.bf16.gmra.mxu0 %v1676
        %v1714 = vpop.f32.mrf.mxu0
        %v1715 = vadd.f32 %v1528, %v1714
        %v1716 = vpop.f32.mrf.mxu0
        %v1717 = vadd.f32 %v1533, %v1716
        %1718 = vmatmul.bf16.gmra.mxu0 %v1679
        %v1719 = vpop.f32.mrf.mxu0
        %v1720 = vadd.f32 %v1538, %v1719
        %v1721 = vpop.f32.mrf.mxu0
        %v1722 = vadd.f32 %v1543, %v1721
        %1723 = vmatmul.bf16.gmra.mxu0 %v1682
        %v1724 = vpop.f32.mrf.mxu0
        %v1725 = vadd.f32 %v1548, %v1724
        %v1726 = vpop.f32.mrf.mxu0
        %v1727 = vadd.f32 %v1553, %v1726
        %1728 = vmatmul.bf16.gmra.mxu0 %v1685
        %v1729 = vpop.f32.mrf.mxu0
        %v1730 = vadd.f32 %v1558, %v1729
        %v1731 = vpop.f32.mrf.mxu0
        %v1732 = vadd.f32 %v1563, %v1731
        %1733 = vmatmul.bf16.gmra.mxu0 %v1688
        %v1734 = vpop.f32.mrf.mxu0
        %v1735 = vadd.f32 %v1568, %v1734
        %v1736 = vpop.f32.mrf.mxu0
        %v1737 = vadd.f32 %v1573, %v1736
        %1738 = vmatmul.bf16.gmra.mxu0 %v1691
        %v1739 = vpop.f32.mrf.mxu0
        %v1740 = vadd.f32 %v1578, %v1739
        %v1741 = vpop.f32.mrf.mxu0
        %v1742 = vadd.f32 %v1583, %v1741
        %1743 = vmatmul.bf16.gmra.mxu0 %v1694
        %v1744 = vpop.f32.mrf.mxu0
        %v1745 = vadd.f32 %v1588, %v1744
        %v1746 = vpop.f32.mrf.mxu0
        %v1747 = vadd.f32 %v1593, %v1746
        %1748 = vmatmul.bf16.gmra.mxu0 %v1697
        %v1749 = vpop.f32.mrf.mxu0
        %v1750 = vadd.f32 %v1598, %v1749
        %v1751 = vpop.f32.mrf.mxu0
        %v1752 = vadd.f32 %v1603, %v1751
        %1753 = vmatmul.bf16.gmra.mxu0 %v1700
        %v1754 = vpop.f32.mrf.mxu0
        %v1755 = vadd.f32 %v1608, %v1754
        %v1756 = vpop.f32.mrf.mxu0
        %v1757 = vadd.f32 %v1613, %v1756
        %1758 = vmatmul.bf16.gmra.mxu0 %v1703
        %v1759 = vpop.f32.mrf.mxu0
        %v1760 = vadd.f32 %v1618, %v1759
        %v1761 = vpop.f32.mrf.mxu0
        %v1762 = vadd.f32 %v1623, %v1761
        %1763 = vdwg.mxu0
        %vm1764 = vcmp.gt.f32.partialorder %v1715, 0.0
        %vm1765 = vcmp.gt.f32.partialorder %v1717, 0.0
        %vm1766 = vcmp.gt.f32.partialorder %v1720, 0.0
        %vm1767 = vcmp.gt.f32.partialorder %v1722, 0.0
        %vm1768 = vcmp.gt.f32.partialorder %v1725, 0.0
        %vm1769 = vcmp.gt.f32.partialorder %v1727, 0.0
        %vm1770 = vcmp.gt.f32.partialorder %v1730, 0.0
        %vm1771 = vcmp.gt.f32.partialorder %v1732, 0.0
        %vm1772 = vcmp.gt.f32.partialorder %v1735, 0.0
        %vm1773 = vcmp.gt.f32.partialorder %v1737, 0.0
        %vm1774 = vcmp.gt.f32.partialorder %v1740, 0.0
        %vm1775 = vcmp.gt.f32.partialorder %v1742, 0.0
        %vm1776 = vcmp.gt.f32.partialorder %v1745, 0.0
        %vm1777 = vcmp.gt.f32.partialorder %v1747, 0.0
        %vm1778 = vcmp.gt.f32.partialorder %v1750, 0.0
        %vm1779 = vcmp.gt.f32.partialorder %v1752, 0.0
        %vm1780 = vcmp.gt.f32.partialorder %v1755, 0.0
        %vm1781 = vcmp.gt.f32.partialorder %v1757, 0.0
        %vm1782 = vcmp.gt.f32.partialorder %v1760, 0.0
        %vm1783 = vcmp.gt.f32.partialorder %v1762, 0.0
        %v1784 = vmul.f32 %v1715, 0.2
        %v1785 = vmul.f32 %v1717, 0.2
        %v1786 = vmul.f32 %v1720, 0.2
        %v1787 = vmul.f32 %v1722, 0.2
        %v1788 = vmul.f32 %v1725, 0.2
        %v1789 = vmul.f32 %v1727, 0.2
        %v1790 = vmul.f32 %v1730, 0.2
        %v1791 = vmul.f32 %v1732, 0.2
        %v1792 = vmul.f32 %v1735, 0.2
        %v1793 = vmul.f32 %v1737, 0.2
        %v1794 = vmul.f32 %v1740, 0.2
        %v1795 = vmul.f32 %v1742, 0.2
        %v1796 = vmul.f32 %v1745, 0.2
        %v1797 = vmul.f32 %v1747, 0.2
        %v1798 = vmul.f32 %v1750, 0.2
        %v1799 = vmul.f32 %v1752, 0.2
        %v1800 = vmul.f32 %v1755, 0.2
        %v1801 = vmul.f32 %v1757, 0.2
        %v1802 = vmul.f32 %v1760, 0.2
        %v1803 = vmul.f32 %v1762, 0.2
        %v1804 = vsel %vm1764, %v1715, %v1784
        %v1805 = vsel %vm1765, %v1717, %v1785
        %v1806 = vsel %vm1766, %v1720, %v1786
        %v1807 = vsel %vm1767, %v1722, %v1787
        %v1808 = vsel %vm1768, %v1725, %v1788
        %v1809 = vsel %vm1769, %v1727, %v1789
        %v1810 = vsel %vm1770, %v1730, %v1790
        %v1811 = vsel %vm1771, %v1732, %v1791
        %v1812 = vsel %vm1772, %v1735, %v1792
        %v1813 = vsel %vm1773, %v1737, %v1793
        %v1814 = vsel %vm1774, %v1740, %v1794
        %v1815 = vsel %vm1775, %v1742, %v1795
        %v1816 = vsel %vm1776, %v1745, %v1796
        %v1817 = vsel %vm1777, %v1747, %v1797
        %v1818 = vsel %vm1778, %v1750, %v1798
        %v1819 = vsel %vm1779, %v1752, %v1799
        %v1820 = vsel %vm1780, %v1755, %v1800
        %v1821 = vsel %vm1781, %v1757, %v1801
        %v1822 = vsel %vm1782, %v1760, %v1802
        %v1823 = vsel %vm1783, %v1762, %v1803
        %v1824 = vpack.c.bf16 %v1804, %v1804
        %v1825 = vpack.c.bf16 %v1805, %v1805
        %v1826 = vpack.c.bf16 %v1806, %v1806
        %v1827 = vpack.c.bf16 %v1807, %v1807
        %v1828 = vpack.c.bf16 %v1808, %v1808
        %v1829 = vpack.c.bf16 %v1809, %v1809
        %v1830 = vpack.c.bf16 %v1810, %v1810
        %v1831 = vpack.c.bf16 %v1811, %v1811
        %v1832 = vpack.c.bf16 %v1812, %v1812
        %v1833 = vpack.c.bf16 %v1813, %v1813
        %v1834 = vpack.c.bf16 %v1814, %v1814
        %v1835 = vpack.c.bf16 %v1815, %v1815
        %v1836 = vpack.c.bf16 %v1816, %v1816
        %v1837 = vpack.c.bf16 %v1817, %v1817
        %v1838 = vpack.c.bf16 %v1818, %v1818
        %v1839 = vpack.c.bf16 %v1819, %v1819
        %v1840 = vpack.c.bf16 %v1820, %v1820
        %v1841 = vpack.c.bf16 %v1821, %v1821
        %v1842 = vpack.c.bf16 %v1822, %v1822
        %v1843 = vpack.c.bf16 %v1823, %v1823
        %1844 = vst [vmem:[#allocation3 + $0xa0] sm:$0xf] %v1824
        %1845 = vst [vmem:[#allocation3 + $0xa4] sm:$0xf] %v1825
        %1846 = vst [vmem:[#allocation3 + $0xa8] sm:$0xf] %v1826
        %1847 = vst [vmem:[#allocation3 + $0xac] sm:$0xf] %v1827
        %1848 = vst [vmem:[#allocation3 + $0xb0] sm:$0xf] %v1828
        %1849 = vst [vmem:[#allocation3 + $0xb4] sm:$0xf] %v1829
        %1850 = vst [vmem:[#allocation3 + $0xb8] sm:$0xf] %v1830
        %1851 = vst [vmem:[#allocation3 + $0xbc] sm:$0xf] %v1831
        %1852 = vst [vmem:[#allocation3 + $0xc0] sm:$0xf] %v1832
        %1853 = vst [vmem:[#allocation3 + $0xc4] sm:$0xf] %v1833
        %1854 = vst [vmem:[#allocation3 + $0xc8] sm:$0xf] %v1834
        %1855 = vst [vmem:[#allocation3 + $0xcc] sm:$0xf] %v1835
        %1856 = vst [vmem:[#allocation3 + $0xd0] sm:$0xf] %v1836
        %1857 = vst [vmem:[#allocation3 + $0xd4] sm:$0xf] %v1837
        %1858 = vst [vmem:[#allocation3 + $0xd8] sm:$0xf] %v1838
        %1859 = vst [vmem:[#allocation3 + $0xdc] sm:$0xf] %v1839
        %1860 = vst [vmem:[#allocation3 + $0xe0] sm:$0xf] %v1840
        %1861 = vst [vmem:[#allocation3 + $0xe4] sm:$0xf] %v1841
        %1862 = vst [vmem:[#allocation3 + $0xe8] sm:$0xf] %v1842
        %1863 = vst [vmem:[#allocation3 + $0xec] sm:$0xf] %v1843
        %v1864 = vld [vmem:[%s222 + $0x10] sm:$0x80]
        %v1865 = vld [vmem:[%s222 + $0x20] sm:$0xf]
        %1866 = vst [vmem:[#allocation2 - $0x7] sm:$0x80] %v1864
        %1867 = vst [vmem:[#allocation2 + $0x1] sm:$0xf] %v1865
        %v1868 = vld [vmem:[%s222 + $0x10] sm:$0x80]
        %v1869 = vld [vmem:[%s222 + $0x18] sm:$0x80]
        %v1870 = vld [vmem:[%s222 + $0x20] sm:$0xf]
        %v1871 = vld [vmem:[%s222 + $0x28] sm:$0xf]
        %1876 = vrot.lane.b32.xlu0 %v1868, 127
        %v1877 = vpop.permute.xlu0 %1876
        %1878 = vrot.lane.b32.xlu0 %v1869, 127
        %v1879 = vpop.permute.xlu0 %1878
        %1880 = vrot.lane.b32.xlu0 %v1870, 127
        %v1881 = vpop.permute.xlu0 %1880
        %1882 = vrot.lane.b32.xlu0 %v1871, 127
        %v1883 = vpop.permute.xlu0 %1882
        %v1884 = vsel %vm242, %v1877, %v1879
        %v1885 = vsel %vm242, %v1881, %v1883
        %1888 = vst [vmem:[#allocation2 - $0x2] sm:$0x80] %v1884
        %1889 = vst [vmem:[#allocation2 + $0x6] sm:$0xf] %v1885
        %v1890 = vld [vmem:[%s222 + $0x10] sm:$0x80]
        %v1891 = vld [vmem:[%s222 + $0x18] sm:$0x80]
        %v1892 = vld [vmem:[%s222 + $0x20] sm:$0xf]
        %v1893 = vld [vmem:[%s222 + $0x28] sm:$0xf]
        %1898 = vrot.lane.b32.xlu0 %v1890, 126
        %v1899 = vpop.permute.xlu0 %1898
        %1900 = vrot.lane.b32.xlu0 %v1891, 126
        %v1901 = vpop.permute.xlu0 %1900
        %1902 = vrot.lane.b32.xlu0 %v1892, 126
        %v1903 = vpop.permute.xlu0 %1902
        %1904 = vrot.lane.b32.xlu0 %v1893, 126
        %v1905 = vpop.permute.xlu0 %1904
        %v1906 = vsel %vm254, %v1899, %v1901
        %v1907 = vsel %vm254, %v1903, %v1905
        %1910 = vst [vmem:[#allocation2 + $0x3] sm:$0x80] %v1906
        %1911 = vst [vmem:[#allocation2 + $0xb] sm:$0xf] %v1907
        %v1912 = vld [vmem:[%s222 + $0x10] sm:$0x80]
        %v1913 = vld [vmem:[%s222 + $0x18] sm:$0x80]
        %v1914 = vld [vmem:[%s222 + $0x20] sm:$0xf]
        %v1915 = vld [vmem:[%s222 + $0x28] sm:$0xf]
        %1920 = vrot.lane.b32.xlu0 %v1912, 125
        %v1921 = vpop.permute.xlu0 %1920
        %1922 = vrot.lane.b32.xlu0 %v1913, 125
        %v1923 = vpop.permute.xlu0 %1922
        %1924 = vrot.lane.b32.xlu0 %v1914, 125
        %v1925 = vpop.permute.xlu0 %1924
        %1926 = vrot.lane.b32.xlu0 %v1915, 125
        %v1927 = vpop.permute.xlu0 %1926
        %v1928 = vsel %vm266, %v1921, %v1923
        %v1929 = vsel %vm266, %v1925, %v1927
        %1932 = vst [vmem:[#allocation2 + $0x8] sm:$0x80] %v1928
        %1933 = vst [vmem:[#allocation2 + $0x10] sm:$0xf] %v1929
        %v1934 = vld [vmem:[%s222 + $0x10] sm:$0x80]
        %v1935 = vld [vmem:[%s222 + $0x18] sm:$0x80]
        %v1936 = vld [vmem:[%s222 + $0x20] sm:$0xf]
        %v1937 = vld [vmem:[%s222 + $0x28] sm:$0xf]
        %1942 = vrot.lane.b32.xlu0 %v1934, 124
        %v1943 = vpop.permute.xlu0 %1942
        %1944 = vrot.lane.b32.xlu0 %v1935, 124
        %v1945 = vpop.permute.xlu0 %1944
        %1946 = vrot.lane.b32.xlu0 %v1936, 124
        %v1947 = vpop.permute.xlu0 %1946
        %1948 = vrot.lane.b32.xlu0 %v1937, 124
        %v1949 = vpop.permute.xlu0 %1948
        %v1950 = vsel %vm278, %v1943, %v1945
        %v1951 = vsel %vm278, %v1947, %v1949
        %1954 = vst [vmem:[#allocation2 + $0xd] sm:$0x80] %v1950
        %1955 = vst [vmem:[#allocation2 + $0x15] sm:$0xf] %v1951
        %v1956 = vld [vmem:[%s222 + $0x10] sm:$0x80]
        %v1957 = vld [vmem:[%s222 + $0x18] sm:$0x80]
        %v1958 = vld [vmem:[%s222 + $0x20] sm:$0xf]
        %v1959 = vld [vmem:[%s222 + $0x28] sm:$0xf]
        %1964 = vrot.lane.b32.xlu0 %v1956, 123
        %v1965 = vpop.permute.xlu0 %1964
        %1966 = vrot.lane.b32.xlu0 %v1957, 123
        %v1967 = vpop.permute.xlu0 %1966
        %1968 = vrot.lane.b32.xlu0 %v1958, 123
        %v1969 = vpop.permute.xlu0 %1968
        %1970 = vrot.lane.b32.xlu0 %v1959, 123
        %v1971 = vpop.permute.xlu0 %1970
        %v1972 = vsel %vm290, %v1965, %v1967
        %v1973 = vsel %vm290, %v1969, %v1971
        %1976 = vst [vmem:[#allocation2 + $0x12] sm:$0x80] %v1972
        %1977 = vst [vmem:[#allocation2 + $0x1a] sm:$0xf] %v1973
        %v1978 = vld [vmem:[%s222 + $0x10] sm:$0x80]
        %v1979 = vld [vmem:[%s222 + $0x18] sm:$0x80]
        %v1980 = vld [vmem:[%s222 + $0x20] sm:$0xf]
        %v1981 = vld [vmem:[%s222 + $0x28] sm:$0xf]
        %1986 = vrot.lane.b32.xlu0 %v1978, 122
        %v1987 = vpop.permute.xlu0 %1986
        %1988 = vrot.lane.b32.xlu0 %v1979, 122
        %v1989 = vpop.permute.xlu0 %1988
        %1990 = vrot.lane.b32.xlu0 %v1980, 122
        %v1991 = vpop.permute.xlu0 %1990
        %1992 = vrot.lane.b32.xlu0 %v1981, 122
        %v1993 = vpop.permute.xlu0 %1992
        %v1994 = vsel %vm302, %v1987, %v1989
        %v1995 = vsel %vm302, %v1991, %v1993
        %1998 = vst [vmem:[#allocation2 + $0x17] sm:$0x80] %v1994
        %1999 = vst [vmem:[#allocation2 + $0x1f] sm:$0xf] %v1995
        %v2000 = vld [vmem:[%s222 + $0x10] sm:$0x80]
        %v2001 = vld [vmem:[%s222 + $0x18] sm:$0x80]
        %v2002 = vld [vmem:[%s222 + $0x20] sm:$0xf]
        %v2003 = vld [vmem:[%s222 + $0x28] sm:$0xf]
        %2008 = vrot.lane.b32.xlu0 %v2000, 121
        %v2009 = vpop.permute.xlu0 %2008
        %2010 = vrot.lane.b32.xlu0 %v2001, 121
        %v2011 = vpop.permute.xlu0 %2010
        %2012 = vrot.lane.b32.xlu0 %v2002, 121
        %v2013 = vpop.permute.xlu0 %2012
        %2014 = vrot.lane.b32.xlu0 %v2003, 121
        %v2015 = vpop.permute.xlu0 %2014
        %v2016 = vsel %vm314, %v2009, %v2011
        %v2017 = vsel %vm314, %v2013, %v2015
        %2020 = vst [vmem:[#allocation2 + $0x1c] sm:$0x80] %v2016
        %2021 = vst [vmem:[#allocation2 + $0x24] sm:$0xf] %v2017
        %v2022 = vld [vmem:[%s222 + $0x10] sm:$0x80]
        %v2023 = vld [vmem:[%s222 + $0x18] sm:$0x80]
        %v2024 = vld [vmem:[%s222 + $0x20] sm:$0xf]
        %v2025 = vld [vmem:[%s222 + $0x28] sm:$0xf]
        %2030 = vrot.lane.b32.xlu0 %v2022, 120
        %v2031 = vpop.permute.xlu0 %2030
        %2032 = vrot.lane.b32.xlu0 %v2023, 120
        %v2033 = vpop.permute.xlu0 %2032
        %2034 = vrot.lane.b32.xlu0 %v2024, 120
        %v2035 = vpop.permute.xlu0 %2034
        %2036 = vrot.lane.b32.xlu0 %v2025, 120
        %v2037 = vpop.permute.xlu0 %2036
        %v2038 = vsel %vm326, %v2031, %v2033
        %v2039 = vsel %vm326, %v2035, %v2037
        %2042 = vst [vmem:[#allocation2 + $0x21] sm:$0x80] %v2038
        %2043 = vst [vmem:[#allocation2 + $0x29] sm:$0xf] %v2039
        %v2044 = vld [vmem:[%s222 + $0x10] sm:$0x80]
        %v2045 = vld [vmem:[%s222 + $0x18] sm:$0x80]
        %v2046 = vld [vmem:[%s222 + $0x20] sm:$0xf]
        %v2047 = vld [vmem:[%s222 + $0x28] sm:$0xf]
        %2052 = vrot.lane.b32.xlu0 %v2044, 119
        %v2053 = vpop.permute.xlu0 %2052
        %2054 = vrot.lane.b32.xlu0 %v2045, 119
        %v2055 = vpop.permute.xlu0 %2054
        %2056 = vrot.lane.b32.xlu0 %v2046, 119
        %v2057 = vpop.permute.xlu0 %2056
        %2058 = vrot.lane.b32.xlu0 %v2047, 119
        %v2059 = vpop.permute.xlu0 %2058
        %v2060 = vsel %vm338, %v2053, %v2055
        %v2061 = vsel %vm338, %v2057, %v2059
        %2064 = vst [vmem:[#allocation2 + $0x26] sm:$0x80] %v2060
        %2065 = vst [vmem:[#allocation2 + $0x2e] sm:$0xf] %v2061
        %v2066 = vld [vmem:[%s222 + $0x10] sm:$0x80]
        %v2067 = vld [vmem:[%s222 + $0x18] sm:$0x80]
        %v2068 = vld [vmem:[%s222 + $0x20] sm:$0xf]
        %v2069 = vld [vmem:[%s222 + $0x28] sm:$0xf]
        %2074 = vrot.lane.b32.xlu0 %v2066, 118
        %v2075 = vpop.permute.xlu0 %2074
        %2076 = vrot.lane.b32.xlu0 %v2067, 118
        %v2077 = vpop.permute.xlu0 %2076
        %2078 = vrot.lane.b32.xlu0 %v2068, 118
        %v2079 = vpop.permute.xlu0 %2078
        %2080 = vrot.lane.b32.xlu0 %v2069, 118
        %v2081 = vpop.permute.xlu0 %2080
        %v2082 = vsel %vm350, %v2075, %v2077
        %v2083 = vsel %vm350, %v2079, %v2081
        %2086 = vst [vmem:[#allocation2 + $0x2b] sm:$0x80] %v2082
        %2087 = vst [vmem:[#allocation2 + $0x33] sm:$0xf] %v2083
        %v2088 = vld [vmem:[%s1] sm:$0xf]
        %v2089 = vld [vmem:[%s1 + $0x4] sm:$0xf]
        %v2090 = vld [vmem:[%s1 + $0x8] sm:$0xf]
        %v2091 = vld [vmem:[%s1 + $0xc] sm:$0xf]
        %v2092 = vld [vmem:[%s1 + $0x10] sm:$0xf]
        %v2093 = vld [vmem:[%s1 + $0x14] sm:$0xf]
        %v2094 = vld [vmem:[%s1 + $0x18] sm:$0xf]
        %v2095 = vld [vmem:[%s1 + $0x1c] sm:$0xf]
        %v2096 = vld [vmem:[%s1 + $0x20] sm:$0xf]
        %v2097 = vld [vmem:[%s1 + $0x24] sm:$0xf]
        %v2098 = vld [vmem:[%s1 + $0x28] sm:$0xf]
        %v2099 = vld [vmem:[%s1 + $0x2c] sm:$0xf]
        %v2100 = vld [vmem:[%s1 + $0x30] sm:$0xf]
        %v2101 = vld [vmem:[%s1 + $0x34] sm:$0xf]
        %v2102 = vld [vmem:[%s1 + $0x38] sm:$0xf]
        %v2103 = vld [vmem:[%s1 + $0x3c] sm:$0xf]
        %v2104 = vld [vmem:[%s1 + $0x40] sm:$0xf]
        %v2105 = vld [vmem:[%s1 + $0x44] sm:$0xf]
        %v2106 = vld [vmem:[%s1 + $0x48] sm:$0xf]
        %v2107 = vld [vmem:[%s1 + $0x4c] sm:$0xf]
        %v2108 = vld [vmem:[#allocation2] sm:$0xff]
        %v2109 = vld [vmem:[#allocation2 + $0x8] sm:$0xff]
        %v2110 = vld [vmem:[#allocation2 + $0x10] sm:$0xff]
        %v2111 = vld [vmem:[#allocation2 + $0x18] sm:$0xff]
        %v2112 = vld [vmem:[#allocation2 + $0x20] sm:$0xff]
        %v2113 = vld [vmem:[#allocation2 + $0x28] sm:$0xff]
        %v2114 = vld [vmem:[#allocation2 + $0x30] sm:$0xff]
        %v2115 = vld [vmem:[#allocation2 + $0x38] sm:$0xff]
        %v2116 = vpack.c.bf16 %v2109, %v2108
        %v2117 = vpack.c.bf16 %v2111, %v2110
        %v2118 = vpack.c.bf16 %v2113, %v2112
        %v2119 = vpack.c.bf16 %v2115, %v2114
        %v2120 = vld [vmem:[%s2] sm:$0xff]
        %v2121 = vld [vmem:[%s2 + $0x8] sm:$0xff]
        %v2122 = vld [vmem:[%s2 + $0x10] sm:$0xff]
        %v2123 = vld [vmem:[%s2 + $0x18] sm:$0xff]
        %v2124 = vld [vmem:[%s2 + $0x20] sm:$0xff]
        %v2125 = vld [vmem:[%s2 + $0x28] sm:$0xff]
        %v2126 = vld [vmem:[%s2 + $0x30] sm:$0xff]
        %v2127 = vld [vmem:[%s2 + $0x38] sm:$0xff]
        %v2128 = vld [vmem:[%s2 + $0x40] sm:$0xff]
        %v2129 = vld [vmem:[%s2 + $0x48] sm:$0xff]
        %v2130 = vld [vmem:[%s2 + $0x50] sm:$0xff]
        %v2131 = vld [vmem:[%s2 + $0x58] sm:$0xff]
        %v2132 = vld [vmem:[%s2 + $0x60] sm:$0xff]
        %v2133 = vld [vmem:[%s2 + $0x68] sm:$0xff]
        %v2134 = vld [vmem:[%s2 + $0x70] sm:$0xff]
        %v2135 = vld [vmem:[%s2 + $0x78] sm:$0xff]
        %v2136 = vld [vmem:[%s2 + $0x80] sm:$0xff]
        %v2137 = vld [vmem:[%s2 + $0x88] sm:$0xff]
        %v2138 = vld [vmem:[%s2 + $0x90] sm:$0xff]
        %v2139 = vld [vmem:[%s2 + $0x98] sm:$0xff]
        %2141 = vset.pattern.permute.xlu0 0
        %2142 = vperm.xlu0 %2141, %v2120
        %v2143 = vpop.permute.xlu0 %2142
        %2146 = vset.pattern.permute.xlu0 0
        %2147 = vperm.xlu0 %2146, %v2121
        %v2148 = vpop.permute.xlu0 %2147
        %2151 = vset.pattern.permute.xlu0 0
        %2152 = vperm.xlu0 %2151, %v2122
        %v2153 = vpop.permute.xlu0 %2152
        %2156 = vset.pattern.permute.xlu0 0
        %2157 = vperm.xlu0 %2156, %v2123
        %v2158 = vpop.permute.xlu0 %2157
        %2161 = vset.pattern.permute.xlu0 0
        %2162 = vperm.xlu0 %2161, %v2124
        %v2163 = vpop.permute.xlu0 %2162
        %2166 = vset.pattern.permute.xlu0 0
        %2167 = vperm.xlu0 %2166, %v2125
        %v2168 = vpop.permute.xlu0 %2167
        %2171 = vset.pattern.permute.xlu0 0
        %2172 = vperm.xlu0 %2171, %v2126
        %v2173 = vpop.permute.xlu0 %2172
        %2176 = vset.pattern.permute.xlu0 0
        %2177 = vperm.xlu0 %2176, %v2127
        %v2178 = vpop.permute.xlu0 %2177
        %2181 = vset.pattern.permute.xlu0 0
        %2182 = vperm.xlu0 %2181, %v2128
        %v2183 = vpop.permute.xlu0 %2182
        %2186 = vset.pattern.permute.xlu0 0
        %2187 = vperm.xlu0 %2186, %v2129
        %v2188 = vpop.permute.xlu0 %2187
        %2191 = vset.pattern.permute.xlu0 0
        %2192 = vperm.xlu0 %2191, %v2130
        %v2193 = vpop.permute.xlu0 %2192
        %2196 = vset.pattern.permute.xlu0 0
        %2197 = vperm.xlu0 %2196, %v2131
        %v2198 = vpop.permute.xlu0 %2197
        %2201 = vset.pattern.permute.xlu0 0
        %2202 = vperm.xlu0 %2201, %v2132
        %v2203 = vpop.permute.xlu0 %2202
        %2206 = vset.pattern.permute.xlu0 0
        %2207 = vperm.xlu0 %2206, %v2133
        %v2208 = vpop.permute.xlu0 %2207
        %2211 = vset.pattern.permute.xlu0 0
        %2212 = vperm.xlu0 %2211, %v2134
        %v2213 = vpop.permute.xlu0 %2212
        %2216 = vset.pattern.permute.xlu0 0
        %2217 = vperm.xlu0 %2216, %v2135
        %v2218 = vpop.permute.xlu0 %2217
        %2221 = vset.pattern.permute.xlu0 0
        %2222 = vperm.xlu0 %2221, %v2136
        %v2223 = vpop.permute.xlu0 %2222
        %2226 = vset.pattern.permute.xlu0 0
        %2227 = vperm.xlu0 %2226, %v2137
        %v2228 = vpop.permute.xlu0 %2227
        %2231 = vset.pattern.permute.xlu0 0
        %2232 = vperm.xlu0 %2231, %v2138
        %v2233 = vpop.permute.xlu0 %2232
        %2236 = vset.pattern.permute.xlu0 0
        %2237 = vperm.xlu0 %2236, %v2139
        %v2238 = vpop.permute.xlu0 %2237
        %v2260 = vunpack.c.l.b16 %v2088
        %v2261 = vunpack.c.l.b16 %v2089
        %v2262 = vunpack.c.l.b16 %v2090
        %v2263 = vunpack.c.l.b16 %v2091
        %v2264 = vunpack.c.l.b16 %v2092
        %v2265 = vunpack.c.l.b16 %v2093
        %v2266 = vunpack.c.l.b16 %v2094
        %v2267 = vunpack.c.l.b16 %v2095
        %v2268 = vunpack.c.l.b16 %v2096
        %v2269 = vunpack.c.l.b16 %v2097
        %v2270 = vunpack.c.l.b16 %v2098
        %v2271 = vunpack.c.l.b16 %v2099
        %v2272 = vunpack.c.l.b16 %v2100
        %v2273 = vunpack.c.l.b16 %v2101
        %v2274 = vunpack.c.l.b16 %v2102
        %v2275 = vunpack.c.l.b16 %v2103
        %v2276 = vunpack.c.l.b16 %v2104
        %v2277 = vunpack.c.l.b16 %v2105
        %v2278 = vunpack.c.l.b16 %v2106
        %v2279 = vunpack.c.l.b16 %v2107
        %v2280 = vpack.c.b16 %v2261, %v2260
        %v2281 = vpack.c.b16 %v2263, %v2262
        %v2282 = vpack.c.b16 %v2265, %v2264
        %v2283 = vpack.c.b16 %v2267, %v2266
        %v2284 = vpack.c.b16 %v2269, %v2268
        %v2285 = vpack.c.b16 %v2271, %v2270
        %v2286 = vpack.c.b16 %v2273, %v2272
        %v2287 = vpack.c.b16 %v2275, %v2274
        %v2288 = vpack.c.b16 %v2277, %v2276
        %v2289 = vpack.c.b16 %v2279, %v2278
        %v2291 = vsel %vm556, %v2280, 0
        %v2294 = vsel %vm556, %v2281, 0
        %v2297 = vsel %vm556, %v2282, 0
        %v2300 = vsel %vm556, %v2283, 0
        %v2303 = vsel %vm556, %v2284, 0
        %v2306 = vsel %vm556, %v2285, 0
        %v2309 = vsel %vm556, %v2286, 0
        %v2312 = vsel %vm556, %v2287, 0
        %v2315 = vsel %vm556, %v2288, 0
        %v2318 = vsel %vm556, %v2289, 0
        %2320 = vmatpush.bf16.msra.mxu0 0
        %2321 = vmatpush.bf16.msra.mxu0 0
        %2322 = vmatpush.bf16.msra.mxu0 0
        %2323 = vmatpush.bf16.msra.mxu0 0
        %2324 = vmatpush.bf16.msra.mxu0 %v2119
        %2325 = vmatpush.bf16.msra.mxu0 %v2118
        %2326 = vmatpush.bf16.msra.mxu0 %v2117
        %2327 = vmatpush.bf16.msra.mxu0 %v2116
        %2328 = vmatmul.bf16.gmra.mxu0 %v2291
        %v2329 = vpop.f32.mrf.mxu0
        %v2330 = vadd.f32 %v2143, %v2329
        %v2331 = vpop.f32.mrf.mxu0
        %v2332 = vadd.f32 %v2148, %v2331
        %2333 = vmatmul.bf16.gmra.mxu0 %v2294
        %v2334 = vpop.f32.mrf.mxu0
        %v2335 = vadd.f32 %v2153, %v2334
        %v2336 = vpop.f32.mrf.mxu0
        %v2337 = vadd.f32 %v2158, %v2336
        %2338 = vmatmul.bf16.gmra.mxu0 %v2297
        %v2339 = vpop.f32.mrf.mxu0
        %v2340 = vadd.f32 %v2163, %v2339
        %v2341 = vpop.f32.mrf.mxu0
        %v2342 = vadd.f32 %v2168, %v2341
        %2343 = vmatmul.bf16.gmra.mxu0 %v2300
        %v2344 = vpop.f32.mrf.mxu0
        %v2345 = vadd.f32 %v2173, %v2344
        %v2346 = vpop.f32.mrf.mxu0
        %v2347 = vadd.f32 %v2178, %v2346
        %2348 = vmatmul.bf16.gmra.mxu0 %v2303
        %v2349 = vpop.f32.mrf.mxu0
        %v2350 = vadd.f32 %v2183, %v2349
        %v2351 = vpop.f32.mrf.mxu0
        %v2352 = vadd.f32 %v2188, %v2351
        %2353 = vmatmul.bf16.gmra.mxu0 %v2306
        %v2354 = vpop.f32.mrf.mxu0
        %v2355 = vadd.f32 %v2193, %v2354
        %v2356 = vpop.f32.mrf.mxu0
        %v2357 = vadd.f32 %v2198, %v2356
        %2358 = vmatmul.bf16.gmra.mxu0 %v2309
        %v2359 = vpop.f32.mrf.mxu0
        %v2360 = vadd.f32 %v2203, %v2359
        %v2361 = vpop.f32.mrf.mxu0
        %v2362 = vadd.f32 %v2208, %v2361
        %2363 = vmatmul.bf16.gmra.mxu0 %v2312
        %v2364 = vpop.f32.mrf.mxu0
        %v2365 = vadd.f32 %v2213, %v2364
        %v2366 = vpop.f32.mrf.mxu0
        %v2367 = vadd.f32 %v2218, %v2366
        %2368 = vmatmul.bf16.gmra.mxu0 %v2315
        %v2369 = vpop.f32.mrf.mxu0
        %v2370 = vadd.f32 %v2223, %v2369
        %v2371 = vpop.f32.mrf.mxu0
        %v2372 = vadd.f32 %v2228, %v2371
        %2373 = vmatmul.bf16.gmra.mxu0 %v2318
        %v2374 = vpop.f32.mrf.mxu0
        %v2375 = vadd.f32 %v2233, %v2374
        %v2376 = vpop.f32.mrf.mxu0
        %v2377 = vadd.f32 %v2238, %v2376
        %2378 = vdwg.mxu0
        %vm2379 = vcmp.gt.f32.partialorder %v2330, 0.0
        %vm2380 = vcmp.gt.f32.partialorder %v2332, 0.0
        %vm2381 = vcmp.gt.f32.partialorder %v2335, 0.0
        %vm2382 = vcmp.gt.f32.partialorder %v2337, 0.0
        %vm2383 = vcmp.gt.f32.partialorder %v2340, 0.0
        %vm2384 = vcmp.gt.f32.partialorder %v2342, 0.0
        %vm2385 = vcmp.gt.f32.partialorder %v2345, 0.0
        %vm2386 = vcmp.gt.f32.partialorder %v2347, 0.0
        %vm2387 = vcmp.gt.f32.partialorder %v2350, 0.0
        %vm2388 = vcmp.gt.f32.partialorder %v2352, 0.0
        %vm2389 = vcmp.gt.f32.partialorder %v2355, 0.0
        %vm2390 = vcmp.gt.f32.partialorder %v2357, 0.0
        %vm2391 = vcmp.gt.f32.partialorder %v2360, 0.0
        %vm2392 = vcmp.gt.f32.partialorder %v2362, 0.0
        %vm2393 = vcmp.gt.f32.partialorder %v2365, 0.0
        %vm2394 = vcmp.gt.f32.partialorder %v2367, 0.0
        %vm2395 = vcmp.gt.f32.partialorder %v2370, 0.0
        %vm2396 = vcmp.gt.f32.partialorder %v2372, 0.0
        %vm2397 = vcmp.gt.f32.partialorder %v2375, 0.0
        %vm2398 = vcmp.gt.f32.partialorder %v2377, 0.0
        %v2399 = vmul.f32 %v2330, 0.2
        %v2400 = vmul.f32 %v2332, 0.2
        %v2401 = vmul.f32 %v2335, 0.2
        %v2402 = vmul.f32 %v2337, 0.2
        %v2403 = vmul.f32 %v2340, 0.2
        %v2404 = vmul.f32 %v2342, 0.2
        %v2405 = vmul.f32 %v2345, 0.2
        %v2406 = vmul.f32 %v2347, 0.2
        %v2407 = vmul.f32 %v2350, 0.2
        %v2408 = vmul.f32 %v2352, 0.2
        %v2409 = vmul.f32 %v2355, 0.2
        %v2410 = vmul.f32 %v2357, 0.2
        %v2411 = vmul.f32 %v2360, 0.2
        %v2412 = vmul.f32 %v2362, 0.2
        %v2413 = vmul.f32 %v2365, 0.2
        %v2414 = vmul.f32 %v2367, 0.2
        %v2415 = vmul.f32 %v2370, 0.2
        %v2416 = vmul.f32 %v2372, 0.2
        %v2417 = vmul.f32 %v2375, 0.2
        %v2418 = vmul.f32 %v2377, 0.2
        %v2419 = vsel %vm2379, %v2330, %v2399
        %v2420 = vsel %vm2380, %v2332, %v2400
        %v2421 = vsel %vm2381, %v2335, %v2401
        %v2422 = vsel %vm2382, %v2337, %v2402
        %v2423 = vsel %vm2383, %v2340, %v2403
        %v2424 = vsel %vm2384, %v2342, %v2404
        %v2425 = vsel %vm2385, %v2345, %v2405
        %v2426 = vsel %vm2386, %v2347, %v2406
        %v2427 = vsel %vm2387, %v2350, %v2407
        %v2428 = vsel %vm2388, %v2352, %v2408
        %v2429 = vsel %vm2389, %v2355, %v2409
        %v2430 = vsel %vm2390, %v2357, %v2410
        %v2431 = vsel %vm2391, %v2360, %v2411
        %v2432 = vsel %vm2392, %v2362, %v2412
        %v2433 = vsel %vm2393, %v2365, %v2413
        %v2434 = vsel %vm2394, %v2367, %v2414
        %v2435 = vsel %vm2395, %v2370, %v2415
        %v2436 = vsel %vm2396, %v2372, %v2416
        %v2437 = vsel %vm2397, %v2375, %v2417
        %v2438 = vsel %vm2398, %v2377, %v2418
        %v2439 = vpack.c.bf16 %v2419, %v2419
        %v2440 = vpack.c.bf16 %v2420, %v2420
        %v2441 = vpack.c.bf16 %v2421, %v2421
        %v2442 = vpack.c.bf16 %v2422, %v2422
        %v2443 = vpack.c.bf16 %v2423, %v2423
        %v2444 = vpack.c.bf16 %v2424, %v2424
        %v2445 = vpack.c.bf16 %v2425, %v2425
        %v2446 = vpack.c.bf16 %v2426, %v2426
        %v2447 = vpack.c.bf16 %v2427, %v2427
        %v2448 = vpack.c.bf16 %v2428, %v2428
        %v2449 = vpack.c.bf16 %v2429, %v2429
        %v2450 = vpack.c.bf16 %v2430, %v2430
        %v2451 = vpack.c.bf16 %v2431, %v2431
        %v2452 = vpack.c.bf16 %v2432, %v2432
        %v2453 = vpack.c.bf16 %v2433, %v2433
        %v2454 = vpack.c.bf16 %v2434, %v2434
        %v2455 = vpack.c.bf16 %v2435, %v2435
        %v2456 = vpack.c.bf16 %v2436, %v2436
        %v2457 = vpack.c.bf16 %v2437, %v2437
        %v2458 = vpack.c.bf16 %v2438, %v2438
        %2459 = vst [vmem:[#allocation3 + $0xf0] sm:$0xf] %v2439
        %2460 = vst [vmem:[#allocation3 + $0xf4] sm:$0xf] %v2440
        %2461 = vst [vmem:[#allocation3 + $0xf8] sm:$0xf] %v2441
        %2462 = vst [vmem:[#allocation3 + $0xfc] sm:$0xf] %v2442
        %2463 = vst [vmem:[#allocation3 + $0x100] sm:$0xf] %v2443
        %2464 = vst [vmem:[#allocation3 + $0x104] sm:$0xf] %v2444
        %2465 = vst [vmem:[#allocation3 + $0x108] sm:$0xf] %v2445
        %2466 = vst [vmem:[#allocation3 + $0x10c] sm:$0xf] %v2446
        %2467 = vst [vmem:[#allocation3 + $0x110] sm:$0xf] %v2447
        %2468 = vst [vmem:[#allocation3 + $0x114] sm:$0xf] %v2448
        %2469 = vst [vmem:[#allocation3 + $0x118] sm:$0xf] %v2449
        %2470 = vst [vmem:[#allocation3 + $0x11c] sm:$0xf] %v2450
        %2471 = vst [vmem:[#allocation3 + $0x120] sm:$0xf] %v2451
        %2472 = vst [vmem:[#allocation3 + $0x124] sm:$0xf] %v2452
        %2473 = vst [vmem:[#allocation3 + $0x128] sm:$0xf] %v2453
        %2474 = vst [vmem:[#allocation3 + $0x12c] sm:$0xf] %v2454
        %2475 = vst [vmem:[#allocation3 + $0x130] sm:$0xf] %v2455
        %2476 = vst [vmem:[#allocation3 + $0x134] sm:$0xf] %v2456
        %2477 = vst [vmem:[#allocation3 + $0x138] sm:$0xf] %v2457
        %2478 = vst [vmem:[#allocation3 + $0x13c] sm:$0xf] %v2458
        %v2479 = vld [vmem:[%s3] sm:$0xff]
        %v2480 = vld [vmem:[%s3 + $0x8] sm:$0xff]
        %v2481 = vld [vmem:[%s3 + $0x10] sm:$0xf]
        %v2482 = vld [vmem:[%s3 + $0x14] sm:$0xff]
        %v2483 = vld [vmem:[%s3 + $0x1c] sm:$0xff]
        %v2484 = vld [vmem:[%s3 + $0x24] sm:$0xf]
        %v2485 = vld [vmem:[%s3 + $0x28] sm:$0xff]
        %v2486 = vld [vmem:[%s3 + $0x30] sm:$0xff]
        %v2487 = vld [vmem:[%s3 + $0x38] sm:$0xf]
        %v2488 = vld [vmem:[%s3 + $0x3c] sm:$0xff]
        %v2489 = vld [vmem:[%s3 + $0x44] sm:$0xff]
        %v2490 = vld [vmem:[%s3 + $0x4c] sm:$0xf]
        %v2491 = vld [vmem:[#allocation3] sm:$0xf]
        %v2492 = vld [vmem:[#allocation3 + $0x4] sm:$0xf]
        %v2493 = vld [vmem:[#allocation3 + $0x8] sm:$0xf]
        %v2494 = vld [vmem:[#allocation3 + $0xc] sm:$0xf]
        %v2495 = vld [vmem:[#allocation3 + $0x10] sm:$0xf]
        %v2496 = vld [vmem:[#allocation3 + $0x14] sm:$0xf]
        %v2497 = vld [vmem:[#allocation3 + $0x18] sm:$0xf]
        %v2498 = vld [vmem:[#allocation3 + $0x1c] sm:$0xf]
        %v2499 = vld [vmem:[#allocation3 + $0x20] sm:$0xf]
        %v2500 = vld [vmem:[#allocation3 + $0x24] sm:$0xf]
        %v2501 = vld [vmem:[#allocation3 + $0x28] sm:$0xf]
        %v2502 = vld [vmem:[#allocation3 + $0x2c] sm:$0xf]
        %v2503 = vld [vmem:[#allocation3 + $0x30] sm:$0xf]
        %v2504 = vld [vmem:[#allocation3 + $0x34] sm:$0xf]
        %v2505 = vld [vmem:[#allocation3 + $0x38] sm:$0xf]
        %v2506 = vld [vmem:[#allocation3 + $0x3c] sm:$0xf]
        %v2507 = vld [vmem:[#allocation3 + $0x40] sm:$0xf]
        %v2508 = vld [vmem:[#allocation3 + $0x44] sm:$0xf]
        %v2509 = vld [vmem:[#allocation3 + $0x48] sm:$0xf]
        %v2510 = vld [vmem:[#allocation3 + $0x4c] sm:$0xf]
        %v2511 = vld [vmem:[#allocation3 + $0x50] sm:$0xf]
        %v2512 = vld [vmem:[#allocation3 + $0x54] sm:$0xf]
        %v2513 = vld [vmem:[#allocation3 + $0x58] sm:$0xf]
        %v2514 = vld [vmem:[#allocation3 + $0x5c] sm:$0xf]
        %v2515 = vld [vmem:[#allocation3 + $0x60] sm:$0xf]
        %v2516 = vld [vmem:[#allocation3 + $0x64] sm:$0xf]
        %v2517 = vld [vmem:[#allocation3 + $0x68] sm:$0xf]
        %v2518 = vld [vmem:[#allocation3 + $0x6c] sm:$0xf]
        %v2519 = vld [vmem:[#allocation3 + $0x70] sm:$0xf]
        %v2520 = vld [vmem:[#allocation3 + $0x74] sm:$0xf]
        %v2521 = vld [vmem:[#allocation3 + $0x78] sm:$0xf]
        %v2522 = vld [vmem:[#allocation3 + $0x7c] sm:$0xf]
        %v2523 = vld [vmem:[#allocation3 + $0x80] sm:$0xf]
        %v2524 = vld [vmem:[#allocation3 + $0x84] sm:$0xf]
        %v2525 = vld [vmem:[#allocation3 + $0x88] sm:$0xf]
        %v2526 = vld [vmem:[#allocation3 + $0x8c] sm:$0xf]
        %v2527 = vld [vmem:[#allocation3 + $0x90] sm:$0xf]
        %v2528 = vld [vmem:[#allocation3 + $0x94] sm:$0xf]
        %v2529 = vld [vmem:[#allocation3 + $0x98] sm:$0xf]
        %v2530 = vld [vmem:[#allocation3 + $0x9c] sm:$0xf]
        %v2531 = vld [vmem:[#allocation3 + $0xa0] sm:$0xf]
        %v2532 = vld [vmem:[#allocation3 + $0xa4] sm:$0xf]
        %v2533 = vld [vmem:[#allocation3 + $0xa8] sm:$0xf]
        %v2534 = vld [vmem:[#allocation3 + $0xac] sm:$0xf]
        %v2535 = vld [vmem:[#allocation3 + $0xb0] sm:$0xf]
        %v2536 = vld [vmem:[#allocation3 + $0xb4] sm:$0xf]
        %v2537 = vld [vmem:[#allocation3 + $0xb8] sm:$0xf]
        %v2538 = vld [vmem:[#allocation3 + $0xbc] sm:$0xf]
        %v2539 = vld [vmem:[#allocation3 + $0xc0] sm:$0xf]
        %v2540 = vld [vmem:[#allocation3 + $0xc4] sm:$0xf]
        %v2541 = vld [vmem:[#allocation3 + $0xc8] sm:$0xf]
        %v2542 = vld [vmem:[#allocation3 + $0xcc] sm:$0xf]
        %v2543 = vld [vmem:[#allocation3 + $0xd0] sm:$0xf]
        %v2544 = vld [vmem:[#allocation3 + $0xd4] sm:$0xf]
        %v2545 = vld [vmem:[#allocation3 + $0xd8] sm:$0xf]
        %v2546 = vld [vmem:[#allocation3 + $0xdc] sm:$0xf]
        %v2547 = vld [vmem:[#allocation3 + $0xe0] sm:$0xf]
        %v2548 = vld [vmem:[#allocation3 + $0xe4] sm:$0xf]
        %v2549 = vld [vmem:[#allocation3 + $0xe8] sm:$0xf]
        %v2550 = vld [vmem:[#allocation3 + $0xec] sm:$0xf]
        %v2551 = vld [vmem:[#allocation3 + $0xf0] sm:$0xf]
        %v2552 = vld [vmem:[#allocation3 + $0xf4] sm:$0xf]
        %v2553 = vld [vmem:[#allocation3 + $0xf8] sm:$0xf]
        %v2554 = vld [vmem:[#allocation3 + $0xfc] sm:$0xf]
        %v2555 = vld [vmem:[#allocation3 + $0x100] sm:$0xf]
        %v2556 = vld [vmem:[#allocation3 + $0x104] sm:$0xf]
        %v2557 = vld [vmem:[#allocation3 + $0x108] sm:$0xf]
        %v2558 = vld [vmem:[#allocation3 + $0x10c] sm:$0xf]
        %v2559 = vld [vmem:[#allocation3 + $0x110] sm:$0xf]
        %v2560 = vld [vmem:[#allocation3 + $0x114] sm:$0xf]
        %v2561 = vld [vmem:[#allocation3 + $0x118] sm:$0xf]
        %v2562 = vld [vmem:[#allocation3 + $0x11c] sm:$0xf]
        %v2563 = vld [vmem:[#allocation3 + $0x120] sm:$0xf]
        %v2564 = vld [vmem:[#allocation3 + $0x124] sm:$0xf]
        %v2565 = vld [vmem:[#allocation3 + $0x128] sm:$0xf]
        %v2566 = vld [vmem:[#allocation3 + $0x12c] sm:$0xf]
        %v2567 = vld [vmem:[#allocation3 + $0x130] sm:$0xf]
        %v2568 = vld [vmem:[#allocation3 + $0x134] sm:$0xf]
        %v2569 = vld [vmem:[#allocation3 + $0x138] sm:$0xf]
        %v2570 = vld [vmem:[#allocation3 + $0x13c] sm:$0xf]
        %v2571 = vld [vmem:[%s4] sm:$0xff]
        %v2572 = vld [vmem:[%s4 + $0x8] sm:$0xff]
        %v2573 = vld [vmem:[%s4 + $0x10] sm:$0xff]
        %v2574 = vld [vmem:[%s4 + $0x18] sm:$0xff]
        %2576 = vset.pattern.permute.xlu0 0
        %2577 = vperm.xlu0 %2576, %v2571
        %v2578 = vpop.permute.xlu0 %2577
        %2581 = vset.pattern.permute.xlu0 0
        %2582 = vperm.xlu0 %2581, %v2572
        %v2583 = vpop.permute.xlu0 %2582
        %2586 = vset.pattern.permute.xlu0 0
        %2587 = vperm.xlu0 %2586, %v2573
        %v2588 = vpop.permute.xlu0 %2587
        %2591 = vset.pattern.permute.xlu0 0
        %2592 = vperm.xlu0 %2591, %v2574
        %v2593 = vpop.permute.xlu0 %2592
        %v2607 = vunpack.c.l.b16 %v2479
        %v2608 = vunpack.c.h.b16 %v2479
        %v2609 = vunpack.c.l.b16 %v2480
        %v2610 = vunpack.c.h.b16 %v2480
        %v2611 = vunpack.c.l.b16 %v2481
        %v2612 = vunpack.c.l.b16 %v2482
        %v2613 = vunpack.c.h.b16 %v2482
        %v2614 = vunpack.c.l.b16 %v2483
        %v2615 = vunpack.c.h.b16 %v2483
        %v2616 = vunpack.c.l.b16 %v2484
        %v2617 = vunpack.c.l.b16 %v2485
        %v2618 = vunpack.c.h.b16 %v2485
        %v2619 = vunpack.c.l.b16 %v2486
        %v2620 = vunpack.c.h.b16 %v2486
        %v2621 = vunpack.c.l.b16 %v2487
        %v2622 = vunpack.c.l.b16 %v2488
        %v2623 = vunpack.c.h.b16 %v2488
        %v2624 = vunpack.c.l.b16 %v2489
        %v2625 = vunpack.c.h.b16 %v2489
        %v2626 = vunpack.c.l.b16 %v2490
        %v2627 = vpack.c.b16 %v2612, %v2607
        %v2628 = vpack.c.b16 %v2613, %v2608
        %v2629 = vpack.c.b16 %v2614, %v2609
        %v2630 = vpack.c.b16 %v2615, %v2610
        %v2631 = vpack.c.b16 %v2616, %v2611
        %v2632 = vpack.c.b16 %v2622, %v2617
        %v2633 = vpack.c.b16 %v2623, %v2618
        %v2634 = vpack.c.b16 %v2624, %v2619
        %v2635 = vpack.c.b16 %v2625, %v2620
        %v2636 = vpack.c.b16 %v2626, %v2621
        %v2727 = vunpack.c.l.b16 %v2491
        %v2728 = vunpack.c.l.b16 %v2492
        %v2729 = vunpack.c.l.b16 %v2493
        %v2730 = vunpack.c.l.b16 %v2494
        %v2731 = vunpack.c.l.b16 %v2495
        %v2732 = vunpack.c.l.b16 %v2496
        %v2733 = vunpack.c.l.b16 %v2497
        %v2734 = vunpack.c.l.b16 %v2498
        %v2735 = vunpack.c.l.b16 %v2499
        %v2736 = vunpack.c.l.b16 %v2500
        %v2737 = vunpack.c.l.b16 %v2501
        %v2738 = vunpack.c.l.b16 %v2502
        %v2739 = vunpack.c.l.b16 %v2503
        %v2740 = vunpack.c.l.b16 %v2504
        %v2741 = vunpack.c.l.b16 %v2505
        %v2742 = vunpack.c.l.b16 %v2506
        %v2743 = vunpack.c.l.b16 %v2507
        %v2744 = vunpack.c.l.b16 %v2508
        %v2745 = vunpack.c.l.b16 %v2509
        %v2746 = vunpack.c.l.b16 %v2510
        %v2747 = vunpack.c.l.b16 %v2511
        %v2748 = vunpack.c.l.b16 %v2512
        %v2749 = vunpack.c.l.b16 %v2513
        %v2750 = vunpack.c.l.b16 %v2514
        %v2751 = vunpack.c.l.b16 %v2515
        %v2752 = vunpack.c.l.b16 %v2516
        %v2753 = vunpack.c.l.b16 %v2517
        %v2754 = vunpack.c.l.b16 %v2518
        %v2755 = vunpack.c.l.b16 %v2519
        %v2756 = vunpack.c.l.b16 %v2520
        %v2757 = vunpack.c.l.b16 %v2521
        %v2758 = vunpack.c.l.b16 %v2522
        %v2759 = vunpack.c.l.b16 %v2523
        %v2760 = vunpack.c.l.b16 %v2524
        %v2761 = vunpack.c.l.b16 %v2525
        %v2762 = vunpack.c.l.b16 %v2526
        %v2763 = vunpack.c.l.b16 %v2527
        %v2764 = vunpack.c.l.b16 %v2528
        %v2765 = vunpack.c.l.b16 %v2529
        %v2766 = vunpack.c.l.b16 %v2530
        %v2767 = vunpack.c.l.b16 %v2531
        %v2768 = vunpack.c.l.b16 %v2532
        %v2769 = vunpack.c.l.b16 %v2533
        %v2770 = vunpack.c.l.b16 %v2534
        %v2771 = vunpack.c.l.b16 %v2535
        %v2772 = vunpack.c.l.b16 %v2536
        %v2773 = vunpack.c.l.b16 %v2537
        %v2774 = vunpack.c.l.b16 %v2538
        %v2775 = vunpack.c.l.b16 %v2539
        %v2776 = vunpack.c.l.b16 %v2540
        %v2777 = vunpack.c.l.b16 %v2541
        %v2778 = vunpack.c.l.b16 %v2542
        %v2779 = vunpack.c.l.b16 %v2543
        %v2780 = vunpack.c.l.b16 %v2544
        %v2781 = vunpack.c.l.b16 %v2545
        %v2782 = vunpack.c.l.b16 %v2546
        %v2783 = vunpack.c.l.b16 %v2547
        %v2784 = vunpack.c.l.b16 %v2548
        %v2785 = vunpack.c.l.b16 %v2549
        %v2786 = vunpack.c.l.b16 %v2550
        %v2787 = vunpack.c.l.b16 %v2551
        %v2788 = vunpack.c.l.b16 %v2552
        %v2789 = vunpack.c.l.b16 %v2553
        %v2790 = vunpack.c.l.b16 %v2554
        %v2791 = vunpack.c.l.b16 %v2555
        %v2792 = vunpack.c.l.b16 %v2556
        %v2793 = vunpack.c.l.b16 %v2557
        %v2794 = vunpack.c.l.b16 %v2558
        %v2795 = vunpack.c.l.b16 %v2559
        %v2796 = vunpack.c.l.b16 %v2560
        %v2797 = vunpack.c.l.b16 %v2561
        %v2798 = vunpack.c.l.b16 %v2562
        %v2799 = vunpack.c.l.b16 %v2563
        %v2800 = vunpack.c.l.b16 %v2564
        %v2801 = vunpack.c.l.b16 %v2565
        %v2802 = vunpack.c.l.b16 %v2566
        %v2803 = vunpack.c.l.b16 %v2567
        %v2804 = vunpack.c.l.b16 %v2568
        %v2805 = vunpack.c.l.b16 %v2569
        %v2806 = vunpack.c.l.b16 %v2570
        %v2807 = vpack.c.b16 %v2728, %v2727
        %v2808 = vpack.c.b16 %v2730, %v2729
        %v2809 = vpack.c.b16 %v2732, %v2731
        %v2810 = vpack.c.b16 %v2734, %v2733
        %v2811 = vpack.c.b16 %v2736, %v2735
        %v2812 = vpack.c.b16 %v2738, %v2737
        %v2813 = vpack.c.b16 %v2740, %v2739
        %v2814 = vpack.c.b16 %v2742, %v2741
        %v2815 = vpack.c.b16 %v2744, %v2743
        %v2816 = vpack.c.b16 %v2746, %v2745
        %v2817 = vpack.c.b16 %v2748, %v2747
        %v2818 = vpack.c.b16 %v2750, %v2749
        %v2819 = vpack.c.b16 %v2752, %v2751
        %v2820 = vpack.c.b16 %v2754, %v2753
        %v2821 = vpack.c.b16 %v2756, %v2755
        %v2822 = vpack.c.b16 %v2758, %v2757
        %v2823 = vpack.c.b16 %v2760, %v2759
        %v2824 = vpack.c.b16 %v2762, %v2761
        %v2825 = vpack.c.b16 %v2764, %v2763
        %v2826 = vpack.c.b16 %v2766, %v2765
        %v2827 = vpack.c.b16 %v2768, %v2767
        %v2828 = vpack.c.b16 %v2770, %v2769
        %v2829 = vpack.c.b16 %v2772, %v2771
        %v2830 = vpack.c.b16 %v2774, %v2773
        %v2831 = vpack.c.b16 %v2776, %v2775
        %v2832 = vpack.c.b16 %v2778, %v2777
        %v2833 = vpack.c.b16 %v2780, %v2779
        %v2834 = vpack.c.b16 %v2782, %v2781
        %v2835 = vpack.c.b16 %v2784, %v2783
        %v2836 = vpack.c.b16 %v2786, %v2785
        %v2837 = vpack.c.b16 %v2788, %v2787
        %v2838 = vpack.c.b16 %v2790, %v2789
        %v2839 = vpack.c.b16 %v2792, %v2791
        %v2840 = vpack.c.b16 %v2794, %v2793
        %v2841 = vpack.c.b16 %v2796, %v2795
        %v2842 = vpack.c.b16 %v2798, %v2797
        %v2843 = vpack.c.b16 %v2800, %v2799
        %v2844 = vpack.c.b16 %v2802, %v2801
        %v2845 = vpack.c.b16 %v2804, %v2803
        %v2846 = vpack.c.b16 %v2806, %v2805
        %2887 = vmatpush.bf16.msra.mxu0 %v2814
        %2888 = vmatpush.bf16.msra.mxu0 %v2813
        %2889 = vmatpush.bf16.msra.mxu0 %v2812
        %2890 = vmatpush.bf16.msra.mxu0 %v2811
        %2891 = vmatpush.bf16.msra.mxu0 %v2810
        %2892 = vmatpush.bf16.msra.mxu0 %v2809
        %2893 = vmatpush.bf16.msra.mxu0 %v2808
        %2894 = vmatpush.bf16.msra.mxu0 %v2807
        %2895 = vmatmul.bf16.gmra.mxu0 %v2627
        %v2896 = vpop.f32.mrf.mxu0
        %v2897 = vadd.f32 %v2578, %v2896
        %v2898 = vpop.f32.mrf.mxu0
        %v2899 = vadd.f32 %v2583, %v2898
        %2900 = vmatmul.bf16.gmra.mxu0 %v2632
        %v2901 = vpop.f32.mrf.mxu0
        %v2902 = vadd.f32 %v2588, %v2901
        %v2903 = vpop.f32.mrf.mxu0
        %v2904 = vadd.f32 %v2593, %v2903
        %2905 = vdwg.mxu0
        %2906 = vmatpush.bf16.msra.mxu0 %v2822
        %2907 = vmatpush.bf16.msra.mxu0 %v2821
        %2908 = vmatpush.bf16.msra.mxu0 %v2820
        %2909 = vmatpush.bf16.msra.mxu0 %v2819
        %2910 = vmatpush.bf16.msra.mxu0 %v2818
        %2911 = vmatpush.bf16.msra.mxu0 %v2817
        %2912 = vmatpush.bf16.msra.mxu0 %v2816
        %2913 = vmatpush.bf16.msra.mxu0 %v2815
        %2914 = vmatmul.bf16.gmra.mxu0 %v2628
        %v2915 = vpop.f32.mrf.mxu0
        %v2916 = vadd.f32 %v2897, %v2915
        %v2917 = vpop.f32.mrf.mxu0
        %v2918 = vadd.f32 %v2899, %v2917
        %2919 = vmatmul.bf16.gmra.mxu0 %v2633
        %v2920 = vpop.f32.mrf.mxu0
        %v2921 = vadd.f32 %v2902, %v2920
        %v2922 = vpop.f32.mrf.mxu0
        %v2923 = vadd.f32 %v2904, %v2922
        %2924 = vdwg.mxu0
        %2925 = vmatpush.bf16.msra.mxu0 %v2830
        %2926 = vmatpush.bf16.msra.mxu0 %v2829
        %2927 = vmatpush.bf16.msra.mxu0 %v2828
        %2928 = vmatpush.bf16.msra.mxu0 %v2827
        %2929 = vmatpush.bf16.msra.mxu0 %v2826
        %2930 = vmatpush.bf16.msra.mxu0 %v2825
        %2931 = vmatpush.bf16.msra.mxu0 %v2824
        %2932 = vmatpush.bf16.msra.mxu0 %v2823
        %2933 = vmatmul.bf16.gmra.mxu0 %v2629
        %v2934 = vpop.f32.mrf.mxu0
        %v2935 = vadd.f32 %v2916, %v2934
        %v2936 = vpop.f32.mrf.mxu0
        %v2937 = vadd.f32 %v2918, %v2936
        %2938 = vmatmul.bf16.gmra.mxu0 %v2634
        %v2939 = vpop.f32.mrf.mxu0
        %v2940 = vadd.f32 %v2921, %v2939
        %v2941 = vpop.f32.mrf.mxu0
        %v2942 = vadd.f32 %v2923, %v2941
        %2943 = vdwg.mxu0
        %2944 = vmatpush.bf16.msra.mxu0 %v2838
        %2945 = vmatpush.bf16.msra.mxu0 %v2837
        %2946 = vmatpush.bf16.msra.mxu0 %v2836
        %2947 = vmatpush.bf16.msra.mxu0 %v2835
        %2948 = vmatpush.bf16.msra.mxu0 %v2834
        %2949 = vmatpush.bf16.msra.mxu0 %v2833
        %2950 = vmatpush.bf16.msra.mxu0 %v2832
        %2951 = vmatpush.bf16.msra.mxu0 %v2831
        %2952 = vmatmul.bf16.gmra.mxu0 %v2630
        %v2953 = vpop.f32.mrf.mxu0
        %v2954 = vadd.f32 %v2935, %v2953
        %v2955 = vpop.f32.mrf.mxu0
        %v2956 = vadd.f32 %v2937, %v2955
        %2957 = vmatmul.bf16.gmra.mxu0 %v2635
        %v2958 = vpop.f32.mrf.mxu0
        %v2959 = vadd.f32 %v2940, %v2958
        %v2960 = vpop.f32.mrf.mxu0
        %v2961 = vadd.f32 %v2942, %v2960
        %2962 = vdwg.mxu0
        %2963 = vmatpush.bf16.msra.mxu0 %v2846
        %2964 = vmatpush.bf16.msra.mxu0 %v2845
        %2965 = vmatpush.bf16.msra.mxu0 %v2844
        %2966 = vmatpush.bf16.msra.mxu0 %v2843
        %2967 = vmatpush.bf16.msra.mxu0 %v2842
        %2968 = vmatpush.bf16.msra.mxu0 %v2841
        %2969 = vmatpush.bf16.msra.mxu0 %v2840
        %2970 = vmatpush.bf16.msra.mxu0 %v2839
        %2971 = vmatmul.bf16.gmra.mxu0 %v2631
        %v2972 = vpop.f32.mrf.mxu0
        %v2973 = vadd.f32 %v2954, %v2972
        %v2974 = vpop.f32.mrf.mxu0
        %v2975 = vadd.f32 %v2956, %v2974
        %2976 = vmatmul.bf16.gmra.mxu0 %v2636
        %v2977 = vpop.f32.mrf.mxu0
        %v2978 = vadd.f32 %v2959, %v2977
        %v2979 = vpop.f32.mrf.mxu0
        %v2980 = vadd.f32 %v2961, %v2979
        %2981 = vdwg.mxu0
        %2982 = vst [vmem:[%s217] sm:$0xff] %v2973
        %2983 = vst [vmem:[%s217 + $0x8] sm:$0xff] %v2975
        %2984 = vst [vmem:[%s217 + $0x10] sm:$0xff] %v2978
        %2985 = vst [vmem:[%s217 + $0x18] sm:$0xff] %v2980
        %s2986 = sand.u32 %s137, 1
        %s2987 = scalar_lea.sflag [#allocation5], %s2986
        %s2988 = sand.u32 %s137, 1
        %s2989 = smul.addr %s2988, 32
        %s2990 = scalar_lea.vmem [#allocation4], %s2989
        // Predicated region
        $region41: #{tpu_custom_call.1} parent=39 // pred_check
          %p2991 = pneg %p147
        $region42: #{tpu_custom_call.1} parent=39 // pred_check_branch
          %2993 = sbr.rel (%p2991) target = $region44
        $region43: #{tpu_custom_call.1} parent=39 // pred_region
          %2995 = vsyncadd %s2987, 0
          %s2996 = smul.addr %s19, 4
          %s2997 = smul.addr %s2996, 8
          %s2998 = scalar_lea.hbm %s5, %s2997
          %s2999 = sshll.u32 %s2990, 4
          %s3000 = int_to_ptr.vmem [resolvable:$true] %s2999
          %s3001 = sshll.u32 %s2998, 4
          %s3002 = int_to_ptr.hbm [resolvable:$true] %s3001
          %3007 = dma.vmem_to_hbm [thread:$0]  %s3000, 512, %s3002, %s2987, 128, 128, 8
        $region44: #{tpu_custom_call.1} parent=39 // pred_fallthru
          _
      $region40: #{tpu_custom_call.1} parent=5 // pred_fallthru
        _
      %p3008 = scmp.le.s32.totalorder 2, %s14
      // Predicated region
      $region45: #{tpu_custom_call.1} parent=5 // pred_check
        %p3009 = pneg %p3008
      $region46: #{tpu_custom_call.1} parent=5 // pred_check_branch
        %3011 = sbr.rel (%p3009) target = $region48
      $region47: #{tpu_custom_call.1} parent=5 // pred_region
        %s3012 = ssub.s32 %s14, 2
        // Predicated region
        $region49: #{tpu_custom_call.1} parent=47 // pred_check
          %p3013 = pneg %p153
        $region50: #{tpu_custom_call.1} parent=47 // pred_check_branch
          %3015 = sbr.rel (%p3013) target = $region52
        $region51: #{tpu_custom_call.1} parent=47 // pred_region
          %s3016 = sand.u32 %s138, 1
          %s3017 = scalar_lea.sflag [#allocation5], %s3016
          %s3018 = sand.u32 %s138, 1
          %s3019 = smul.addr %s3018, 32
          %s3020 = scalar_lea.vmem [#allocation4], %s3019
          %3022 = dma.done %s3017, 512
        $region52: #{tpu_custom_call.1} parent=47 // pred_fallthru
          _
      $region48: #{tpu_custom_call.1} parent=5 // pred_fallthru
        _
    $region6: #{tpu_custom_call.1} parent=1 // loop_footer
      %s18 = sadd.s32 1, %s14
    $region7: #{tpu_custom_call.1} parent=1 // loop_footer_branch
      %13 = sbr.rel target = $region3
    $region8: #{tpu_custom_call.1} parent=1 // loop_exit
      _
    %3023 = vsyncpa [#allocation5], 1
    %s3024 = scalar_lea.sflag [#allocation5], 1
    %3025 = vsyncpa %s3024, 1

</llo_original>
